<compile_context>
chip_gen: v6e
topology: v6e:2x2x1
jax: 0.10.0
libtpu: 0.0.40
codegen_flags: <defaults>
</compile_context>

<pallas_src>
import jax
import jax.numpy as jnp
import numpy as np
from jax.experimental import pallas as pl
from jax.experimental.pallas import tpu as pltpu


# ----------------------------------------------------------------------------
# Fused multi-layer LSTM kernel (all layers inside one kernel, one B-tile per
# grid step).
#   x_ref   : (T, tb, C)    time-major input block (f32)
#   wih_ref : (L, C, 4C)    input->gates weights, bf16 (transposed PyTorch)
#   whh_ref : (L, C, 4C)    hidden->gates weights, bf16 (transposed PyTorch)
#   b_ref   : (L, 1, 4C)    bias_ih + bias_hh, f32
#   out_ref : (T, tb, C)    last layer hidden states (f32)
# Scratch:
#   xproj_sc: (T, tb, 4C) f32 — hoisted x-projection (+ bias) for the current layer
#   seq_sc  : (T, tb, C)  f32 — inter-layer sequence buffer
#   h_sc/c_sc: (tb, C)    f32 — recurrent state
# ----------------------------------------------------------------------------
def lstm_stack_kernel(x_ref, wih_ref, whh_ref, b_ref, out_ref,
                      xproj_sc, seq_sc, h_sc, c_sc):
    L = wih_ref.shape[0]
    T, tb, C = x_ref.shape
    C4 = 4 * C

    for l in range(L):
        is_last = (l == L - 1)

        # --- Hoisted input projection: one big bf16 MXU matmul, bias folded in.
        # (The same seq_sc buffer is read fully here before it is overwritten
        # per-step below, so it can serve as both layer input and output.)
        x_all = x_ref[...] if l == 0 else seq_sc[...]
        x_all = x_all.reshape(T * tb, C).astype(jnp.bfloat16)
        xproj_sc[...] = (
            jnp.dot(x_all, wih_ref[l], preferred_element_type=jnp.float32)
            + b_ref[l]
        ).reshape(T, tb, C4)

        whh_l = whh_ref[l]                      # (C, 4C) bf16, hoisted load
        h_sc[...] = jnp.zeros_like(h_sc)
        c_sc[...] = jnp.zeros_like(c_sc)

        def step(t, carry, *, last=is_last, whh=whh_l):
            # Only the recurrent matmul remains on the serial dependence chain.
            gates = xproj_sc[t] + jnp.dot(
                h_sc[...].astype(jnp.bfloat16), whh,
                preferred_element_type=jnp.float32)      # (tb, 4C), order i,f,g,o
            i = jax.nn.sigmoid(gates[:, 0 * C:1 * C])
            f = jax.nn.sigmoid(gates[:, 1 * C:2 * C])
            g = jnp.tanh(gates[:, 2 * C:3 * C])
            o = jax.nn.sigmoid(gates[:, 3 * C:4 * C])
            c_new = f * c_sc[...] + i * g
            h_new = o * jnp.tanh(c_new)
            c_sc[...] = c_new
            h_sc[...] = h_new
            if last:
                out_ref[t] = h_new
            else:
                seq_sc[t] = h_new
            return carry

        # T is static and small (feature-map width) -> fully unroll so the LLO
        # scheduler can overlap the h@Whh matmul, EUP nonlinearities and stores.
        jax.lax.fori_loop(0, T, step, 0, unroll=True)


def _choose_batch_tile(B, max_tile=64):
    """Largest multiple of 8 that divides B (capped), so the grid has >=2 blocks
    when possible (megacore sharding + pipelining). Falls back to a full block."""
    if B % 8 != 0:
        return B
    cap = min(max_tile, B)
    if B >= 16:
        cap = min(cap, B // 2)
    best = 8
    t = 8
    while t <= cap:
        if B % t == 0:
            best = t
        t += 8
    return best


def lstm_stack(x_tm, wih, whh, b, *, tb):
    """x_tm: (T, B, C) time-major f32. wih/whh: (L, C, 4C) bf16. b: (L, 1, 4C) f32."""
    T, B, C = x_tm.shape
    L = wih.shape[0]
    C4 = 4 * C
    return pl.pallas_call(
        lstm_stack_kernel,
        out_shape=jax.ShapeDtypeStruct((T, B, C), jnp.float32),
        grid=(B // tb,),
        in_specs=[
            pl.BlockSpec((T, tb, C), lambda i: (0, i, 0)),
            pl.BlockSpec((L, C, C4), lambda i: (0, 0, 0)),
            pl.BlockSpec((L, C, C4), lambda i: (0, 0, 0)),
            pl.BlockSpec((L, 1, C4), lambda i: (0, 0, 0)),
        ],
        out_specs=pl.BlockSpec((T, tb, C), lambda i: (0, i, 0)),
        scratch_shapes=[
            pltpu.VMEM((T, tb, C4), jnp.float32),   # hoisted x-projection
            pltpu.VMEM((T, tb, C), jnp.float32),    # inter-layer sequence
            pltpu.VMEM((tb, C), jnp.float32),       # h
            pltpu.VMEM((tb, C), jnp.float32),       # c
        ],
        compiler_params=pltpu.CompilerParams(
            dimension_semantics=("parallel",),
            vmem_limit_bytes=48 * 1024 * 1024,
        ),
    )(x_tm, wih, whh, b)


# ----------------------------------------------------------------------------
# Fused conv3x3 -> ReLU -> conv3x3 kernel (one image per grid step, NHWC).
#   xp_ref : (1, H+2, W+2, C)  zero-padded input
#   w1_ref : (3, 3C, C) bf16   per-dy stacked taps: w_hwio[dy].reshape(3C, C)
#   b1_ref : (1, C) f32
#   w2_ref : (3, 3C, C) bf16
#   b2_ref : (1, C) f32
#   o_ref  : (1, H, W, C)
#   mid_sc : (H+2, W+2, C) f32 — padded conv1 output kept in VMEM
# ----------------------------------------------------------------------------
def conv_mix_kernel(xp_ref, w1_ref, b1_ref, w2_ref, b2_ref, o_ref, mid_sc):
    _, Hp, Wp, C = xp_ref.shape
    H, W = Hp - 2, Wp - 2

    def conv3x3(x_pad, w_ref, b_ref, relu):
        # x_pad: (Hp, Wp, C) f32 value.  Hoist the 3 dx-shifted slabs out of the
        # dy loop (3 sublane relayouts instead of 9), then do one deep matmul
        # (K = 3C) per dy row of taps.
        slabs = [x_pad[:, dx:dx + W, :] for dx in range(3)]        # (Hp, W, C)
        acc = jnp.zeros((H * W, C), jnp.float32)
        for dy in range(3):
            patch = jnp.concatenate([s[dy:dy + H] for s in slabs],
                                    axis=-1)                       # (H, W, 3C)
            acc = acc + jnp.dot(
                patch.reshape(H * W, 3 * C).astype(jnp.bfloat16),
                w_ref[dy],
                preferred_element_type=jnp.float32)
        out = acc + b_ref[...]
        if relu:
            out = jnp.maximum(out, 0.0)
        return out.reshape(H, W, C)

    # conv1 + ReLU, padded result kept in VMEM (no HBM round trip).
    y1 = conv3x3(xp_ref[0], w1_ref, b1_ref, relu=True)
    mid_sc[...] = jnp.zeros_like(mid_sc)        # zero borders every step
    mid_sc[1:H + 1, 1:W + 1, :] = y1
    # conv2
    o_ref[...] = conv3x3(mid_sc[...], w2_ref, b2_ref, relu=False).reshape(1, H, W, C)


def conv_mixer(x_nhwc, w1, b1, w2, b2):
    N, H, W, C = x_nhwc.shape
    xp = jnp.pad(x_nhwc, ((0, 0), (1, 1), (1, 1), (0, 0)))
    Hp, Wp = H + 2, W + 2
    return pl.pallas_call(
        conv_mix_kernel,
        out_shape=jax.ShapeDtypeStruct((N, H, W, C), jnp.float32),
        grid=(N,),
        in_specs=[
            pl.BlockSpec((1, Hp, Wp, C), lambda n: (n, 0, 0, 0)),
            pl.BlockSpec((3, 3 * C, C), lambda n: (0, 0, 0)),
            pl.BlockSpec((1, C), lambda n: (0, 0)),
            pl.BlockSpec((3, 3 * C, C), lambda n: (0, 0, 0)),
            pl.BlockSpec((1, C), lambda n: (0, 0)),
        ],
        out_specs=pl.BlockSpec((1, H, W, C), lambda n: (n, 0, 0, 0)),
        scratch_shapes=[pltpu.VMEM((Hp, Wp, C), jnp.float32)],
        compiler_params=pltpu.CompilerParams(
            dimension_semantics=("parallel",),
            vmem_limit_bytes=48 * 1024 * 1024,
        ),
    )(xp, w1, b1.reshape(1, C), w2, b2.reshape(1, C))
    # TODO(synk): at very large H*W*C the per-image block should be further
    # tiled over H with a 1-row halo; not needed at mmocr feature-map sizes.


# ----------------------------------------------------------------------------
# PositionAwareLayer forward (Pallas).
# ----------------------------------------------------------------------------
def position_aware_layer_forward(x_nchw, params):
    n, c, h, w = x_nchw.shape
    # NCHW -> (N*H, W, C) row sequences -> time-major (T=W, B=N*H, C)
    x_tm = jnp.transpose(x_nchw, (0, 2, 3, 1)).reshape(n * h, w, c)
    x_tm = jnp.transpose(x_tm, (1, 0, 2))
    tb = _choose_batch_tile(n * h)

    seq = lstm_stack(x_tm, params["lstm_wih"], params["lstm_whh"],
                     params["lstm_b"], tb=tb)                      # (T, B, C)

    # back to NHWC for the fused conv mixer
    y = jnp.transpose(seq, (1, 0, 2)).reshape(n, h, w, c)
    y = conv_mixer(y, params["conv1_w"], params["conv1_b"],
                   params["conv2_w"], params["conv2_b"])
    # NHWC -> NCHW to match PyTorch output layout
    return jnp.transpose(y, (0, 3, 1, 2))


# ----------------------------------------------------------------------------
# Pure-JAX f32 reference (no Pallas) for verification.
# ----------------------------------------------------------------------------
def reference_forward(x_nchw, raw_params):
    n, c, h, w = x_nchw.shape
    seq = jnp.transpose(x_nchw, (0, 2, 3, 1)).reshape(n * h, w, c)   # (B, T, C)

    for (wih, whh, bih, bhh) in raw_params["lstm"]:
        B = seq.shape[0]
        C = whh.shape[1]

        def step(carry, x_t):
            hh, cc = carry
            gates = x_t @ wih.T + hh @ whh.T + bih + bhh
            i, f, g, o = jnp.split(gates, 4, axis=-1)
            i = jax.nn.sigmoid(i)
            f = jax.nn.sigmoid(f)
            g = jnp.tanh(g)
            o = jax.nn.sigmoid(o)
            cc = f * cc + i * g
            hh = o * jnp.tanh(cc)
            return (hh, cc), hh

        h0 = jnp.zeros((B, C), jnp.float32)
        c0 = jnp.zeros((B, C), jnp.float32)
        _, ys = jax.lax.scan(step, (h0, c0), jnp.swapaxes(seq, 0, 1))
        seq = jnp.swapaxes(ys, 0, 1)

    y = seq.reshape(n, h, w, c)                                      # NHWC
    dn = ("NHWC", "HWIO", "NHWC")
    y = jax.lax.conv_general_dilated(
        y, raw_params["conv1_w_hwio"], (1, 1), "SAME", dimension_numbers=dn
    ) + raw_params["conv1_b"]
    y = jnp.maximum(y, 0.0)
    y = jax.lax.conv_general_dilated(
        y, raw_params["conv2_w_hwio"], (1, 1), "SAME", dimension_numbers=dn
    ) + raw_params["conv2_b"]
    return jnp.transpose(y, (0, 3, 1, 2))


# ----------------------------------------------------------------------------
# Deterministic parameter init (matches the PyTorch module's shapes).
# ----------------------------------------------------------------------------
def init_params(key, dim_model, rnn_layers=2):
    c = dim_model
    k = 1.0 / np.sqrt(c)
    keys = jax.random.split(key, 4 * rnn_layers + 4)
    raw_lstm = []
    for l in range(rnn_layers):
        wih = jax.random.uniform(keys[4 * l + 0], (4 * c, c), jnp.float32, -k, k)
        whh = jax.random.uniform(keys[4 * l + 1], (4 * c, c), jnp.float32, -k, k)
        bih = jax.random.uniform(keys[4 * l + 2], (4 * c,), jnp.float32, -k, k)
        bhh = jax.random.uniform(keys[4 * l + 3], (4 * c,), jnp.float32, -k, k)
        raw_lstm.append((wih, whh, bih, bhh))

    kc = 1.0 / np.sqrt(c * 9)
    w1 = jax.random.uniform(keys[-4], (c, c, 3, 3), jnp.float32, -kc, kc)  # OIHW
    b1 = jax.random.uniform(keys[-3], (c,), jnp.float32, -kc, kc)
    w2 = jax.random.uniform(keys[-2], (c, c, 3, 3), jnp.float32, -kc, kc)
    b2 = jax.random.uniform(keys[-1], (c,), jnp.float32, -kc, kc)

    w1_hwio = jnp.transpose(w1, (2, 3, 1, 0))   # OIHW -> HWIO
    w2_hwio = jnp.transpose(w2, (2, 3, 1, 0))

    kernel_params = {
        # stacked, transposed, bf16 LSTM weights: (L, C, 4C)
        "lstm_wih": jnp.stack([w.T for (w, _, _, _) in raw_lstm]).astype(jnp.bfloat16),
        "lstm_whh": jnp.stack([w.T for (_, w, _, _) in raw_lstm]).astype(jnp.bfloat16),
        "lstm_b": jnp.stack([(bi + bh).reshape(1, 4 * c)
                             for (_, _, bi, bh) in raw_lstm]),        # (L,1,4C) f32
        # per-dy stacked conv taps: (3, 3*Cin, Cout) bf16
        "conv1_w": w1_hwio.reshape(3, 3 * c, c).astype(jnp.bfloat16),
        "conv1_b": b1,
        "conv2_w": w2_hwio.reshape(3, 3 * c, c).astype(jnp.bfloat16),
        "conv2_b": b2,
    }
    raw_params = {
        "lstm": raw_lstm,
        "conv1_w_hwio": w1_hwio,
        "conv1_b": b1,
        "conv2_w_hwio": w2_hwio,
        "conv2_b": b2,
    }
    return kernel_params, raw_params


if __name__ == "__main__":
    key = jax.random.PRNGKey(0)
    dim_model = 32
    N, C, H, W = 2, dim_model, 8, 8

    k_x, k_p = jax.random.split(key)
    x = jax.random.normal(k_x, (N, C, H, W), jnp.float32)

    kernel_params, raw_params = init_params(k_p, dim_model, rnn_layers=2)

    out = jax.block_until_ready(position_aware_layer_forward(x, kernel_params))
    ref = jax.block_until_ready(reference_forward(x, raw_params))

    assert out.shape == (N, C, H, W), out.shape
    np.testing.assert_allclose(np.asarray(out), np.asarray(ref), rtol=5e-2, atol=5e-2)

    print("KERNEL_OK")
</pallas_src>

<mosaic_0001>
module attributes {stable_mosaic.version = 11 : i64} {
  func.func @lstm_stack_kernel(%arg0: i32, %arg1: memref<8x8x32xf32, #tpu.memory_space<vmem>>, %arg2: memref<2x32x128xbf16, #tpu.memory_space<vmem>>, %arg3: memref<2x32x128xbf16, #tpu.memory_space<vmem>>, %arg4: memref<2x1x128xf32, #tpu.memory_space<vmem>>, %arg5: memref<8x8x32xf32, #tpu.memory_space<vmem>>, %arg6: memref<8x8x128xf32, #tpu.memory_space<vmem>>, %arg7: memref<8x8x32xf32, #tpu.memory_space<vmem>>, %arg8: memref<8x32xf32, #tpu.memory_space<vmem>>, %arg9: memref<8x32xf32, #tpu.memory_space<vmem>>) attributes {dimension_semantics = [#tpu.dimension_semantics<parallel>], iteration_bounds = array<i64: 2>, scalar_prefetch = 0 : i64, scratch_operands = 4 : i64, tpu.core_type = #tpu.core_type<tc>, window_params = [{transform_indices = @transform_0, window_bounds = array<i64: 8, 8, 32>}, {pipeline_mode = #tpu.pipeline_mode<synchronous>, transform_indices = @transform_1, window_bounds = array<i64: 2, 32, 128>}, {pipeline_mode = #tpu.pipeline_mode<synchronous>, transform_indices = @transform_2, window_bounds = array<i64: 2, 32, 128>}, {pipeline_mode = #tpu.pipeline_mode<synchronous>, transform_indices = @transform_3, window_bounds = array<i64: 2, 1, 128>}, {transform_indices = @transform_4, window_bounds = array<i64: 8, 8, 32>}]} {
    %c0 = arith.constant 0 : index
    %c0_0 = arith.constant 0 : index
    %c0_1 = arith.constant 0 : index
    %0 = vector.load %arg1[%c0, %c0_0, %c0_1] : memref<8x8x32xf32, #tpu.memory_space<vmem>>, vector<8x8x32xf32>
    %1 = vector.shape_cast %0 : vector<8x8x32xf32> to vector<64x32xf32>
    %2 = arith.truncf %1 : vector<64x32xf32> to vector<64x32xbf16>
    %c0_2 = arith.constant 0 : index
    %c0_3 = arith.constant 0 : index
    %c0_4 = arith.constant 0 : index
    %3 = vector.load %arg2[%c0_2, %c0_3, %c0_4] : memref<2x32x128xbf16, #tpu.memory_space<vmem>>, vector<1x32x128xbf16>
    %4 = vector.shape_cast %3 : vector<1x32x128xbf16> to vector<32x128xbf16>
    %cst = arith.constant dense<0.000000e+00> : vector<64x128xf32>
    %5 = tpu.matmul %2, %4, %cst {dimension_numbers = #tpu.dot_dimension_numbers<[1], [0], [0], [1], [0, 0, 1, 1], [], []>} : vector<64x32xbf16>, vector<32x128xbf16>, vector<64x128xf32> -> vector<64x128xf32>
    %c0_5 = arith.constant 0 : index
    %c0_6 = arith.constant 0 : index
    %c0_7 = arith.constant 0 : index
    %6 = vector.load %arg4[%c0_5, %c0_6, %c0_7] : memref<2x1x128xf32, #tpu.memory_space<vmem>>, vector<1x1x128xf32>
    %7 = vector.shape_cast %6 : vector<1x1x128xf32> to vector<1x128xf32>
    %8 = vector.broadcast %7 : vector<1x128xf32> to vector<64x128xf32>
    %9 = arith.addf %5, %8 : vector<64x128xf32>
    %10 = vector.shape_cast %9 : vector<64x128xf32> to vector<8x8x128xf32>
    %c0_8 = arith.constant 0 : index
    %c0_9 = arith.constant 0 : index
    %c0_10 = arith.constant 0 : index
    %11 = vector.load %arg6[%c0_8, %c0_9, %c0_10] : memref<8x8x128xf32, #tpu.memory_space<vmem>>, vector<8x8x128xf32>
    tpu.vector_store %arg6[%c0_8, %c0_9, %c0_10], %10 {strides = array<i32>} : memref<8x8x128xf32, #tpu.memory_space<vmem>>, vector<8x8x128xf32>,
    %c0_11 = arith.constant 0 : index
    %c0_12 = arith.constant 0 : index
    %c0_13 = arith.constant 0 : index
    %12 = vector.load %arg3[%c0_11, %c0_12, %c0_13] : memref<2x32x128xbf16, #tpu.memory_space<vmem>>, vector<1x32x128xbf16>
    %13 = vector.shape_cast %12 : vector<1x32x128xbf16> to vector<32x128xbf16>
    %cst_14 = arith.constant 0.000000e+00 : f32
    %14 = vector.broadcast %cst_14 : f32 to vector<8x32xf32>
    %c0_15 = arith.constant 0 : index
    %c0_16 = arith.constant 0 : index
    %15 = vector.load %arg8[%c0_15, %c0_16] : memref<8x32xf32, #tpu.memory_space<vmem>>, vector<8x32xf32>
    tpu.vector_store %arg8[%c0_15, %c0_16], %14 {strides = array<i32>} : memref<8x32xf32, #tpu.memory_space<vmem>>, vector<8x32xf32>,
    %cst_17 = arith.constant 0.000000e+00 : f32
    %16 = vector.broadcast %cst_17 : f32 to vector<8x32xf32>
    %c0_18 = arith.constant 0 : index
    %c0_19 = arith.constant 0 : index
    %17 = vector.load %arg9[%c0_18, %c0_19] : memref<8x32xf32, #tpu.memory_space<vmem>>, vector<8x32xf32>
    tpu.vector_store %arg9[%c0_18, %c0_19], %16 {strides = array<i32>} : memref<8x32xf32, #tpu.memory_space<vmem>>, vector<8x32xf32>,
    %c0_i32 = arith.constant 0 : i32
    %18 = arith.index_cast %c0_i32 : i32 to index
    %c0_20 = arith.constant 0 : index
    %c0_21 = arith.constant 0 : index
    %19 = vector.load %arg6[%18, %c0_20, %c0_21] : memref<8x8x128xf32, #tpu.memory_space<vmem>>, vector<1x8x128xf32>
    %20 = vector.shape_cast %19 : vector<1x8x128xf32> to vector<8x128xf32>
    %c0_22 = arith.constant 0 : index
    %c0_23 = arith.constant 0 : index
    %21 = vector.load %arg8[%c0_22, %c0_23] : memref<8x32xf32, #tpu.memory_space<vmem>>, vector<8x32xf32>
    %22 = arith.truncf %21 : vector<8x32xf32> to vector<8x32xbf16>
    %cst_24 = arith.constant dense<0.000000e+00> : vector<8x128xf32>
    %23 = tpu.matmul %22, %13, %cst_24 {dimension_numbers = #tpu.dot_dimension_numbers<[1], [0], [0], [1], [0, 0, 1, 1], [], []>} : vector<8x32xbf16>, vector<32x128xbf16>, vector<8x128xf32> -> vector<8x128xf32>
    %24 = arith.addf %20, %23 : vector<8x128xf32>
    %25 = vector.extract_strided_slice %24 {offsets = [0, 0], sizes = [8, 32], strides = [1, 1]} : vector<8x128xf32> to vector<8x32xf32>
    %26 = arith.negf %25 : vector<8x32xf32>
    %27 = math.exp %26 : vector<8x32xf32>
    %cst_25 = arith.constant 1.000000e+00 : f32
    %28 = vector.broadcast %cst_25 : f32 to vector<8x32xf32>
    %29 = arith.addf %28, %27 : vector<8x32xf32>
    %30 = arith.divf %28, %29 : vector<8x32xf32>
    %31 = vector.extract_strided_slice %24 {offsets = [0, 32], sizes = [8, 32], strides = [1, 1]} : vector<8x128xf32> to vector<8x32xf32>
    %32 = arith.negf %31 : vector<8x32xf32>
    %33 = math.exp %32 : vector<8x32xf32>
    %cst_26 = arith.constant 1.000000e+00 : f32
    %34 = vector.broadcast %cst_26 : f32 to vector<8x32xf32>
    %35 = arith.addf %34, %33 : vector<8x32xf32>
    %36 = arith.divf %34, %35 : vector<8x32xf32>
    %37 = vector.extract_strided_slice %24 {offsets = [0, 64], sizes = [8, 32], strides = [1, 1]} : vector<8x128xf32> to vector<8x32xf32>
    %38 = math.tanh %37 : vector<8x32xf32>
    %39 = vector.extract_strided_slice %24 {offsets = [0, 96], sizes = [8, 32], strides = [1, 1]} : vector<8x128xf32> to vector<8x32xf32>
    %40 = arith.negf %39 : vector<8x32xf32>
    %41 = math.exp %40 : vector<8x32xf32>
    %cst_27 = arith.constant 1.000000e+00 : f32
    %42 = vector.broadcast %cst_27 : f32 to vector<8x32xf32>
    %43 = arith.addf %42, %41 : vector<8x32xf32>
    %44 = arith.divf %42, %43 : vector<8x32xf32>
    %c0_28 = arith.constant 0 : index
    %c0_29 = arith.constant 0 : index
    %45 = vector.load %arg9[%c0_28, %c0_29] : memref<8x32xf32, #tpu.memory_space<vmem>>, vector<8x32xf32>
    %46 = arith.mulf %36, %45 : vector<8x32xf32>
    %47 = arith.mulf %30, %38 : vector<8x32xf32>
    %48 = arith.addf %46, %47 : vector<8x32xf32>
    %49 = math.tanh %48 : vector<8x32xf32>
    %50 = arith.mulf %44, %49 : vector<8x32xf32>
    %c0_30 = arith.constant 0 : index
    %c0_31 = arith.constant 0 : index
    %51 = vector.load %arg9[%c0_30, %c0_31] : memref<8x32xf32, #tpu.memory_space<vmem>>, vector<8x32xf32>
    tpu.vector_store %arg9[%c0_30, %c0_31], %48 {strides = array<i32>} : memref<8x32xf32, #tpu.memory_space<vmem>>, vector<8x32xf32>,
    %c0_32 = arith.constant 0 : index
    %c0_33 = arith.constant 0 : index
    %52 = vector.load %arg8[%c0_32, %c0_33] : memref<8x32xf32, #tpu.memory_space<vmem>>, vector<8x32xf32>
    tpu.vector_store %arg8[%c0_32, %c0_33], %50 {strides = array<i32>} : memref<8x32xf32, #tpu.memory_space<vmem>>, vector<8x32xf32>,
    %53 = arith.index_cast %c0_i32 : i32 to index
    %c0_34 = arith.constant 0 : index
    %c0_35 = arith.constant 0 : index
    %54 = vector.load %arg7[%53, %c0_34, %c0_35] : memref<8x8x32xf32, #tpu.memory_space<vmem>>, vector<1x8x32xf32>
    %55 = vector.shape_cast %54 : vector<1x8x32xf32> to vector<8x32xf32>
    %56 = vector.shape_cast %50 : vector<8x32xf32> to vector<1x8x32xf32>
    tpu.vector_store %arg7[%53, %c0_34, %c0_35], %56 {strides = array<i32>} : memref<8x8x32xf32, #tpu.memory_space<vmem>>, vector<1x8x32xf32>,
    %c1_i32 = arith.constant 1 : i32
    %57 = arith.index_cast %c1_i32 : i32 to index
    %c0_36 = arith.constant 0 : index
    %c0_37 = arith.constant 0 : index
    %58 = vector.load %arg6[%57, %c0_36, %c0_37] : memref<8x8x128xf32, #tpu.memory_space<vmem>>, vector<1x8x128xf32>
    %59 = vector.shape_cast %58 : vector<1x8x128xf32> to vector<8x128xf32>
    %c0_38 = arith.constant 0 : index
    %c0_39 = arith.constant 0 : index
    %60 = vector.load %arg8[%c0_38, %c0_39] : memref<8x32xf32, #tpu.memory_space<vmem>>, vector<8x32xf32>
    %61 = arith.truncf %60 : vector<8x32xf32> to vector<8x32xbf16>
    %cst_40 = arith.constant dense<0.000000e+00> : vector<8x128xf32>
    %62 = tpu.matmul %61, %13, %cst_40 {dimension_numbers = #tpu.dot_dimension_numbers<[1], [0], [0], [1], [0, 0, 1, 1], [], []>} : vector<8x32xbf16>, vector<32x128xbf16>, vector<8x128xf32> -> vector<8x128xf32>
    %63 = arith.addf %59, %62 : vector<8x128xf32>
    %64 = vector.extract_strided_slice %63 {offsets = [0, 0], sizes = [8, 32], strides = [1, 1]} : vector<8x128xf32> to vector<8x32xf32>
    %65 = arith.negf %64 : vector<8x32xf32>
    %66 = math.exp %65 : vector<8x32xf32>
    %cst_41 = arith.constant 1.000000e+00 : f32
    %67 = vector.broadcast %cst_41 : f32 to vector<8x32xf32>
    %68 = arith.addf %67, %66 : vector<8x32xf32>
    %69 = arith.divf %67, %68 : vector<8x32xf32>
    %70 = vector.extract_strided_slice %63 {offsets = [0, 32], sizes = [8, 32], strides = [1, 1]} : vector<8x128xf32> to vector<8x32xf32>
    %71 = arith.negf %70 : vector<8x32xf32>
    %72 = math.exp %71 : vector<8x32xf32>
    %cst_42 = arith.constant 1.000000e+00 : f32
    %73 = vector.broadcast %cst_42 : f32 to vector<8x32xf32>
    %74 = arith.addf %73, %72 : vector<8x32xf32>
    %75 = arith.divf %73, %74 : vector<8x32xf32>
    %76 = vector.extract_strided_slice %63 {offsets = [0, 64], sizes = [8, 32], strides = [1, 1]} : vector<8x128xf32> to vector<8x32xf32>
    %77 = math.tanh %76 : vector<8x32xf32>
    %78 = vector.extract_strided_slice %63 {offsets = [0, 96], sizes = [8, 32], strides = [1, 1]} : vector<8x128xf32> to vector<8x32xf32>
    %79 = arith.negf %78 : vector<8x32xf32>
    %80 = math.exp %79 : vector<8x32xf32>
    %cst_43 = arith.constant 1.000000e+00 : f32
    %81 = vector.broadcast %cst_43 : f32 to vector<8x32xf32>
    %82 = arith.addf %81, %80 : vector<8x32xf32>
    %83 = arith.divf %81, %82 : vector<8x32xf32>
    %c0_44 = arith.constant 0 : index
    %c0_45 = arith.constant 0 : index
    %84 = vector.load %arg9[%c0_44, %c0_45] : memref<8x32xf32, #tpu.memory_space<vmem>>, vector<8x32xf32>
    %85 = arith.mulf %75, %84 : vector<8x32xf32>
    %86 = arith.mulf %69, %77 : vector<8x32xf32>
    %87 = arith.addf %85, %86 : vector<8x32xf32>
    %88 = math.tanh %87 : vector<8x32xf32>
    %89 = arith.mulf %83, %88 : vector<8x32xf32>
    %c0_46 = arith.constant 0 : index
    %c0_47 = arith.constant 0 : index
    %90 = vector.load %arg9[%c0_46, %c0_47] : memref<8x32xf32, #tpu.memory_space<vmem>>, vector<8x32xf32>
    tpu.vector_store %arg9[%c0_46, %c0_47], %87 {strides = array<i32>} : memref<8x32xf32, #tpu.memory_space<vmem>>, vector<8x32xf32>,
    %c0_48 = arith.constant 0 : index
    %c0_49 = arith.constant 0 : index
    %91 = vector.load %arg8[%c0_48, %c0_49] : memref<8x32xf32, #tpu.memory_space<vmem>>, vector<8x32xf32>
    tpu.vector_store %arg8[%c0_48, %c0_49], %89 {strides = array<i32>} : memref<8x32xf32, #tpu.memory_space<vmem>>, vector<8x32xf32>,
    %92 = arith.index_cast %c1_i32 : i32 to index
    %c0_50 = arith.constant 0 : index
    %c0_51 = arith.constant 0 : index
    %93 = vector.load %arg7[%92, %c0_50, %c0_51] : memref<8x8x32xf32, #tpu.memory_space<vmem>>, vector<1x8x32xf32>
    %94 = vector.shape_cast %93 : vector<1x8x32xf32> to vector<8x32xf32>
    %95 = vector.shape_cast %89 : vector<8x32xf32> to vector<1x8x32xf32>
    tpu.vector_store %arg7[%92, %c0_50, %c0_51], %95 {strides = array<i32>} : memref<8x8x32xf32, #tpu.memory_space<vmem>>, vector<1x8x32xf32>,
    %c2_i32 = arith.constant 2 : i32
    %96 = arith.index_cast %c2_i32 : i32 to index
    %c0_52 = arith.constant 0 : index
    %c0_53 = arith.constant 0 : index
    %97 = vector.load %arg6[%96, %c0_52, %c0_53] : memref<8x8x128xf32, #tpu.memory_space<vmem>>, vector<1x8x128xf32>
    %98 = vector.shape_cast %97 : vector<1x8x128xf32> to vector<8x128xf32>
    %c0_54 = arith.constant 0 : index
    %c0_55 = arith.constant 0 : index
    %99 = vector.load %arg8[%c0_54, %c0_55] : memref<8x32xf32, #tpu.memory_space<vmem>>, vector<8x32xf32>
    %100 = arith.truncf %99 : vector<8x32xf32> to vector<8x32xbf16>
    %cst_56 = arith.constant dense<0.000000e+00> : vector<8x128xf32>
    %101 = tpu.matmul %100, %13, %cst_56 {dimension_numbers = #tpu.dot_dimension_numbers<[1], [0], [0], [1], [0, 0, 1, 1], [], []>} : vector<8x32xbf16>, vector<32x128xbf16>, vector<8x128xf32> -> vector<8x128xf32>
    %102 = arith.addf %98, %101 : vector<8x128xf32>
    %103 = vector.extract_strided_slice %102 {offsets = [0, 0], sizes = [8, 32], strides = [1, 1]} : vector<8x128xf32> to vector<8x32xf32>
    %104 = arith.negf %103 : vector<8x32xf32>
    %105 = math.exp %104 : vector<8x32xf32>
    %cst_57 = arith.constant 1.000000e+00 : f32
    %106 = vector.broadcast %cst_57 : f32 to vector<8x32xf32>
    %107 = arith.addf %106, %105 : vector<8x32xf32>
    %108 = arith.divf %106, %107 : vector<8x32xf32>
    %109 = vector.extract_strided_slice %102 {offsets = [0, 32], sizes = [8, 32], strides = [1, 1]} : vector<8x128xf32> to vector<8x32xf32>
    %110 = arith.negf %109 : vector<8x32xf32>
    %111 = math.exp %110 : vector<8x32xf32>
    %cst_58 = arith.constant 1.000000e+00 : f32
    %112 = vector.broadcast %cst_58 : f32 to vector<8x32xf32>
    %113 = arith.addf %112, %111 : vector<8x32xf32>
    %114 = arith.divf %112, %113 : vector<8x32xf32>
    %115 = vector.extract_strided_slice %102 {offsets = [0, 64], sizes = [8, 32], strides = [1, 1]} : vector<8x128xf32> to vector<8x32xf32>
    %116 = math.tanh %115 : vector<8x32xf32>
    %117 = vector.extract_strided_slice %102 {offsets = [0, 96], sizes = [8, 32], strides = [1, 1]} : vector<8x128xf32> to vector<8x32xf32>
    %118 = arith.negf %117 : vector<8x32xf32>
    %119 = math.exp %118 : vector<8x32xf32>
    %cst_59 = arith.constant 1.000000e+00 : f32
    %120 = vector.broadcast %cst_59 : f32 to vector<8x32xf32>
    %121 = arith.addf %120, %119 : vector<8x32xf32>
    %122 = arith.divf %120, %121 : vector<8x32xf32>
    %c0_60 = arith.constant 0 : index
    %c0_61 = arith.constant 0 : index
    %123 = vector.load %arg9[%c0_60, %c0_61] : memref<8x32xf32, #tpu.memory_space<vmem>>, vector<8x32xf32>
    %124 = arith.mulf %114, %123 : vector<8x32xf32>
    %125 = arith.mulf %108, %116 : vector<8x32xf32>
    %126 = arith.addf %124, %125 : vector<8x32xf32>
    %127 = math.tanh %126 : vector<8x32xf32>
    %128 = arith.mulf %122, %127 : vector<8x32xf32>
    %c0_62 = arith.constant 0 : index
    %c0_63 = arith.constant 0 : index
    %129 = vector.load %arg9[%c0_62, %c0_63] : memref<8x32xf32, #tpu.memory_space<vmem>>, vector<8x32xf32>
    tpu.vector_store %arg9[%c0_62, %c0_63], %126 {strides = array<i32>} : memref<8x32xf32, #tpu.memory_space<vmem>>, vector<8x32xf32>,
    %c0_64 = arith.constant 0 : index
    %c0_65 = arith.constant 0 : index
    %130 = vector.load %arg8[%c0_64, %c0_65] : memref<8x32xf32, #tpu.memory_space<vmem>>, vector<8x32xf32>
    tpu.vector_store %arg8[%c0_64, %c0_65], %128 {strides = array<i32>} : memref<8x32xf32, #tpu.memory_space<vmem>>, vector<8x32xf32>,
    %131 = arith.index_cast %c2_i32 : i32 to index
    %c0_66 = arith.constant 0 : index
    %c0_67 = arith.constant 0 : index
    %132 = vector.load %arg7[%131, %c0_66, %c0_67] : memref<8x8x32xf32, #tpu.memory_space<vmem>>, vector<1x8x32xf32>
    %133 = vector.shape_cast %132 : vector<1x8x32xf32> to vector<8x32xf32>
    %134 = vector.shape_cast %128 : vector<8x32xf32> to vector<1x8x32xf32>
    tpu.vector_store %arg7[%131, %c0_66, %c0_67], %134 {strides = array<i32>} : memref<8x8x32xf32, #tpu.memory_space<vmem>>, vector<1x8x32xf32>,
    %c3_i32 = arith.constant 3 : i32
    %135 = arith.index_cast %c3_i32 : i32 to index
    %c0_68 = arith.constant 0 : index
    %c0_69 = arith.constant 0 : index
    %136 = vector.load %arg6[%135, %c0_68, %c0_69] : memref<8x8x128xf32, #tpu.memory_space<vmem>>, vector<1x8x128xf32>
    %137 = vector.shape_cast %136 : vector<1x8x128xf32> to vector<8x128xf32>
    %c0_70 = arith.constant 0 : index
    %c0_71 = arith.constant 0 : index
    %138 = vector.load %arg8[%c0_70, %c0_71] : memref<8x32xf32, #tpu.memory_space<vmem>>, vector<8x32xf32>
    %139 = arith.truncf %138 : vector<8x32xf32> to vector<8x32xbf16>
    %cst_72 = arith.constant dense<0.000000e+00> : vector<8x128xf32>
    %140 = tpu.matmul %139, %13, %cst_72 {dimension_numbers = #tpu.dot_dimension_numbers<[1], [0], [0], [1], [0, 0, 1, 1], [], []>} : vector<8x32xbf16>, vector<32x128xbf16>, vector<8x128xf32> -> vector<8x128xf32>
    %141 = arith.addf %137, %140 : vector<8x128xf32>
    %142 = vector.extract_strided_slice %141 {offsets = [0, 0], sizes = [8, 32], strides = [1, 1]} : vector<8x128xf32> to vector<8x32xf32>
    %143 = arith.negf %142 : vector<8x32xf32>
    %144 = math.exp %143 : vector<8x32xf32>
    %cst_73 = arith.constant 1.000000e+00 : f32
    %145 = vector.broadcast %cst_73 : f32 to vector<8x32xf32>
    %146 = arith.addf %145, %144 : vector<8x32xf32>
    %147 = arith.divf %145, %146 : vector<8x32xf32>
    %148 = vector.extract_strided_slice %141 {offsets = [0, 32], sizes = [8, 32], strides = [1, 1]} : vector<8x128xf32> to vector<8x32xf32>
    %149 = arith.negf %148 : vector<8x32xf32>
    %150 = math.exp %149 : vector<8x32xf32>
    %cst_74 = arith.constant 1.000000e+00 : f32
    %151 = vector.broadcast %cst_74 : f32 to vector<8x32xf32>
    %152 = arith.addf %151, %150 : vector<8x32xf32>
    %153 = arith.divf %151, %152 : vector<8x32xf32>
    %154 = vector.extract_strided_slice %141 {offsets = [0, 64], sizes = [8, 32], strides = [1, 1]} : vector<8x128xf32> to vector<8x32xf32>
    %155 = math.tanh %154 : vector<8x32xf32>
    %156 = vector.extract_strided_slice %141 {offsets = [0, 96], sizes = [8, 32], strides = [1, 1]} : vector<8x128xf32> to vector<8x32xf32>
    %157 = arith.negf %156 : vector<8x32xf32>
    %158 = math.exp %157 : vector<8x32xf32>
    %cst_75 = arith.constant 1.000000e+00 : f32
    %159 = vector.broadcast %cst_75 : f32 to vector<8x32xf32>
    %160 = arith.addf %159, %158 : vector<8x32xf32>
    %161 = arith.divf %159, %160 : vector<8x32xf32>
    %c0_76 = arith.constant 0 : index
    %c0_77 = arith.constant 0 : index
    %162 = vector.load %arg9[%c0_76, %c0_77] : memref<8x32xf32, #tpu.memory_space<vmem>>, vector<8x32xf32>
    %163 = arith.mulf %153, %162 : vector<8x32xf32>
    %164 = arith.mulf %147, %155 : vector<8x32xf32>
    %165 = arith.addf %163, %164 : vector<8x32xf32>
    %166 = math.tanh %165 : vector<8x32xf32>
    %167 = arith.mulf %161, %166 : vector<8x32xf32>
    %c0_78 = arith.constant 0 : index
    %c0_79 = arith.constant 0 : index
    %168 = vector.load %arg9[%c0_78, %c0_79] : memref<8x32xf32, #tpu.memory_space<vmem>>, vector<8x32xf32>
    tpu.vector_store %arg9[%c0_78, %c0_79], %165 {strides = array<i32>} : memref<8x32xf32, #tpu.memory_space<vmem>>, vector<8x32xf32>,
    %c0_80 = arith.constant 0 : index
    %c0_81 = arith.constant 0 : index
    %169 = vector.load %arg8[%c0_80, %c0_81] : memref<8x32xf32, #tpu.memory_space<vmem>>, vector<8x32xf32>
    tpu.vector_store %arg8[%c0_80, %c0_81], %167 {strides = array<i32>} : memref<8x32xf32, #tpu.memory_space<vmem>>, vector<8x32xf32>,
    %170 = arith.index_cast %c3_i32 : i32 to index
    %c0_82 = arith.constant 0 : index
    %c0_83 = arith.constant 0 : index
    %171 = vector.load %arg7[%170, %c0_82, %c0_83] : memref<8x8x32xf32, #tpu.memory_space<vmem>>, vector<1x8x32xf32>
    %172 = vector.shape_cast %171 : vector<1x8x32xf32> to vector<8x32xf32>
    %173 = vector.shape_cast %167 : vector<8x32xf32> to vector<1x8x32xf32>
    tpu.vector_store %arg7[%170, %c0_82, %c0_83], %173 {strides = array<i32>} : memref<8x8x32xf32, #tpu.memory_space<vmem>>, vector<1x8x32xf32>,
    %c4_i32 = arith.constant 4 : i32
    %174 = arith.index_cast %c4_i32 : i32 to index
    %c0_84 = arith.constant 0 : index
    %c0_85 = arith.constant 0 : index
    %175 = vector.load %arg6[%174, %c0_84, %c0_85] : memref<8x8x128xf32, #tpu.memory_space<vmem>>, vector<1x8x128xf32>
    %176 = vector.shape_cast %175 : vector<1x8x128xf32> to vector<8x128xf32>
    %c0_86 = arith.constant 0 : index
    %c0_87 = arith.constant 0 : index
    %177 = vector.load %arg8[%c0_86, %c0_87] : memref<8x32xf32, #tpu.memory_space<vmem>>, vector<8x32xf32>
    %178 = arith.truncf %177 : vector<8x32xf32> to vector<8x32xbf16>
    %cst_88 = arith.constant dense<0.000000e+00> : vector<8x128xf32>
    %179 = tpu.matmul %178, %13, %cst_88 {dimension_numbers = #tpu.dot_dimension_numbers<[1], [0], [0], [1], [0, 0, 1, 1], [], []>} : vector<8x32xbf16>, vector<32x128xbf16>, vector<8x128xf32> -> vector<8x128xf32>
    %180 = arith.addf %176, %179 : vector<8x128xf32>
    %181 = vector.extract_strided_slice %180 {offsets = [0, 0], sizes = [8, 32], strides = [1, 1]} : vector<8x128xf32> to vector<8x32xf32>
    %182 = arith.negf %181 : vector<8x32xf32>
    %183 = math.exp %182 : vector<8x32xf32>
    %cst_89 = arith.constant 1.000000e+00 : f32
    %184 = vector.broadcast %cst_89 : f32 to vector<8x32xf32>
    %185 = arith.addf %184, %183 : vector<8x32xf32>
    %186 = arith.divf %184, %185 : vector<8x32xf32>
    %187 = vector.extract_strided_slice %180 {offsets = [0, 32], sizes = [8, 32], strides = [1, 1]} : vector<8x128xf32> to vector<8x32xf32>
    %188 = arith.negf %187 : vector<8x32xf32>
    %189 = math.exp %188 : vector<8x32xf32>
    %cst_90 = arith.constant 1.000000e+00 : f32
    %190 = vector.broadcast %cst_90 : f32 to vector<8x32xf32>
    %191 = arith.addf %190, %189 : vector<8x32xf32>
    %192 = arith.divf %190, %191 : vector<8x32xf32>
    %193 = vector.extract_strided_slice %180 {offsets = [0, 64], sizes = [8, 32], strides = [1, 1]} : vector<8x128xf32> to vector<8x32xf32>
    %194 = math.tanh %193 : vector<8x32xf32>
    %195 = vector.extract_strided_slice %180 {offsets = [0, 96], sizes = [8, 32], strides = [1, 1]} : vector<8x128xf32> to vector<8x32xf32>
    %196 = arith.negf %195 : vector<8x32xf32>
    %197 = math.exp %196 : vector<8x32xf32>
    %cst_91 = arith.constant 1.000000e+00 : f32
    %198 = vector.broadcast %cst_91 : f32 to vector<8x32xf32>
    %199 = arith.addf %198, %197 : vector<8x32xf32>
    %200 = arith.divf %198, %199 : vector<8x32xf32>
    %c0_92 = arith.constant 0 : index
    %c0_93 = arith.constant 0 : index
    %201 = vector.load %arg9[%c0_92, %c0_93] : memref<8x32xf32, #tpu.memory_space<vmem>>, vector<8x32xf32>
    %202 = arith.mulf %192, %201 : vector<8x32xf32>
    %203 = arith.mulf %186, %194 : vector<8x32xf32>
    %204 = arith.addf %202, %203 : vector<8x32xf32>
    %205 = math.tanh %204 : vector<8x32xf32>
    %206 = arith.mulf %200, %205 : vector<8x32xf32>
    %c0_94 = arith.constant 0 : index
    %c0_95 = arith.constant 0 : index
    %207 = vector.load %arg9[%c0_94, %c0_95] : memref<8x32xf32, #tpu.memory_space<vmem>>, vector<8x32xf32>
    tpu.vector_store %arg9[%c0_94, %c0_95], %204 {strides = array<i32>} : memref<8x32xf32, #tpu.memory_space<vmem>>, vector<8x32xf32>,
    %c0_96 = arith.constant 0 : index
    %c0_97 = arith.constant 0 : index
    %208 = vector.load %arg8[%c0_96, %c0_97] : memref<8x32xf32, #tpu.memory_space<vmem>>, vector<8x32xf32>
    tpu.vector_store %arg8[%c0_96, %c0_97], %206 {strides = array<i32>} : memref<8x32xf32, #tpu.memory_space<vmem>>, vector<8x32xf32>,
    %209 = arith.index_cast %c4_i32 : i32 to index
    %c0_98 = arith.constant 0 : index
    %c0_99 = arith.constant 0 : index
    %210 = vector.load %arg7[%209, %c0_98, %c0_99] : memref<8x8x32xf32, #tpu.memory_space<vmem>>, vector<1x8x32xf32>
    %211 = vector.shape_cast %210 : vector<1x8x32xf32> to vector<8x32xf32>
    %212 = vector.shape_cast %206 : vector<8x32xf32> to vector<1x8x32xf32>
    tpu.vector_store %arg7[%209, %c0_98, %c0_99], %212 {strides = array<i32>} : memref<8x8x32xf32, #tpu.memory_space<vmem>>, vector<1x8x32xf32>,
    %c5_i32 = arith.constant 5 : i32
    %213 = arith.index_cast %c5_i32 : i32 to index
    %c0_100 = arith.constant 0 : index
    %c0_101 = arith.constant 0 : index
    %214 = vector.load %arg6[%213, %c0_100, %c0_101] : memref<8x8x128xf32, #tpu.memory_space<vmem>>, vector<1x8x128xf32>
    %215 = vector.shape_cast %214 : vector<1x8x128xf32> to vector<8x128xf32>
    %c0_102 = arith.constant 0 : index
    %c0_103 = arith.constant 0 : index
    %216 = vector.load %arg8[%c0_102, %c0_103] : memref<8x32xf32, #tpu.memory_space<vmem>>, vector<8x32xf32>
    %217 = arith.truncf %216 : vector<8x32xf32> to vector<8x32xbf16>
    %cst_104 = arith.constant dense<0.000000e+00> : vector<8x128xf32>
    %218 = tpu.matmul %217, %13, %cst_104 {dimension_numbers = #tpu.dot_dimension_numbers<[1], [0], [0], [1], [0, 0, 1, 1], [], []>} : vector<8x32xbf16>, vector<32x128xbf16>, vector<8x128xf32> -> vector<8x128xf32>
    %219 = arith.addf %215, %218 : vector<8x128xf32>
    %220 = vector.extract_strided_slice %219 {offsets = [0, 0], sizes = [8, 32], strides = [1, 1]} : vector<8x128xf32> to vector<8x32xf32>
    %221 = arith.negf %220 : vector<8x32xf32>
    %222 = math.exp %221 : vector<8x32xf32>
    %cst_105 = arith.constant 1.000000e+00 : f32
    %223 = vector.broadcast %cst_105 : f32 to vector<8x32xf32>
    %224 = arith.addf %223, %222 : vector<8x32xf32>
    %225 = arith.divf %223, %224 : vector<8x32xf32>
    %226 = vector.extract_strided_slice %219 {offsets = [0, 32], sizes = [8, 32], strides = [1, 1]} : vector<8x128xf32> to vector<8x32xf32>
    %227 = arith.negf %226 : vector<8x32xf32>
    %228 = math.exp %227 : vector<8x32xf32>
    %cst_106 = arith.constant 1.000000e+00 : f32
    %229 = vector.broadcast %cst_106 : f32 to vector<8x32xf32>
    %230 = arith.addf %229, %228 : vector<8x32xf32>
    %231 = arith.divf %229, %230 : vector<8x32xf32>
    %232 = vector.extract_strided_slice %219 {offsets = [0, 64], sizes = [8, 32], strides = [1, 1]} : vector<8x128xf32> to vector<8x32xf32>
    %233 = math.tanh %232 : vector<8x32xf32>
    %234 = vector.extract_strided_slice %219 {offsets = [0, 96], sizes = [8, 32], strides = [1, 1]} : vector<8x128xf32> to vector<8x32xf32>
    %235 = arith.negf %234 : vector<8x32xf32>
    %236 = math.exp %235 : vector<8x32xf32>
    %cst_107 = arith.constant 1.000000e+00 : f32
    %237 = vector.broadcast %cst_107 : f32 to vector<8x32xf32>
    %238 = arith.addf %237, %236 : vector<8x32xf32>
    %239 = arith.divf %237, %238 : vector<8x32xf32>
    %c0_108 = arith.constant 0 : index
    %c0_109 = arith.constant 0 : index
    %240 = vector.load %arg9[%c0_108, %c0_109] : memref<8x32xf32, #tpu.memory_space<vmem>>, vector<8x32xf32>
    %241 = arith.mulf %231, %240 : vector<8x32xf32>
    %242 = arith.mulf %225, %233 : vector<8x32xf32>
    %243 = arith.addf %241, %242 : vector<8x32xf32>
    %244 = math.tanh %243 : vector<8x32xf32>
    %245 = arith.mulf %239, %244 : vector<8x32xf32>
    %c0_110 = arith.constant 0 : index
    %c0_111 = arith.constant 0 : index
    %246 = vector.load %arg9[%c0_110, %c0_111] : memref<8x32xf32, #tpu.memory_space<vmem>>, vector<8x32xf32>
    tpu.vector_store %arg9[%c0_110, %c0_111], %243 {strides = array<i32>} : memref<8x32xf32, #tpu.memory_space<vmem>>, vector<8x32xf32>,
    %c0_112 = arith.constant 0 : index
    %c0_113 = arith.constant 0 : index
    %247 = vector.load %arg8[%c0_112, %c0_113] : memref<8x32xf32, #tpu.memory_space<vmem>>, vector<8x32xf32>
    tpu.vector_store %arg8[%c0_112, %c0_113], %245 {strides = array<i32>} : memref<8x32xf32, #tpu.memory_space<vmem>>, vector<8x32xf32>,
    %248 = arith.index_cast %c5_i32 : i32 to index
    %c0_114 = arith.constant 0 : index
    %c0_115 = arith.constant 0 : index
    %249 = vector.load %arg7[%248, %c0_114, %c0_115] : memref<8x8x32xf32, #tpu.memory_space<vmem>>, vector<1x8x32xf32>
    %250 = vector.shape_cast %249 : vector<1x8x32xf32> to vector<8x32xf32>
    %251 = vector.shape_cast %245 : vector<8x32xf32> to vector<1x8x32xf32>
    tpu.vector_store %arg7[%248, %c0_114, %c0_115], %251 {strides = array<i32>} : memref<8x8x32xf32, #tpu.memory_space<vmem>>, vector<1x8x32xf32>,
    %c6_i32 = arith.constant 6 : i32
    %252 = arith.index_cast %c6_i32 : i32 to index
    %c0_116 = arith.constant 0 : index
    %c0_117 = arith.constant 0 : index
    %253 = vector.load %arg6[%252, %c0_116, %c0_117] : memref<8x8x128xf32, #tpu.memory_space<vmem>>, vector<1x8x128xf32>
    %254 = vector.shape_cast %253 : vector<1x8x128xf32> to vector<8x128xf32>
    %c0_118 = arith.constant 0 : index
    %c0_119 = arith.constant 0 : index
    %255 = vector.load %arg8[%c0_118, %c0_119] : memref<8x32xf32, #tpu.memory_space<vmem>>, vector<8x32xf32>
    %256 = arith.truncf %255 : vector<8x32xf32> to vector<8x32xbf16>
    %cst_120 = arith.constant dense<0.000000e+00> : vector<8x128xf32>
    %257 = tpu.matmul %256, %13, %cst_120 {dimension_numbers = #tpu.dot_dimension_numbers<[1], [0], [0], [1], [0, 0, 1, 1], [], []>} : vector<8x32xbf16>, vector<32x128xbf16>, vector<8x128xf32> -> vector<8x128xf32>
    %258 = arith.addf %254, %257 : vector<8x128xf32>
    %259 = vector.extract_strided_slice %258 {offsets = [0, 0], sizes = [8, 32], strides = [1, 1]} : vector<8x128xf32> to vector<8x32xf32>
    %260 = arith.negf %259 : vector<8x32xf32>
    %261 = math.exp %260 : vector<8x32xf32>
    %cst_121 = arith.constant 1.000000e+00 : f32
    %262 = vector.broadcast %cst_121 : f32 to vector<8x32xf32>
    %263 = arith.addf %262, %261 : vector<8x32xf32>
    %264 = arith.divf %262, %263 : vector<8x32xf32>
    %265 = vector.extract_strided_slice %258 {offsets = [0, 32], sizes = [8, 32], strides = [1, 1]} : vector<8x128xf32> to vector<8x32xf32>
    %266 = arith.negf %265 : vector<8x32xf32>
    %267 = math.exp %266 : vector<8x32xf32>
    %cst_122 = arith.constant 1.000000e+00 : f32
    %268 = vector.broadcast %cst_122 : f32 to vector<8x32xf32>
    %269 = arith.addf %268, %267 : vector<8x32xf32>
    %270 = arith.divf %268, %269 : vector<8x32xf32>
    %271 = vector.extract_strided_slice %258 {offsets = [0, 64], sizes = [8, 32], strides = [1, 1]} : vector<8x128xf32> to vector<8x32xf32>
    %272 = math.tanh %271 : vector<8x32xf32>
    %273 = vector.extract_strided_slice %258 {offsets = [0, 96], sizes = [8, 32], strides = [1, 1]} : vector<8x128xf32> to vector<8x32xf32>
    %274 = arith.negf %273 : vector<8x32xf32>
    %275 = math.exp %274 : vector<8x32xf32>
    %cst_123 = arith.constant 1.000000e+00 : f32
    %276 = vector.broadcast %cst_123 : f32 to vector<8x32xf32>
    %277 = arith.addf %276, %275 : vector<8x32xf32>
    %278 = arith.divf %276, %277 : vector<8x32xf32>
    %c0_124 = arith.constant 0 : index
    %c0_125 = arith.constant 0 : index
    %279 = vector.load %arg9[%c0_124, %c0_125] : memref<8x32xf32, #tpu.memory_space<vmem>>, vector<8x32xf32>
    %280 = arith.mulf %270, %279 : vector<8x32xf32>
    %281 = arith.mulf %264, %272 : vector<8x32xf32>
    %282 = arith.addf %280, %281 : vector<8x32xf32>
    %283 = math.tanh %282 : vector<8x32xf32>
    %284 = arith.mulf %278, %283 : vector<8x32xf32>
    %c0_126 = arith.constant 0 : index
    %c0_127 = arith.constant 0 : index
    %285 = vector.load %arg9[%c0_126, %c0_127] : memref<8x32xf32, #tpu.memory_space<vmem>>, vector<8x32xf32>
    tpu.vector_store %arg9[%c0_126, %c0_127], %282 {strides = array<i32>} : memref<8x32xf32, #tpu.memory_space<vmem>>, vector<8x32xf32>,
    %c0_128 = arith.constant 0 : index
    %c0_129 = arith.constant 0 : index
    %286 = vector.load %arg8[%c0_128, %c0_129] : memref<8x32xf32, #tpu.memory_space<vmem>>, vector<8x32xf32>
    tpu.vector_store %arg8[%c0_128, %c0_129], %284 {strides = array<i32>} : memref<8x32xf32, #tpu.memory_space<vmem>>, vector<8x32xf32>,
    %287 = arith.index_cast %c6_i32 : i32 to index
    %c0_130 = arith.constant 0 : index
    %c0_131 = arith.constant 0 : index
    %288 = vector.load %arg7[%287, %c0_130, %c0_131] : memref<8x8x32xf32, #tpu.memory_space<vmem>>, vector<1x8x32xf32>
    %289 = vector.shape_cast %288 : vector<1x8x32xf32> to vector<8x32xf32>
    %290 = vector.shape_cast %284 : vector<8x32xf32> to vector<1x8x32xf32>
    tpu.vector_store %arg7[%287, %c0_130, %c0_131], %290 {strides = array<i32>} : memref<8x8x32xf32, #tpu.memory_space<vmem>>, vector<1x8x32xf32>,
    %c7_i32 = arith.constant 7 : i32
    %291 = arith.index_cast %c7_i32 : i32 to index
    %c0_132 = arith.constant 0 : index
    %c0_133 = arith.constant 0 : index
    %292 = vector.load %arg6[%291, %c0_132, %c0_133] : memref<8x8x128xf32, #tpu.memory_space<vmem>>, vector<1x8x128xf32>
    %293 = vector.shape_cast %292 : vector<1x8x128xf32> to vector<8x128xf32>
    %c0_134 = arith.constant 0 : index
    %c0_135 = arith.constant 0 : index
    %294 = vector.load %arg8[%c0_134, %c0_135] : memref<8x32xf32, #tpu.memory_space<vmem>>, vector<8x32xf32>
    %295 = arith.truncf %294 : vector<8x32xf32> to vector<8x32xbf16>
    %cst_136 = arith.constant dense<0.000000e+00> : vector<8x128xf32>
    %296 = tpu.matmul %295, %13, %cst_136 {dimension_numbers = #tpu.dot_dimension_numbers<[1], [0], [0], [1], [0, 0, 1, 1], [], []>} : vector<8x32xbf16>, vector<32x128xbf16>, vector<8x128xf32> -> vector<8x128xf32>
    %297 = arith.addf %293, %296 : vector<8x128xf32>
    %298 = vector.extract_strided_slice %297 {offsets = [0, 0], sizes = [8, 32], strides = [1, 1]} : vector<8x128xf32> to vector<8x32xf32>
    %299 = arith.negf %298 : vector<8x32xf32>
    %300 = math.exp %299 : vector<8x32xf32>
    %cst_137 = arith.constant 1.000000e+00 : f32
    %301 = vector.broadcast %cst_137 : f32 to vector<8x32xf32>
    %302 = arith.addf %301, %300 : vector<8x32xf32>
    %303 = arith.divf %301, %302 : vector<8x32xf32>
    %304 = vector.extract_strided_slice %297 {offsets = [0, 32], sizes = [8, 32], strides = [1, 1]} : vector<8x128xf32> to vector<8x32xf32>
    %305 = arith.negf %304 : vector<8x32xf32>
    %306 = math.exp %305 : vector<8x32xf32>
    %cst_138 = arith.constant 1.000000e+00 : f32
    %307 = vector.broadcast %cst_138 : f32 to vector<8x32xf32>
    %308 = arith.addf %307, %306 : vector<8x32xf32>
    %309 = arith.divf %307, %308 : vector<8x32xf32>
    %310 = vector.extract_strided_slice %297 {offsets = [0, 64], sizes = [8, 32], strides = [1, 1]} : vector<8x128xf32> to vector<8x32xf32>
    %311 = math.tanh %310 : vector<8x32xf32>
    %312 = vector.extract_strided_slice %297 {offsets = [0, 96], sizes = [8, 32], strides = [1, 1]} : vector<8x128xf32> to vector<8x32xf32>
    %313 = arith.negf %312 : vector<8x32xf32>
    %314 = math.exp %313 : vector<8x32xf32>
    %cst_139 = arith.constant 1.000000e+00 : f32
    %315 = vector.broadcast %cst_139 : f32 to vector<8x32xf32>
    %316 = arith.addf %315, %314 : vector<8x32xf32>
    %317 = arith.divf %315, %316 : vector<8x32xf32>
    %c0_140 = arith.constant 0 : index
    %c0_141 = arith.constant 0 : index
    %318 = vector.load %arg9[%c0_140, %c0_141] : memref<8x32xf32, #tpu.memory_space<vmem>>, vector<8x32xf32>
    %319 = arith.mulf %309, %318 : vector<8x32xf32>
    %320 = arith.mulf %303, %311 : vector<8x32xf32>
    %321 = arith.addf %319, %320 : vector<8x32xf32>
    %322 = math.tanh %321 : vector<8x32xf32>
    %323 = arith.mulf %317, %322 : vector<8x32xf32>
    %c0_142 = arith.constant 0 : index
    %c0_143 = arith.constant 0 : index
    %324 = vector.load %arg9[%c0_142, %c0_143] : memref<8x32xf32, #tpu.memory_space<vmem>>, vector<8x32xf32>
    tpu.vector_store %arg9[%c0_142, %c0_143], %321 {strides = array<i32>} : memref<8x32xf32, #tpu.memory_space<vmem>>, vector<8x32xf32>,
    %c0_144 = arith.constant 0 : index
    %c0_145 = arith.constant 0 : index
    %325 = vector.load %arg8[%c0_144, %c0_145] : memref<8x32xf32, #tpu.memory_space<vmem>>, vector<8x32xf32>
    tpu.vector_store %arg8[%c0_144, %c0_145], %323 {strides = array<i32>} : memref<8x32xf32, #tpu.memory_space<vmem>>, vector<8x32xf32>,
    %326 = arith.index_cast %c7_i32 : i32 to index
    %c0_146 = arith.constant 0 : index
    %c0_147 = arith.constant 0 : index
    %327 = vector.load %arg7[%326, %c0_146, %c0_147] : memref<8x8x32xf32, #tpu.memory_space<vmem>>, vector<1x8x32xf32>
    %328 = vector.shape_cast %327 : vector<1x8x32xf32> to vector<8x32xf32>
    %329 = vector.shape_cast %323 : vector<8x32xf32> to vector<1x8x32xf32>
    tpu.vector_store %arg7[%326, %c0_146, %c0_147], %329 {strides = array<i32>} : memref<8x8x32xf32, #tpu.memory_space<vmem>>, vector<1x8x32xf32>,
    %c8_i32 = arith.constant 8 : i32
    %c0_148 = arith.constant 0 : index
    %c0_149 = arith.constant 0 : index
    %c0_150 = arith.constant 0 : index
    %330 = vector.load %arg7[%c0_148, %c0_149, %c0_150] : memref<8x8x32xf32, #tpu.memory_space<vmem>>, vector<8x8x32xf32>
    %331 = vector.shape_cast %330 : vector<8x8x32xf32> to vector<64x32xf32>
    %332 = arith.truncf %331 : vector<64x32xf32> to vector<64x32xbf16>
    %c1 = arith.constant 1 : index
    %c0_151 = arith.constant 0 : index
    %c0_152 = arith.constant 0 : index
    %333 = vector.load %arg2[%c1, %c0_151, %c0_152] : memref<2x32x128xbf16, #tpu.memory_space<vmem>>, vector<1x32x128xbf16>
    %334 = vector.shape_cast %333 : vector<1x32x128xbf16> to vector<32x128xbf16>
    %cst_153 = arith.constant dense<0.000000e+00> : vector<64x128xf32>
    %335 = tpu.matmul %332, %334, %cst_153 {dimension_numbers = #tpu.dot_dimension_numbers<[1], [0], [0], [1], [0, 0, 1, 1], [], []>} : vector<64x32xbf16>, vector<32x128xbf16>, vector<64x128xf32> -> vector<64x128xf32>
    %c1_154 = arith.constant 1 : index
    %c0_155 = arith.constant 0 : index
    %c0_156 = arith.constant 0 : index
    %336 = vector.load %arg4[%c1_154, %c0_155, %c0_156] : memref<2x1x128xf32, #tpu.memory_space<vmem>>, vector<1x1x128xf32>
    %337 = vector.shape_cast %336 : vector<1x1x128xf32> to vector<1x128xf32>
    %338 = vector.broadcast %337 : vector<1x128xf32> to vector<64x128xf32>
    %339 = arith.addf %335, %338 : vector<64x128xf32>
    %340 = vector.shape_cast %339 : vector<64x128xf32> to vector<8x8x128xf32>
    %c0_157 = arith.constant 0 : index
    %c0_158 = arith.constant 0 : index
    %c0_159 = arith.constant 0 : index
    %341 = vector.load %arg6[%c0_157, %c0_158, %c0_159] : memref<8x8x128xf32, #tpu.memory_space<vmem>>, vector<8x8x128xf32>
    tpu.vector_store %arg6[%c0_157, %c0_158, %c0_159], %340 {strides = array<i32>} : memref<8x8x128xf32, #tpu.memory_space<vmem>>, vector<8x8x128xf32>,
    %c1_160 = arith.constant 1 : index
    %c0_161 = arith.constant 0 : index
    %c0_162 = arith.constant 0 : index
    %342 = vector.load %arg3[%c1_160, %c0_161, %c0_162] : memref<2x32x128xbf16, #tpu.memory_space<vmem>>, vector<1x32x128xbf16>
    %343 = vector.shape_cast %342 : vector<1x32x128xbf16> to vector<32x128xbf16>
    %cst_163 = arith.constant 0.000000e+00 : f32
    %344 = vector.broadcast %cst_163 : f32 to vector<8x32xf32>
    %c0_164 = arith.constant 0 : index
    %c0_165 = arith.constant 0 : index
    %345 = vector.load %arg8[%c0_164, %c0_165] : memref<8x32xf32, #tpu.memory_space<vmem>>, vector<8x32xf32>
    tpu.vector_store %arg8[%c0_164, %c0_165], %344 {strides = array<i32>} : memref<8x32xf32, #tpu.memory_space<vmem>>, vector<8x32xf32>,
    %cst_166 = arith.constant 0.000000e+00 : f32
    %346 = vector.broadcast %cst_166 : f32 to vector<8x32xf32>
    %c0_167 = arith.constant 0 : index
    %c0_168 = arith.constant 0 : index
    %347 = vector.load %arg9[%c0_167, %c0_168] : memref<8x32xf32, #tpu.memory_space<vmem>>, vector<8x32xf32>
    tpu.vector_store %arg9[%c0_167, %c0_168], %346 {strides = array<i32>} : memref<8x32xf32, #tpu.memory_space<vmem>>, vector<8x32xf32>,
    %c0_i32_169 = arith.constant 0 : i32
    %348 = arith.index_cast %c0_i32_169 : i32 to index
    %c0_170 = arith.constant 0 : index
    %c0_171 = arith.constant 0 : index
    %349 = vector.load %arg6[%348, %c0_170, %c0_171] : memref<8x8x128xf32, #tpu.memory_space<vmem>>, vector<1x8x128xf32>
    %350 = vector.shape_cast %349 : vector<1x8x128xf32> to vector<8x128xf32>
    %c0_172 = arith.constant 0 : index
    %c0_173 = arith.constant 0 : index
    %351 = vector.load %arg8[%c0_172, %c0_173] : memref<8x32xf32, #tpu.memory_space<vmem>>, vector<8x32xf32>
    %352 = arith.truncf %351 : vector<8x32xf32> to vector<8x32xbf16>
    %cst_174 = arith.constant dense<0.000000e+00> : vector<8x128xf32>
    %353 = tpu.matmul %352, %343, %cst_174 {dimension_numbers = #tpu.dot_dimension_numbers<[1], [0], [0], [1], [0, 0, 1, 1], [], []>} : vector<8x32xbf16>, vector<32x128xbf16>, vector<8x128xf32> -> vector<8x128xf32>
    %354 = arith.addf %350, %353 : vector<8x128xf32>
    %355 = vector.extract_strided_slice %354 {offsets = [0, 0], sizes = [8, 32], strides = [1, 1]} : vector<8x128xf32> to vector<8x32xf32>
    %356 = arith.negf %355 : vector<8x32xf32>
    %357 = math.exp %356 : vector<8x32xf32>
    %cst_175 = arith.constant 1.000000e+00 : f32
    %358 = vector.broadcast %cst_175 : f32 to vector<8x32xf32>
    %359 = arith.addf %358, %357 : vector<8x32xf32>
    %360 = arith.divf %358, %359 : vector<8x32xf32>
    %361 = vector.extract_strided_slice %354 {offsets = [0, 32], sizes = [8, 32], strides = [1, 1]} : vector<8x128xf32> to vector<8x32xf32>
    %362 = arith.negf %361 : vector<8x32xf32>
    %363 = math.exp %362 : vector<8x32xf32>
    %cst_176 = arith.constant 1.000000e+00 : f32
    %364 = vector.broadcast %cst_176 : f32 to vector<8x32xf32>
    %365 = arith.addf %364, %363 : vector<8x32xf32>
    %366 = arith.divf %364, %365 : vector<8x32xf32>
    %367 = vector.extract_strided_slice %354 {offsets = [0, 64], sizes = [8, 32], strides = [1, 1]} : vector<8x128xf32> to vector<8x32xf32>
    %368 = math.tanh %367 : vector<8x32xf32>
    %369 = vector.extract_strided_slice %354 {offsets = [0, 96], sizes = [8, 32], strides = [1, 1]} : vector<8x128xf32> to vector<8x32xf32>
    %370 = arith.negf %369 : vector<8x32xf32>
    %371 = math.exp %370 : vector<8x32xf32>
    %cst_177 = arith.constant 1.000000e+00 : f32
    %372 = vector.broadcast %cst_177 : f32 to vector<8x32xf32>
    %373 = arith.addf %372, %371 : vector<8x32xf32>
    %374 = arith.divf %372, %373 : vector<8x32xf32>
    %c0_178 = arith.constant 0 : index
    %c0_179 = arith.constant 0 : index
    %375 = vector.load %arg9[%c0_178, %c0_179] : memref<8x32xf32, #tpu.memory_space<vmem>>, vector<8x32xf32>
    %376 = arith.mulf %366, %375 : vector<8x32xf32>
    %377 = arith.mulf %360, %368 : vector<8x32xf32>
    %378 = arith.addf %376, %377 : vector<8x32xf32>
    %379 = math.tanh %378 : vector<8x32xf32>
    %380 = arith.mulf %374, %379 : vector<8x32xf32>
    %c0_180 = arith.constant 0 : index
    %c0_181 = arith.constant 0 : index
    %381 = vector.load %arg9[%c0_180, %c0_181] : memref<8x32xf32, #tpu.memory_space<vmem>>, vector<8x32xf32>
    tpu.vector_store %arg9[%c0_180, %c0_181], %378 {strides = array<i32>} : memref<8x32xf32, #tpu.memory_space<vmem>>, vector<8x32xf32>,
    %c0_182 = arith.constant 0 : index
    %c0_183 = arith.constant 0 : index
    %382 = vector.load %arg8[%c0_182, %c0_183] : memref<8x32xf32, #tpu.memory_space<vmem>>, vector<8x32xf32>
    tpu.vector_store %arg8[%c0_182, %c0_183], %380 {strides = array<i32>} : memref<8x32xf32, #tpu.memory_space<vmem>>, vector<8x32xf32>,
    %383 = arith.index_cast %c0_i32_169 : i32 to index
    %c0_184 = arith.constant 0 : index
    %c0_185 = arith.constant 0 : index
    %384 = vector.load %arg5[%383, %c0_184, %c0_185] : memref<8x8x32xf32, #tpu.memory_space<vmem>>, vector<1x8x32xf32>
    %385 = vector.shape_cast %384 : vector<1x8x32xf32> to vector<8x32xf32>
    %386 = vector.shape_cast %380 : vector<8x32xf32> to vector<1x8x32xf32>
    tpu.vector_store %arg5[%383, %c0_184, %c0_185], %386 {strides = array<i32>} : memref<8x8x32xf32, #tpu.memory_space<vmem>>, vector<1x8x32xf32>,
    %c1_i32_186 = arith.constant 1 : i32
    %387 = arith.index_cast %c1_i32_186 : i32 to index
    %c0_187 = arith.constant 0 : index
    %c0_188 = arith.constant 0 : index
    %388 = vector.load %arg6[%387, %c0_187, %c0_188] : memref<8x8x128xf32, #tpu.memory_space<vmem>>, vector<1x8x128xf32>
    %389 = vector.shape_cast %388 : vector<1x8x128xf32> to vector<8x128xf32>
    %c0_189 = arith.constant 0 : index
    %c0_190 = arith.constant 0 : index
    %390 = vector.load %arg8[%c0_189, %c0_190] : memref<8x32xf32, #tpu.memory_space<vmem>>, vector<8x32xf32>
    %391 = arith.truncf %390 : vector<8x32xf32> to vector<8x32xbf16>
    %cst_191 = arith.constant dense<0.000000e+00> : vector<8x128xf32>
    %392 = tpu.matmul %391, %343, %cst_191 {dimension_numbers = #tpu.dot_dimension_numbers<[1], [0], [0], [1], [0, 0, 1, 1], [], []>} : vector<8x32xbf16>, vector<32x128xbf16>, vector<8x128xf32> -> vector<8x128xf32>
    %393 = arith.addf %389, %392 : vector<8x128xf32>
    %394 = vector.extract_strided_slice %393 {offsets = [0, 0], sizes = [8, 32], strides = [1, 1]} : vector<8x128xf32> to vector<8x32xf32>
    %395 = arith.negf %394 : vector<8x32xf32>
    %396 = math.exp %395 : vector<8x32xf32>
    %cst_192 = arith.constant 1.000000e+00 : f32
    %397 = vector.broadcast %cst_192 : f32 to vector<8x32xf32>
    %398 = arith.addf %397, %396 : vector<8x32xf32>
    %399 = arith.divf %397, %398 : vector<8x32xf32>
    %400 = vector.extract_strided_slice %393 {offsets = [0, 32], sizes = [8, 32], strides = [1, 1]} : vector<8x128xf32> to vector<8x32xf32>
    %401 = arith.negf %400 : vector<8x32xf32>
    %402 = math.exp %401 : vector<8x32xf32>
    %cst_193 = arith.constant 1.000000e+00 : f32
    %403 = vector.broadcast %cst_193 : f32 to vector<8x32xf32>
    %404 = arith.addf %403, %402 : vector<8x32xf32>
    %405 = arith.divf %403, %404 : vector<8x32xf32>
    %406 = vector.extract_strided_slice %393 {offsets = [0, 64], sizes = [8, 32], strides = [1, 1]} : vector<8x128xf32> to vector<8x32xf32>
    %407 = math.tanh %406 : vector<8x32xf32>
    %408 = vector.extract_strided_slice %393 {offsets = [0, 96], sizes = [8, 32], strides = [1, 1]} : vector<8x128xf32> to vector<8x32xf32>
    %409 = arith.negf %408 : vector<8x32xf32>
    %410 = math.exp %409 : vector<8x32xf32>
    %cst_194 = arith.constant 1.000000e+00 : f32
    %411 = vector.broadcast %cst_194 : f32 to vector<8x32xf32>
    %412 = arith.addf %411, %410 : vector<8x32xf32>
    %413 = arith.divf %411, %412 : vector<8x32xf32>
    %c0_195 = arith.constant 0 : index
    %c0_196 = arith.constant 0 : index
    %414 = vector.load %arg9[%c0_195, %c0_196] : memref<8x32xf32, #tpu.memory_space<vmem>>, vector<8x32xf32>
    %415 = arith.mulf %405, %414 : vector<8x32xf32>
    %416 = arith.mulf %399, %407 : vector<8x32xf32>
    %417 = arith.addf %415, %416 : vector<8x32xf32>
    %418 = math.tanh %417 : vector<8x32xf32>
    %419 = arith.mulf %413, %418 : vector<8x32xf32>
    %c0_197 = arith.constant 0 : index
    %c0_198 = arith.constant 0 : index
    %420 = vector.load %arg9[%c0_197, %c0_198] : memref<8x32xf32, #tpu.memory_space<vmem>>, vector<8x32xf32>
    tpu.vector_store %arg9[%c0_197, %c0_198], %417 {strides = array<i32>} : memref<8x32xf32, #tpu.memory_space<vmem>>, vector<8x32xf32>,
    %c0_199 = arith.constant 0 : index
    %c0_200 = arith.constant 0 : index
    %421 = vector.load %arg8[%c0_199, %c0_200] : memref<8x32xf32, #tpu.memory_space<vmem>>, vector<8x32xf32>
    tpu.vector_store %arg8[%c0_199, %c0_200], %419 {strides = array<i32>} : memref<8x32xf32, #tpu.memory_space<vmem>>, vector<8x32xf32>,
    %422 = arith.index_cast %c1_i32_186 : i32 to index
    %c0_201 = arith.constant 0 : index
    %c0_202 = arith.constant 0 : index
    %423 = vector.load %arg5[%422, %c0_201, %c0_202] : memref<8x8x32xf32, #tpu.memory_space<vmem>>, vector<1x8x32xf32>
    %424 = vector.shape_cast %423 : vector<1x8x32xf32> to vector<8x32xf32>
    %425 = vector.shape_cast %419 : vector<8x32xf32> to vector<1x8x32xf32>
    tpu.vector_store %arg5[%422, %c0_201, %c0_202], %425 {strides = array<i32>} : memref<8x8x32xf32, #tpu.memory_space<vmem>>, vector<1x8x32xf32>,
    %c2_i32_203 = arith.constant 2 : i32
    %426 = arith.index_cast %c2_i32_203 : i32 to index
    %c0_204 = arith.constant 0 : index
    %c0_205 = arith.constant 0 : index
    %427 = vector.load %arg6[%426, %c0_204, %c0_205] : memref<8x8x128xf32, #tpu.memory_space<vmem>>, vector<1x8x128xf32>
    %428 = vector.shape_cast %427 : vector<1x8x128xf32> to vector<8x128xf32>
    %c0_206 = arith.constant 0 : index
    %c0_207 = arith.constant 0 : index
    %429 = vector.load %arg8[%c0_206, %c0_207] : memref<8x32xf32, #tpu.memory_space<vmem>>, vector<8x32xf32>
    %430 = arith.truncf %429 : vector<8x32xf32> to vector<8x32xbf16>
    %cst_208 = arith.constant dense<0.000000e+00> : vector<8x128xf32>
    %431 = tpu.matmul %430, %343, %cst_208 {dimension_numbers = #tpu.dot_dimension_numbers<[1], [0], [0], [1], [0, 0, 1, 1], [], []>} : vector<8x32xbf16>, vector<32x128xbf16>, vector<8x128xf32> -> vector<8x128xf32>
    %432 = arith.addf %428, %431 : vector<8x128xf32>
    %433 = vector.extract_strided_slice %432 {offsets = [0, 0], sizes = [8, 32], strides = [1, 1]} : vector<8x128xf32> to vector<8x32xf32>
    %434 = arith.negf %433 : vector<8x32xf32>
    %435 = math.exp %434 : vector<8x32xf32>
    %cst_209 = arith.constant 1.000000e+00 : f32
    %436 = vector.broadcast %cst_209 : f32 to vector<8x32xf32>
    %437 = arith.addf %436, %435 : vector<8x32xf32>
    %438 = arith.divf %436, %437 : vector<8x32xf32>
    %439 = vector.extract_strided_slice %432 {offsets = [0, 32], sizes = [8, 32], strides = [1, 1]} : vector<8x128xf32> to vector<8x32xf32>
    %440 = arith.negf %439 : vector<8x32xf32>
    %441 = math.exp %440 : vector<8x32xf32>
    %cst_210 = arith.constant 1.000000e+00 : f32
    %442 = vector.broadcast %cst_210 : f32 to vector<8x32xf32>
    %443 = arith.addf %442, %441 : vector<8x32xf32>
    %444 = arith.divf %442, %443 : vector<8x32xf32>
    %445 = vector.extract_strided_slice %432 {offsets = [0, 64], sizes = [8, 32], strides = [1, 1]} : vector<8x128xf32> to vector<8x32xf32>
    %446 = math.tanh %445 : vector<8x32xf32>
    %447 = vector.extract_strided_slice %432 {offsets = [0, 96], sizes = [8, 32], strides = [1, 1]} : vector<8x128xf32> to vector<8x32xf32>
    %448 = arith.negf %447 : vector<8x32xf32>
    %449 = math.exp %448 : vector<8x32xf32>
    %cst_211 = arith.constant 1.000000e+00 : f32
    %450 = vector.broadcast %cst_211 : f32 to vector<8x32xf32>
    %451 = arith.addf %450, %449 : vector<8x32xf32>
    %452 = arith.divf %450, %451 : vector<8x32xf32>
    %c0_212 = arith.constant 0 : index
    %c0_213 = arith.constant 0 : index
    %453 = vector.load %arg9[%c0_212, %c0_213] : memref<8x32xf32, #tpu.memory_space<vmem>>, vector<8x32xf32>
    %454 = arith.mulf %444, %453 : vector<8x32xf32>
    %455 = arith.mulf %438, %446 : vector<8x32xf32>
    %456 = arith.addf %454, %455 : vector<8x32xf32>
    %457 = math.tanh %456 : vector<8x32xf32>
    %458 = arith.mulf %452, %457 : vector<8x32xf32>
    %c0_214 = arith.constant 0 : index
    %c0_215 = arith.constant 0 : index
    %459 = vector.load %arg9[%c0_214, %c0_215] : memref<8x32xf32, #tpu.memory_space<vmem>>, vector<8x32xf32>
    tpu.vector_store %arg9[%c0_214, %c0_215], %456 {strides = array<i32>} : memref<8x32xf32, #tpu.memory_space<vmem>>, vector<8x32xf32>,
    %c0_216 = arith.constant 0 : index
    %c0_217 = arith.constant 0 : index
    %460 = vector.load %arg8[%c0_216, %c0_217] : memref<8x32xf32, #tpu.memory_space<vmem>>, vector<8x32xf32>
    tpu.vector_store %arg8[%c0_216, %c0_217], %458 {strides = array<i32>} : memref<8x32xf32, #tpu.memory_space<vmem>>, vector<8x32xf32>,
    %461 = arith.index_cast %c2_i32_203 : i32 to index
    %c0_218 = arith.constant 0 : index
    %c0_219 = arith.constant 0 : index
    %462 = vector.load %arg5[%461, %c0_218, %c0_219] : memref<8x8x32xf32, #tpu.memory_space<vmem>>, vector<1x8x32xf32>
    %463 = vector.shape_cast %462 : vector<1x8x32xf32> to vector<8x32xf32>
    %464 = vector.shape_cast %458 : vector<8x32xf32> to vector<1x8x32xf32>
    tpu.vector_store %arg5[%461, %c0_218, %c0_219], %464 {strides = array<i32>} : memref<8x8x32xf32, #tpu.memory_space<vmem>>, vector<1x8x32xf32>,
    %c3_i32_220 = arith.constant 3 : i32
    %465 = arith.index_cast %c3_i32_220 : i32 to index
    %c0_221 = arith.constant 0 : index
    %c0_222 = arith.constant 0 : index
    %466 = vector.load %arg6[%465, %c0_221, %c0_222] : memref<8x8x128xf32, #tpu.memory_space<vmem>>, vector<1x8x128xf32>
    %467 = vector.shape_cast %466 : vector<1x8x128xf32> to vector<8x128xf32>
    %c0_223 = arith.constant 0 : index
    %c0_224 = arith.constant 0 : index
    %468 = vector.load %arg8[%c0_223, %c0_224] : memref<8x32xf32, #tpu.memory_space<vmem>>, vector<8x32xf32>
    %469 = arith.truncf %468 : vector<8x32xf32> to vector<8x32xbf16>
    %cst_225 = arith.constant dense<0.000000e+00> : vector<8x128xf32>
    %470 = tpu.matmul %469, %343, %cst_225 {dimension_numbers = #tpu.dot_dimension_numbers<[1], [0], [0], [1], [0, 0, 1, 1], [], []>} : vector<8x32xbf16>, vector<32x128xbf16>, vector<8x128xf32> -> vector<8x128xf32>
    %471 = arith.addf %467, %470 : vector<8x128xf32>
    %472 = vector.extract_strided_slice %471 {offsets = [0, 0], sizes = [8, 32], strides = [1, 1]} : vector<8x128xf32> to vector<8x32xf32>
    %473 = arith.negf %472 : vector<8x32xf32>
    %474 = math.exp %473 : vector<8x32xf32>
    %cst_226 = arith.constant 1.000000e+00 : f32
    %475 = vector.broadcast %cst_226 : f32 to vector<8x32xf32>
    %476 = arith.addf %475, %474 : vector<8x32xf32>
    %477 = arith.divf %475, %476 : vector<8x32xf32>
    %478 = vector.extract_strided_slice %471 {offsets = [0, 32], sizes = [8, 32], strides = [1, 1]} : vector<8x128xf32> to vector<8x32xf32>
    %479 = arith.negf %478 : vector<8x32xf32>
    %480 = math.exp %479 : vector<8x32xf32>
    %cst_227 = arith.constant 1.000000e+00 : f32
    %481 = vector.broadcast %cst_227 : f32 to vector<8x32xf32>
    %482 = arith.addf %481, %480 : vector<8x32xf32>
    %483 = arith.divf %481, %482 : vector<8x32xf32>
    %484 = vector.extract_strided_slice %471 {offsets = [0, 64], sizes = [8, 32], strides = [1, 1]} : vector<8x128xf32> to vector<8x32xf32>
    %485 = math.tanh %484 : vector<8x32xf32>
    %486 = vector.extract_strided_slice %471 {offsets = [0, 96], sizes = [8, 32], strides = [1, 1]} : vector<8x128xf32> to vector<8x32xf32>
    %487 = arith.negf %486 : vector<8x32xf32>
    %488 = math.exp %487 : vector<8x32xf32>
    %cst_228 = arith.constant 1.000000e+00 : f32
    %489 = vector.broadcast %cst_228 : f32 to vector<8x32xf32>
    %490 = arith.addf %489, %488 : vector<8x32xf32>
    %491 = arith.divf %489, %490 : vector<8x32xf32>
    %c0_229 = arith.constant 0 : index
    %c0_230 = arith.constant 0 : index
    %492 = vector.load %arg9[%c0_229, %c0_230] : memref<8x32xf32, #tpu.memory_space<vmem>>, vector<8x32xf32>
    %493 = arith.mulf %483, %492 : vector<8x32xf32>
    %494 = arith.mulf %477, %485 : vector<8x32xf32>
    %495 = arith.addf %493, %494 : vector<8x32xf32>
    %496 = math.tanh %495 : vector<8x32xf32>
    %497 = arith.mulf %491, %496 : vector<8x32xf32>
    %c0_231 = arith.constant 0 : index
    %c0_232 = arith.constant 0 : index
    %498 = vector.load %arg9[%c0_231, %c0_232] : memref<8x32xf32, #tpu.memory_space<vmem>>, vector<8x32xf32>
    tpu.vector_store %arg9[%c0_231, %c0_232], %495 {strides = array<i32>} : memref<8x32xf32, #tpu.memory_space<vmem>>, vector<8x32xf32>,
    %c0_233 = arith.constant 0 : index
    %c0_234 = arith.constant 0 : index
    %499 = vector.load %arg8[%c0_233, %c0_234] : memref<8x32xf32, #tpu.memory_space<vmem>>, vector<8x32xf32>
    tpu.vector_store %arg8[%c0_233, %c0_234], %497 {strides = array<i32>} : memref<8x32xf32, #tpu.memory_space<vmem>>, vector<8x32xf32>,
    %500 = arith.index_cast %c3_i32_220 : i32 to index
    %c0_235 = arith.constant 0 : index
    %c0_236 = arith.constant 0 : index
    %501 = vector.load %arg5[%500, %c0_235, %c0_236] : memref<8x8x32xf32, #tpu.memory_space<vmem>>, vector<1x8x32xf32>
    %502 = vector.shape_cast %501 : vector<1x8x32xf32> to vector<8x32xf32>
    %503 = vector.shape_cast %497 : vector<8x32xf32> to vector<1x8x32xf32>
    tpu.vector_store %arg5[%500, %c0_235, %c0_236], %503 {strides = array<i32>} : memref<8x8x32xf32, #tpu.memory_space<vmem>>, vector<1x8x32xf32>,
    %c4_i32_237 = arith.constant 4 : i32
    %504 = arith.index_cast %c4_i32_237 : i32 to index
    %c0_238 = arith.constant 0 : index
    %c0_239 = arith.constant 0 : index
    %505 = vector.load %arg6[%504, %c0_238, %c0_239] : memref<8x8x128xf32, #tpu.memory_space<vmem>>, vector<1x8x128xf32>
    %506 = vector.shape_cast %505 : vector<1x8x128xf32> to vector<8x128xf32>
    %c0_240 = arith.constant 0 : index
    %c0_241 = arith.constant 0 : index
    %507 = vector.load %arg8[%c0_240, %c0_241] : memref<8x32xf32, #tpu.memory_space<vmem>>, vector<8x32xf32>
    %508 = arith.truncf %507 : vector<8x32xf32> to vector<8x32xbf16>
    %cst_242 = arith.constant dense<0.000000e+00> : vector<8x128xf32>
    %509 = tpu.matmul %508, %343, %cst_242 {dimension_numbers = #tpu.dot_dimension_numbers<[1], [0], [0], [1], [0, 0, 1, 1], [], []>} : vector<8x32xbf16>, vector<32x128xbf16>, vector<8x128xf32> -> vector<8x128xf32>
    %510 = arith.addf %506, %509 : vector<8x128xf32>
    %511 = vector.extract_strided_slice %510 {offsets = [0, 0], sizes = [8, 32], strides = [1, 1]} : vector<8x128xf32> to vector<8x32xf32>
    %512 = arith.negf %511 : vector<8x32xf32>
    %513 = math.exp %512 : vector<8x32xf32>
    %cst_243 = arith.constant 1.000000e+00 : f32
    %514 = vector.broadcast %cst_243 : f32 to vector<8x32xf32>
    %515 = arith.addf %514, %513 : vector<8x32xf32>
    %516 = arith.divf %514, %515 : vector<8x32xf32>
    %517 = vector.extract_strided_slice %510 {offsets = [0, 32], sizes = [8, 32], strides = [1, 1]} : vector<8x128xf32> to vector<8x32xf32>
    %518 = arith.negf %517 : vector<8x32xf32>
    %519 = math.exp %518 : vector<8x32xf32>
    %cst_244 = arith.constant 1.000000e+00 : f32
    %520 = vector.broadcast %cst_244 : f32 to vector<8x32xf32>
    %521 = arith.addf %520, %519 : vector<8x32xf32>
    %522 = arith.divf %520, %521 : vector<8x32xf32>
    %523 = vector.extract_strided_slice %510 {offsets = [0, 64], sizes = [8, 32], strides = [1, 1]} : vector<8x128xf32> to vector<8x32xf32>
    %524 = math.tanh %523 : vector<8x32xf32>
    %525 = vector.extract_strided_slice %510 {offsets = [0, 96], sizes = [8, 32], strides = [1, 1]} : vector<8x128xf32> to vector<8x32xf32>
    %526 = arith.negf %525 : vector<8x32xf32>
    %527 = math.exp %526 : vector<8x32xf32>
    %cst_245 = arith.constant 1.000000e+00 : f32
    %528 = vector.broadcast %cst_245 : f32 to vector<8x32xf32>
    %529 = arith.addf %528, %527 : vector<8x32xf32>
    %530 = arith.divf %528, %529 : vector<8x32xf32>
    %c0_246 = arith.constant 0 : index
    %c0_247 = arith.constant 0 : index
    %531 = vector.load %arg9[%c0_246, %c0_247] : memref<8x32xf32, #tpu.memory_space<vmem>>, vector<8x32xf32>
    %532 = arith.mulf %522, %531 : vector<8x32xf32>
    %533 = arith.mulf %516, %524 : vector<8x32xf32>
    %534 = arith.addf %532, %533 : vector<8x32xf32>
    %535 = math.tanh %534 : vector<8x32xf32>
    %536 = arith.mulf %530, %535 : vector<8x32xf32>
    %c0_248 = arith.constant 0 : index
    %c0_249 = arith.constant 0 : index
    %537 = vector.load %arg9[%c0_248, %c0_249] : memref<8x32xf32, #tpu.memory_space<vmem>>, vector<8x32xf32>
    tpu.vector_store %arg9[%c0_248, %c0_249], %534 {strides = array<i32>} : memref<8x32xf32, #tpu.memory_space<vmem>>, vector<8x32xf32>,
    %c0_250 = arith.constant 0 : index
    %c0_251 = arith.constant 0 : index
    %538 = vector.load %arg8[%c0_250, %c0_251] : memref<8x32xf32, #tpu.memory_space<vmem>>, vector<8x32xf32>
    tpu.vector_store %arg8[%c0_250, %c0_251], %536 {strides = array<i32>} : memref<8x32xf32, #tpu.memory_space<vmem>>, vector<8x32xf32>,
    %539 = arith.index_cast %c4_i32_237 : i32 to index
    %c0_252 = arith.constant 0 : index
    %c0_253 = arith.constant 0 : index
    %540 = vector.load %arg5[%539, %c0_252, %c0_253] : memref<8x8x32xf32, #tpu.memory_space<vmem>>, vector<1x8x32xf32>
    %541 = vector.shape_cast %540 : vector<1x8x32xf32> to vector<8x32xf32>
    %542 = vector.shape_cast %536 : vector<8x32xf32> to vector<1x8x32xf32>
    tpu.vector_store %arg5[%539, %c0_252, %c0_253], %542 {strides = array<i32>} : memref<8x8x32xf32, #tpu.memory_space<vmem>>, vector<1x8x32xf32>,
    %c5_i32_254 = arith.constant 5 : i32
    %543 = arith.index_cast %c5_i32_254 : i32 to index
    %c0_255 = arith.constant 0 : index
    %c0_256 = arith.constant 0 : index
    %544 = vector.load %arg6[%543, %c0_255, %c0_256] : memref<8x8x128xf32, #tpu.memory_space<vmem>>, vector<1x8x128xf32>
    %545 = vector.shape_cast %544 : vector<1x8x128xf32> to vector<8x128xf32>
    %c0_257 = arith.constant 0 : index
    %c0_258 = arith.constant 0 : index
    %546 = vector.load %arg8[%c0_257, %c0_258] : memref<8x32xf32, #tpu.memory_space<vmem>>, vector<8x32xf32>
    %547 = arith.truncf %546 : vector<8x32xf32> to vector<8x32xbf16>
    %cst_259 = arith.constant dense<0.000000e+00> : vector<8x128xf32>
    %548 = tpu.matmul %547, %343, %cst_259 {dimension_numbers = #tpu.dot_dimension_numbers<[1], [0], [0], [1], [0, 0, 1, 1], [], []>} : vector<8x32xbf16>, vector<32x128xbf16>, vector<8x128xf32> -> vector<8x128xf32>
    %549 = arith.addf %545, %548 : vector<8x128xf32>
    %550 = vector.extract_strided_slice %549 {offsets = [0, 0], sizes = [8, 32], strides = [1, 1]} : vector<8x128xf32> to vector<8x32xf32>
    %551 = arith.negf %550 : vector<8x32xf32>
    %552 = math.exp %551 : vector<8x32xf32>
    %cst_260 = arith.constant 1.000000e+00 : f32
    %553 = vector.broadcast %cst_260 : f32 to vector<8x32xf32>
    %554 = arith.addf %553, %552 : vector<8x32xf32>
    %555 = arith.divf %553, %554 : vector<8x32xf32>
    %556 = vector.extract_strided_slice %549 {offsets = [0, 32], sizes = [8, 32], strides = [1, 1]} : vector<8x128xf32> to vector<8x32xf32>
    %557 = arith.negf %556 : vector<8x32xf32>
    %558 = math.exp %557 : vector<8x32xf32>
    %cst_261 = arith.constant 1.000000e+00 : f32
    %559 = vector.broadcast %cst_261 : f32 to vector<8x32xf32>
    %560 = arith.addf %559, %558 : vector<8x32xf32>
    %561 = arith.divf %559, %560 : vector<8x32xf32>
    %562 = vector.extract_strided_slice %549 {offsets = [0, 64], sizes = [8, 32], strides = [1, 1]} : vector<8x128xf32> to vector<8x32xf32>
    %563 = math.tanh %562 : vector<8x32xf32>
    %564 = vector.extract_strided_slice %549 {offsets = [0, 96], sizes = [8, 32], strides = [1, 1]} : vector<8x128xf32> to vector<8x32xf32>
    %565 = arith.negf %564 : vector<8x32xf32>
    %566 = math.exp %565 : vector<8x32xf32>
    %cst_262 = arith.constant 1.000000e+00 : f32
    %567 = vector.broadcast %cst_262 : f32 to vector<8x32xf32>
    %568 = arith.addf %567, %566 : vector<8x32xf32>
    %569 = arith.divf %567, %568 : vector<8x32xf32>
    %c0_263 = arith.constant 0 : index
    %c0_264 = arith.constant 0 : index
    %570 = vector.load %arg9[%c0_263, %c0_264] : memref<8x32xf32, #tpu.memory_space<vmem>>, vector<8x32xf32>
    %571 = arith.mulf %561, %570 : vector<8x32xf32>
    %572 = arith.mulf %555, %563 : vector<8x32xf32>
    %573 = arith.addf %571, %572 : vector<8x32xf32>
    %574 = math.tanh %573 : vector<8x32xf32>
    %575 = arith.mulf %569, %574 : vector<8x32xf32>
    %c0_265 = arith.constant 0 : index
    %c0_266 = arith.constant 0 : index
    %576 = vector.load %arg9[%c0_265, %c0_266] : memref<8x32xf32, #tpu.memory_space<vmem>>, vector<8x32xf32>
    tpu.vector_store %arg9[%c0_265, %c0_266], %573 {strides = array<i32>} : memref<8x32xf32, #tpu.memory_space<vmem>>, vector<8x32xf32>,
    %c0_267 = arith.constant 0 : index
    %c0_268 = arith.constant 0 : index
    %577 = vector.load %arg8[%c0_267, %c0_268] : memref<8x32xf32, #tpu.memory_space<vmem>>, vector<8x32xf32>
    tpu.vector_store %arg8[%c0_267, %c0_268], %575 {strides = array<i32>} : memref<8x32xf32, #tpu.memory_space<vmem>>, vector<8x32xf32>,
    %578 = arith.index_cast %c5_i32_254 : i32 to index
    %c0_269 = arith.constant 0 : index
    %c0_270 = arith.constant 0 : index
    %579 = vector.load %arg5[%578, %c0_269, %c0_270] : memref<8x8x32xf32, #tpu.memory_space<vmem>>, vector<1x8x32xf32>
    %580 = vector.shape_cast %579 : vector<1x8x32xf32> to vector<8x32xf32>
    %581 = vector.shape_cast %575 : vector<8x32xf32> to vector<1x8x32xf32>
    tpu.vector_store %arg5[%578, %c0_269, %c0_270], %581 {strides = array<i32>} : memref<8x8x32xf32, #tpu.memory_space<vmem>>, vector<1x8x32xf32>,
    %c6_i32_271 = arith.constant 6 : i32
    %582 = arith.index_cast %c6_i32_271 : i32 to index
    %c0_272 = arith.constant 0 : index
    %c0_273 = arith.constant 0 : index
    %583 = vector.load %arg6[%582, %c0_272, %c0_273] : memref<8x8x128xf32, #tpu.memory_space<vmem>>, vector<1x8x128xf32>
    %584 = vector.shape_cast %583 : vector<1x8x128xf32> to vector<8x128xf32>
    %c0_274 = arith.constant 0 : index
    %c0_275 = arith.constant 0 : index
    %585 = vector.load %arg8[%c0_274, %c0_275] : memref<8x32xf32, #tpu.memory_space<vmem>>, vector<8x32xf32>
    %586 = arith.truncf %585 : vector<8x32xf32> to vector<8x32xbf16>
    %cst_276 = arith.constant dense<0.000000e+00> : vector<8x128xf32>
    %587 = tpu.matmul %586, %343, %cst_276 {dimension_numbers = #tpu.dot_dimension_numbers<[1], [0], [0], [1], [0, 0, 1, 1], [], []>} : vector<8x32xbf16>, vector<32x128xbf16>, vector<8x128xf32> -> vector<8x128xf32>
    %588 = arith.addf %584, %587 : vector<8x128xf32>
    %589 = vector.extract_strided_slice %588 {offsets = [0, 0], sizes = [8, 32], strides = [1, 1]} : vector<8x128xf32> to vector<8x32xf32>
    %590 = arith.negf %589 : vector<8x32xf32>
    %591 = math.exp %590 : vector<8x32xf32>
    %cst_277 = arith.constant 1.000000e+00 : f32
    %592 = vector.broadcast %cst_277 : f32 to vector<8x32xf32>
    %593 = arith.addf %592, %591 : vector<8x32xf32>
    %594 = arith.divf %592, %593 : vector<8x32xf32>
    %595 = vector.extract_strided_slice %588 {offsets = [0, 32], sizes = [8, 32], strides = [1, 1]} : vector<8x128xf32> to vector<8x32xf32>
    %596 = arith.negf %595 : vector<8x32xf32>
    %597 = math.exp %596 : vector<8x32xf32>
    %cst_278 = arith.constant 1.000000e+00 : f32
    %598 = vector.broadcast %cst_278 : f32 to vector<8x32xf32>
    %599 = arith.addf %598, %597 : vector<8x32xf32>
    %600 = arith.divf %598, %599 : vector<8x32xf32>
    %601 = vector.extract_strided_slice %588 {offsets = [0, 64], sizes = [8, 32], strides = [1, 1]} : vector<8x128xf32> to vector<8x32xf32>
    %602 = math.tanh %601 : vector<8x32xf32>
    %603 = vector.extract_strided_slice %588 {offsets = [0, 96], sizes = [8, 32], strides = [1, 1]} : vector<8x128xf32> to vector<8x32xf32>
    %604 = arith.negf %603 : vector<8x32xf32>
    %605 = math.exp %604 : vector<8x32xf32>
    %cst_279 = arith.constant 1.000000e+00 : f32
    %606 = vector.broadcast %cst_279 : f32 to vector<8x32xf32>
    %607 = arith.addf %606, %605 : vector<8x32xf32>
    %608 = arith.divf %606, %607 : vector<8x32xf32>
    %c0_280 = arith.constant 0 : index
    %c0_281 = arith.constant 0 : index
    %609 = vector.load %arg9[%c0_280, %c0_281] : memref<8x32xf32, #tpu.memory_space<vmem>>, vector<8x32xf32>
    %610 = arith.mulf %600, %609 : vector<8x32xf32>
    %611 = arith.mulf %594, %602 : vector<8x32xf32>
    %612 = arith.addf %610, %611 : vector<8x32xf32>
    %613 = math.tanh %612 : vector<8x32xf32>
    %614 = arith.mulf %608, %613 : vector<8x32xf32>
    %c0_282 = arith.constant 0 : index
    %c0_283 = arith.constant 0 : index
    %615 = vector.load %arg9[%c0_282, %c0_283] : memref<8x32xf32, #tpu.memory_space<vmem>>, vector<8x32xf32>
    tpu.vector_store %arg9[%c0_282, %c0_283], %612 {strides = array<i32>} : memref<8x32xf32, #tpu.memory_space<vmem>>, vector<8x32xf32>,
    %c0_284 = arith.constant 0 : index
    %c0_285 = arith.constant 0 : index
    %616 = vector.load %arg8[%c0_284, %c0_285] : memref<8x32xf32, #tpu.memory_space<vmem>>, vector<8x32xf32>
    tpu.vector_store %arg8[%c0_284, %c0_285], %614 {strides = array<i32>} : memref<8x32xf32, #tpu.memory_space<vmem>>, vector<8x32xf32>,
    %617 = arith.index_cast %c6_i32_271 : i32 to index
    %c0_286 = arith.constant 0 : index
    %c0_287 = arith.constant 0 : index
    %618 = vector.load %arg5[%617, %c0_286, %c0_287] : memref<8x8x32xf32, #tpu.memory_space<vmem>>, vector<1x8x32xf32>
    %619 = vector.shape_cast %618 : vector<1x8x32xf32> to vector<8x32xf32>
    %620 = vector.shape_cast %614 : vector<8x32xf32> to vector<1x8x32xf32>
    tpu.vector_store %arg5[%617, %c0_286, %c0_287], %620 {strides = array<i32>} : memref<8x8x32xf32, #tpu.memory_space<vmem>>, vector<1x8x32xf32>,
    %c7_i32_288 = arith.constant 7 : i32
    %621 = arith.index_cast %c7_i32_288 : i32 to index
    %c0_289 = arith.constant 0 : index
    %c0_290 = arith.constant 0 : index
    %622 = vector.load %arg6[%621, %c0_289, %c0_290] : memref<8x8x128xf32, #tpu.memory_space<vmem>>, vector<1x8x128xf32>
    %623 = vector.shape_cast %622 : vector<1x8x128xf32> to vector<8x128xf32>
    %c0_291 = arith.constant 0 : index
    %c0_292 = arith.constant 0 : index
    %624 = vector.load %arg8[%c0_291, %c0_292] : memref<8x32xf32, #tpu.memory_space<vmem>>, vector<8x32xf32>
    %625 = arith.truncf %624 : vector<8x32xf32> to vector<8x32xbf16>
    %cst_293 = arith.constant dense<0.000000e+00> : vector<8x128xf32>
    %626 = tpu.matmul %625, %343, %cst_293 {dimension_numbers = #tpu.dot_dimension_numbers<[1], [0], [0], [1], [0, 0, 1, 1], [], []>} : vector<8x32xbf16>, vector<32x128xbf16>, vector<8x128xf32> -> vector<8x128xf32>
    %627 = arith.addf %623, %626 : vector<8x128xf32>
    %628 = vector.extract_strided_slice %627 {offsets = [0, 0], sizes = [8, 32], strides = [1, 1]} : vector<8x128xf32> to vector<8x32xf32>
    %629 = arith.negf %628 : vector<8x32xf32>
    %630 = math.exp %629 : vector<8x32xf32>
    %cst_294 = arith.constant 1.000000e+00 : f32
    %631 = vector.broadcast %cst_294 : f32 to vector<8x32xf32>
    %632 = arith.addf %631, %630 : vector<8x32xf32>
    %633 = arith.divf %631, %632 : vector<8x32xf32>
    %634 = vector.extract_strided_slice %627 {offsets = [0, 32], sizes = [8, 32], strides = [1, 1]} : vector<8x128xf32> to vector<8x32xf32>
    %635 = arith.negf %634 : vector<8x32xf32>
    %636 = math.exp %635 : vector<8x32xf32>
    %cst_295 = arith.constant 1.000000e+00 : f32
    %637 = vector.broadcast %cst_295 : f32 to vector<8x32xf32>
    %638 = arith.addf %637, %636 : vector<8x32xf32>
    %639 = arith.divf %637, %638 : vector<8x32xf32>
    %640 = vector.extract_strided_slice %627 {offsets = [0, 64], sizes = [8, 32], strides = [1, 1]} : vector<8x128xf32> to vector<8x32xf32>
    %641 = math.tanh %640 : vector<8x32xf32>
    %642 = vector.extract_strided_slice %627 {offsets = [0, 96], sizes = [8, 32], strides = [1, 1]} : vector<8x128xf32> to vector<8x32xf32>
    %643 = arith.negf %642 : vector<8x32xf32>
    %644 = math.exp %643 : vector<8x32xf32>
    %cst_296 = arith.constant 1.000000e+00 : f32
    %645 = vector.broadcast %cst_296 : f32 to vector<8x32xf32>
    %646 = arith.addf %645, %644 : vector<8x32xf32>
    %647 = arith.divf %645, %646 : vector<8x32xf32>
    %c0_297 = arith.constant 0 : index
    %c0_298 = arith.constant 0 : index
    %648 = vector.load %arg9[%c0_297, %c0_298] : memref<8x32xf32, #tpu.memory_space<vmem>>, vector<8x32xf32>
    %649 = arith.mulf %639, %648 : vector<8x32xf32>
    %650 = arith.mulf %633, %641 : vector<8x32xf32>
    %651 = arith.addf %649, %650 : vector<8x32xf32>
    %652 = math.tanh %651 : vector<8x32xf32>
    %653 = arith.mulf %647, %652 : vector<8x32xf32>
    %c0_299 = arith.constant 0 : index
    %c0_300 = arith.constant 0 : index
    %654 = vector.load %arg9[%c0_299, %c0_300] : memref<8x32xf32, #tpu.memory_space<vmem>>, vector<8x32xf32>
    tpu.vector_store %arg9[%c0_299, %c0_300], %651 {strides = array<i32>} : memref<8x32xf32, #tpu.memory_space<vmem>>, vector<8x32xf32>,
    %c0_301 = arith.constant 0 : index
    %c0_302 = arith.constant 0 : index
    %655 = vector.load %arg8[%c0_301, %c0_302] : memref<8x32xf32, #tpu.memory_space<vmem>>, vector<8x32xf32>
    tpu.vector_store %arg8[%c0_301, %c0_302], %653 {strides = array<i32>} : memref<8x32xf32, #tpu.memory_space<vmem>>, vector<8x32xf32>,
    %656 = arith.index_cast %c7_i32_288 : i32 to index
    %c0_303 = arith.constant 0 : index
    %c0_304 = arith.constant 0 : index
    %657 = vector.load %arg5[%656, %c0_303, %c0_304] : memref<8x8x32xf32, #tpu.memory_space<vmem>>, vector<1x8x32xf32>
    %658 = vector.shape_cast %657 : vector<1x8x32xf32> to vector<8x32xf32>
    %659 = vector.shape_cast %653 : vector<8x32xf32> to vector<1x8x32xf32>
    tpu.vector_store %arg5[%656, %c0_303, %c0_304], %659 {strides = array<i32>} : memref<8x8x32xf32, #tpu.memory_space<vmem>>, vector<1x8x32xf32>,
    %c8_i32_305 = arith.constant 8 : i32
    return
  }
  func.func @transform_0(%arg0: i32) -> (i32, i32, i32) {
    %c0_i32 = arith.constant 0 : i32
    %c0_i32_0 = arith.constant 0 : i32
    %c0_i32_1 = arith.constant 0 : i32
    return %c0_i32, %arg0, %c0_i32_0 : i32, i32, i32
  }
  func.func @transform_1(%arg0: i32) -> (i32, i32, i32) {
    %c0_i32 = arith.constant 0 : i32
    %c0_i32_0 = arith.constant 0 : i32
    %c0_i32_1 = arith.constant 0 : i32
    %c0_i32_2 = arith.constant 0 : i32
    return %c0_i32, %c0_i32_0, %c0_i32_1 : i32, i32, i32
  }
  func.func @transform_2(%arg0: i32) -> (i32, i32, i32) {
    %c0_i32 = arith.constant 0 : i32
    %c0_i32_0 = arith.constant 0 : i32
    %c0_i32_1 = arith.constant 0 : i32
    %c0_i32_2 = arith.constant 0 : i32
    return %c0_i32, %c0_i32_0, %c0_i32_1 : i32, i32, i32
  }
  func.func @transform_3(%arg0: i32) -> (i32, i32, i32) {
    %c0_i32 = arith.constant 0 : i32
    %c0_i32_0 = arith.constant 0 : i32
    %c0_i32_1 = arith.constant 0 : i32
    %c0_i32_2 = arith.constant 0 : i32
    return %c0_i32, %c0_i32_0, %c0_i32_1 : i32, i32, i32
  }
  func.func @transform_4(%arg0: i32) -> (i32, i32, i32) {
    %c0_i32 = arith.constant 0 : i32
    %c0_i32_0 = arith.constant 0 : i32
    %c0_i32_1 = arith.constant 0 : i32
    return %c0_i32, %arg0, %c0_i32_0 : i32, i32, i32
  }
}

</mosaic_0001>

<llo_original>
// kernel: tpu_custom_call.1
$region0: #{tpu_custom_call.1}
  #allocation0 [shape = 'u32[]', space=smem, size = 0x4, offset = 0x4, fixed_abs, tag = 'smem constant byte address 0x4 - core index']
  #allocation1 [shape = 'u32[144,128]{1,0:T(1,128)}', space=vmem, size = 0x12000, scoped, tag = 'internal scratch']
  #allocation2 [shape = 'f32[8,8,128]{2,1,0:T(8,128)}', space=vmem, size = 0x8000, scoped, tag = 'scratch operand']
  #allocation3 [shape = 'f32[8,8,32]{2,1,0:T(8,128)}', space=vmem, size = 0x8000, scoped, tag = 'scratch operand']
  #allocation4 [shape = 'f32[8,32]{1,0:T(8,128)}', space=vmem, size = 0x1000, scoped, tag = 'scratch operand']
  #allocation5 [shape = 'f32[8,32]{1,0:T(8,128)}', space=vmem, size = 0x1000, scoped, tag = 'scratch operand']
  %s0 = inlined_call_operand.hbm [shape: f32[8,16,32], index: 0, kind: input, shape index: {}]
  %s1 = inlined_call_operand.hbm [shape: bf16[2,32,128], index: 1, kind: input, shape index: {}]
  %s2 = inlined_call_operand.hbm [shape: bf16[2,32,128], index: 2, kind: input, shape index: {}]
  %s3 = inlined_call_operand.vmem [shape: f32[2,1,128], index: 3, kind: input, shape index: {}]
  %s4 = inlined_call_operand.hbm [shape: f32[8,16,32], index: 4, kind: output, shape index: {}]
  %s5 = sld [smem:[#allocation0]]
  $region61: #{tpu_custom_call.1} parent=0
    _
  %s7 = ssub.s32 1, %s5
  %s8 = scalar_select 0, %s7, %s5
  $region1: #{tpu_custom_call.1} parent=0
    #allocation6 [shape = 'u8[65536]{0}', space=vmem, size = 0x10000, scoped, tag = 'input window, operand 0']
    #allocation7 [shape = 's32[2]{0}', space=sflag, size = 0x8, scoped, tag = 'scoped memory for tpu_custom_call.1']
    #allocation8 [shape = 's32[2]{0}', space=sflag, size = 0x8, scoped, tag = 'scoped memory for tpu_custom_call.1']
    #allocation9 [shape = 'u8[16384]{0}', space=vmem, size = 0x4000, scoped, tag = 'input window, operand 1, single buffered']
    #allocation10 [shape = 's32[1]{0}', space=sflag, size = 0x4, scoped, tag = 'scoped memory for tpu_custom_call.1']
    #allocation11 [shape = 'u8[16384]{0}', space=vmem, size = 0x4000, scoped, tag = 'input window, operand 2, single buffered']
    #allocation12 [shape = 'u8[65536]{0}', space=vmem, size = 0x10000, scoped, tag = 'output window, operand 0']
    %9 = vsyncpa [#allocation7], 0
    %s10 = scalar_lea.sflag [#allocation7], 1
    %11 = vsyncpa %s10, 0
    %12 = vsyncpa [#allocation10], 0
    %13 = vsyncpa [#allocation8], 0
    %s14 = scalar_lea.sflag [#allocation8], 1
    %15 = vsyncpa %s14, 0
    loop: start=0, step=1, limit=4
    $region2: #{tpu_custom_call.1} parent=1 // loop_pre_header
      _
    $region3: #{tpu_custom_call.1} parent=1 // loop_header
      %s17 = sphi 0, %s21
      %p18 = scmp.ge.s32.totalorder %s17, 4
      %s27 = sphi 0, %s29
      %s30 = sphi 0, %s27
      %s31 = sphi 0, %s30
      %s47 = sphi 0, %s31
      %s51 = sphi 0, %s51
      %s53 = sphi 0, %s51
      %s54 = sphi 0, %s53
      %s68 = sphi 0, %s54
      %s72 = sphi 0, %s72
      %s74 = sphi 0, %s72
      %s75 = sphi 0, %s74
      %s89 = sphi 0, %s75
      %s93 = sphi 0, %s93
      %s95 = sphi 0, %s93
      %s96 = sphi 0, %s95
      %s110 = sphi 0, %s96
      %s116 = sphi 0, %s118
      %s119 = sphi 0, %s116
      %s120 = sphi 0, %s119
      %s136 = sphi 0, %s120
    $region4: #{tpu_custom_call.1} parent=1 // loop_header_branch
      %20 = sbr.rel (%p18) target = $region8
    $region5: #{tpu_custom_call.1} parent=1 // loop_body
      %s22 = ssub.s32 %s17, 1
      %s23 = ssub.s32 %s17, 2
      %s24 = sadd.s32 %s17, 1
      %s25 = ssub.s32 %s17, %s24
      %p26 = scmp.eq.s32.totalorder %s25, 0
      %s28 = sadd.s32 %s27, 1
      %s29 = scalar_select %p26, %s27, %s28
      %p32 = pneg %p26
      %p33 = scmp.eq.s32.totalorder %s17, 1
      %p34 = por %p32, %p33
      %p35 = scmp.ne.s32.totalorder %s27, %s30
      %p36 = scmp.eq.s32.totalorder %s17, 0
      %p37 = por %p35, %p36
      %p38 = scmp.ne.s32.totalorder %s27, %s30
      %p39 = scmp.eq.s32.totalorder %s22, 1
      %p40 = por %p38, %p39
      %p41 = scmp.ne.s32.totalorder %s30, %s31
      %p42 = scmp.eq.s32.totalorder %s22, 0
      %p43 = por %p41, %p42
      %p44 = scmp.ne.s32.totalorder %s30, %s31
      %p45 = scmp.eq.s32.totalorder %s23, 1
      %p46 = por %p44, %p45
      %p48 = scmp.ne.s32.totalorder %s31, %s47
      %p49 = scmp.eq.s32.totalorder %s23, 0
      %p50 = por %p48, %p49
      %s52 = sadd.s32 %s51, 1
      %p55 = scmp.eq.s32.totalorder %s17, 1
      %p56 = scmp.ne.s32.totalorder %s51, %s53
      %p57 = scmp.eq.s32.totalorder %s17, 0
      %p58 = por %p56, %p57
      %p59 = scmp.ne.s32.totalorder %s51, %s53
      %p60 = scmp.eq.s32.totalorder %s22, 1
      %p61 = por %p59, %p60
      %p62 = scmp.ne.s32.totalorder %s53, %s54
      %p63 = scmp.eq.s32.totalorder %s22, 0
      %p64 = por %p62, %p63
      %p65 = scmp.ne.s32.totalorder %s53, %s54
      %p66 = scmp.eq.s32.totalorder %s23, 1
      %p67 = por %p65, %p66
      %p69 = scmp.ne.s32.totalorder %s54, %s68
      %p70 = scmp.eq.s32.totalorder %s23, 0
      %p71 = por %p69, %p70
      %s73 = sadd.s32 %s72, 1
      %p76 = scmp.eq.s32.totalorder %s17, 1
      %p77 = scmp.ne.s32.totalorder %s72, %s74
      %p78 = scmp.eq.s32.totalorder %s17, 0
      %p79 = por %p77, %p78
      %p80 = scmp.ne.s32.totalorder %s72, %s74
      %p81 = scmp.eq.s32.totalorder %s22, 1
      %p82 = por %p80, %p81
      %p83 = scmp.ne.s32.totalorder %s74, %s75
      %p84 = scmp.eq.s32.totalorder %s22, 0
      %p85 = por %p83, %p84
      %p86 = scmp.ne.s32.totalorder %s74, %s75
      %p87 = scmp.eq.s32.totalorder %s23, 1
      %p88 = por %p86, %p87
      %p90 = scmp.ne.s32.totalorder %s75, %s89
      %p91 = scmp.eq.s32.totalorder %s23, 0
      %p92 = por %p90, %p91
      %s94 = sadd.s32 %s93, 1
      %p97 = scmp.eq.s32.totalorder %s17, 1
      %p98 = scmp.ne.s32.totalorder %s93, %s95
      %p99 = scmp.eq.s32.totalorder %s17, 0
      %p100 = por %p98, %p99
      %p101 = scmp.ne.s32.totalorder %s93, %s95
      %p102 = scmp.eq.s32.totalorder %s22, 1
      %p103 = por %p101, %p102
      %p104 = scmp.ne.s32.totalorder %s95, %s96
      %p105 = scmp.eq.s32.totalorder %s22, 0
      %p106 = por %p104, %p105
      %p107 = scmp.ne.s32.totalorder %s95, %s96
      %p108 = scmp.eq.s32.totalorder %s23, 1
      %p109 = por %p107, %p108
      %p111 = scmp.ne.s32.totalorder %s96, %s110
      %p112 = scmp.eq.s32.totalorder %s23, 0
      %p113 = por %p111, %p112
      %s114 = ssub.s32 %s17, %s24
      %p115 = scmp.eq.s32.totalorder %s114, 0
      %s117 = sadd.s32 %s116, 1
      %s118 = scalar_select %p115, %s116, %s117
      %p121 = pneg %p115
      %p122 = scmp.eq.s32.totalorder %s17, 1
      %p123 = por %p121, %p122
      %p124 = scmp.ne.s32.totalorder %s116, %s119
      %p125 = scmp.eq.s32.totalorder %s17, 0
      %p126 = por %p124, %p125
      %p127 = scmp.ne.s32.totalorder %s116, %s119
      %p128 = scmp.eq.s32.totalorder %s22, 1
      %p129 = por %p127, %p128
      %p130 = scmp.ne.s32.totalorder %s119, %s120
      %p131 = scmp.eq.s32.totalorder %s22, 0
      %p132 = por %p130, %p131
      %p133 = scmp.ne.s32.totalorder %s119, %s120
      %p134 = scmp.eq.s32.totalorder %s23, 1
      %p135 = por %p133, %p134
      %p137 = scmp.ne.s32.totalorder %s120, %s136
      %p138 = scmp.eq.s32.totalorder %s23, 0
      %p139 = por %p137, %p138
      %p140 = scmp.le.s32.totalorder 1, %s17
      %p141 = scmp.lt.s32.totalorder %s17, 3
      %p142 = pnand %p140, %p141
      %p143 = pneg %p142
      // Predicated region
      $region9: #{tpu_custom_call.1} parent=5 // pred_check
        _
      $region10: #{tpu_custom_call.1} parent=5 // pred_check_branch
        %145 = sbr.rel (%p142) target = $region12
      $region11: #{tpu_custom_call.1} parent=5 // pred_region
        %s146 = ssub.s32 %s17, 1
        // Predicated region
        $region13: #{tpu_custom_call.1} parent=11 // pred_check
          %p147 = pneg %p64
        $region14: #{tpu_custom_call.1} parent=11 // pred_check_branch
          %149 = sbr.rel (%p147) target = $region16
        $region15: #{tpu_custom_call.1} parent=11 // pred_region
          %s151 = ssub.s32 512, 512
          %152 = vsyncadd [#allocation10], %s151
          %s153 = sshll.u32 [#allocation9], 4
          %s154 = int_to_ptr.vmem [resolvable:$true] %s153
          %159 = dma.hbm_to_vmem [thread:$0]  %s1, 512, %s154, [#allocation10], 64, 64, 4
        $region16: #{tpu_custom_call.1} parent=11 // pred_fallthru
          _
        // Predicated region
        $region17: #{tpu_custom_call.1} parent=11 // pred_check
          %p160 = pneg %p85
        $region18: #{tpu_custom_call.1} parent=11 // pred_check_branch
          %162 = sbr.rel (%p160) target = $region20
        $region19: #{tpu_custom_call.1} parent=11 // pred_region
          %s164 = ssub.s32 512, 512
          %165 = vsyncadd [#allocation10], %s164
          %s166 = sshll.u32 [#allocation11], 4
          %s167 = int_to_ptr.vmem [resolvable:$true] %s166
          %172 = dma.hbm_to_vmem [thread:$0]  %s2, 512, %s167, [#allocation10], 64, 64, 4
        $region20: #{tpu_custom_call.1} parent=11 // pred_fallthru
          _
        // Predicated region
        $region21: #{tpu_custom_call.1} parent=11 // pred_check
          %p173 = pneg %p106
        $region22: #{tpu_custom_call.1} parent=11 // pred_check_branch
          %175 = sbr.rel (%p173) target = $region24
        $region23: #{tpu_custom_call.1} parent=11 // pred_region
          _
        $region24: #{tpu_custom_call.1} parent=11 // pred_fallthru
          _
      $region12: #{tpu_custom_call.1} parent=5 // pred_fallthru
        _
      %p176 = scmp.lt.s32.totalorder %s17, 2
      // Predicated region
      $region25: #{tpu_custom_call.1} parent=5 // pred_check
        %p177 = pneg %p176
      $region26: #{tpu_custom_call.1} parent=5 // pred_check_branch
        %179 = sbr.rel (%p177) target = $region28
      $region27: #{tpu_custom_call.1} parent=5 // pred_region
        // Predicated region
        $region29: #{tpu_custom_call.1} parent=27 // pred_check
          %p180 = pneg %p37
        $region30: #{tpu_custom_call.1} parent=27 // pred_check_branch
          %182 = sbr.rel (%p180) target = $region32
        $region31: #{tpu_custom_call.1} parent=27 // pred_region
          %s183 = sand.u32 %s27, 1
          %s184 = scalar_lea.sflag [#allocation7], %s183
          %s185 = sand.u32 %s27, 1
          %s186 = smul.addr %s185, 64
          %s187 = scalar_lea.vmem [#allocation6], %s186
          %s189 = ssub.s32 1024, 1024
          %190 = vsyncadd %s184, %s189
          %s191 = smul.addr %s17, 128
          %s192 = scalar_lea.hbm %s0, %s191
          %s193 = sshll.u32 %s187, 4
          %s194 = int_to_ptr.vmem [resolvable:$true] %s193
          %199 = dma.hbm_to_vmem [thread:$0]  %s192, 1024, %s194, %s184, 256, 128, 8
        $region32: #{tpu_custom_call.1} parent=27 // pred_fallthru
          _
      $region28: #{tpu_custom_call.1} parent=5 // pred_fallthru
        _
      %p200 = scmp.le.s32.totalorder 1, %s17
      %p201 = scmp.lt.s32.totalorder %s17, 3
      %p202 = pnand %p200, %p201
      %p203 = pneg %p202
      // Predicated region
      $region33: #{tpu_custom_call.1} parent=5 // pred_check
        _
      $region34: #{tpu_custom_call.1} parent=5 // pred_check_branch
        %205 = sbr.rel (%p202) target = $region36
      $region35: #{tpu_custom_call.1} parent=5 // pred_region
        %s206 = ssub.s32 %s17, 1
        %s207 = sand.u32 %s30, 1
        %s208 = scalar_lea.sflag [#allocation7], %s207
        %s209 = sand.u32 %s30, 1
        %s210 = smul.addr %s209, 64
        %s211 = scalar_lea.vmem [#allocation6], %s210
        // Predicated region
        $region37: #{tpu_custom_call.1} parent=35 // pred_check
          %p212 = pneg %p43
        $region38: #{tpu_custom_call.1} parent=35 // pred_check_branch
          %214 = sbr.rel (%p212) target = $region40
        $region39: #{tpu_custom_call.1} parent=35 // pred_region
          %215 = dma.done %s208, 1024
        $region40: #{tpu_custom_call.1} parent=35 // pred_fallthru
          _
        // Predicated region
        $region41: #{tpu_custom_call.1} parent=35 // pred_check
          %p216 = pneg %p64
        $region42: #{tpu_custom_call.1} parent=35 // pred_check_branch
          %218 = sbr.rel (%p216) target = $region44
        $region43: #{tpu_custom_call.1} parent=35 // pred_region
          %219 = dma.done [#allocation10], 512
        $region44: #{tpu_custom_call.1} parent=35 // pred_fallthru
          _
        // Predicated region
        $region45: #{tpu_custom_call.1} parent=35 // pred_check
          %p220 = pneg %p85
        $region46: #{tpu_custom_call.1} parent=35 // pred_check_branch
          %222 = sbr.rel (%p220) target = $region48
        $region47: #{tpu_custom_call.1} parent=35 // pred_region
          %223 = dma.done [#allocation10], 512
        $region48: #{tpu_custom_call.1} parent=35 // pred_fallthru
          _
        %s224 = sand.u32 %s30, 1
        %s225 = scalar_lea.sflag [#allocation7], %s224
        %s226 = sand.u32 %s30, 1
        %s227 = smul.addr %s226, 64
        %s228 = scalar_lea.vmem [#allocation6], %s227
        %p229 = pneg %p43
        %p230 = pneg %p40
        %p231 = pneg %p64
        %p232 = pneg %p61
        %p233 = pneg %p85
        %p234 = pneg %p82
        %p235 = pneg %p106
        %p236 = pneg %p103
        %p237 = pneg %p132
        %p238 = pneg %p129
        %s239 = sand.u32 %s119, 1
        %s240 = scalar_lea.sflag [#allocation8], %s239
        %s241 = sand.u32 %s119, 1
        %s242 = smul.addr %s241, 64
        %s243 = scalar_lea.vmem [#allocation12], %s242
        %v245 = vld [vmem:[%s211] sm:$0xff]
        %v246 = vld [vmem:[%s211 + $0x8] sm:$0xff]
        %v247 = vld [vmem:[%s211 + $0x10] sm:$0xff]
        %v248 = vld [vmem:[%s211 + $0x18] sm:$0xff]
        %v249 = vld [vmem:[%s211 + $0x20] sm:$0xff]
        %v250 = vld [vmem:[%s211 + $0x28] sm:$0xff]
        %v251 = vld [vmem:[%s211 + $0x30] sm:$0xff]
        %v252 = vld [vmem:[%s211 + $0x38] sm:$0xff]
        %v253 = vpack.c.bf16 %v246, %v245
        %v254 = vpack.c.bf16 %v248, %v247
        %v255 = vpack.c.bf16 %v250, %v249
        %v256 = vpack.c.bf16 %v252, %v251
        %v257 = vld [vmem:[#allocation9] sm:$0xf]
        %v258 = vld [vmem:[#allocation9 + $0x4] sm:$0xf]
        %v259 = vld [vmem:[#allocation9 + $0x8] sm:$0xf]
        %v260 = vld [vmem:[#allocation9 + $0xc] sm:$0xf]
        %v261 = vld [vmem:[%s3] sm:$0x1]
        %v263 = vlaneseq
        %v264 = vshrl.u32 %v263, 7
        %v265 = vsub.s32 0, %v264
        %v266 = vrot.slane %v261, %v265
        %v272 = vunpack.c.l.b16 %v257
        %v273 = vunpack.c.l.b16 %v258
        %v274 = vunpack.c.l.b16 %v259
        %v275 = vunpack.c.l.b16 %v260
        %v276 = vpack.c.b16 %v273, %v272
        %v277 = vpack.c.b16 %v275, %v274
        %vm280 = vcmask 261120
        %v282 = vsel %vm280, %v253, 0
        %v285 = vsel %vm280, %v254, 0
        %v288 = vsel %vm280, %v255, 0
        %v291 = vsel %vm280, %v256, 0
        %293 = vmatprep.subr.bf16.mxu0 0
        %294 = vmatpush1.bf16.msra.mxu0 0
        %295 = vmatprep.subr.bf16.mxu0 0
        %296 = vmatpush1.bf16.msra.mxu0 0
        %297 = vmatprep.subr.bf16.mxu0 0
        %298 = vmatpush1.bf16.msra.mxu0 0
        %299 = vmatprep.subr.bf16.mxu0 0
        %300 = vmatpush1.bf16.msra.mxu0 0
        %301 = vmatprep.subr.bf16.mxu0 0
        %302 = vmatpush1.bf16.msra.mxu0 0
        %303 = vmatprep.subr.bf16.mxu0 0
        %304 = vmatpush1.bf16.msra.mxu0 0
        %305 = vmatprep.subr.bf16.mxu0 0
        %306 = vmatpush1.bf16.msra.mxu0 %v277
        %307 = vmatprep.subr.bf16.mxu0 0
        %308 = vmatpush1.bf16.msra.mxu0 %v276
        %309 = vmatprep.subr.bf16.mxu0 0
        %310 = vmatpush2.bf16.msra.mxu0 0
        %311 = vmatprep.subr.bf16.mxu0 0
        %312 = vmatpush2.bf16.msra.mxu0 0
        %313 = vmatprep.subr.bf16.mxu0 0
        %314 = vmatpush2.bf16.msra.mxu0 0
        %315 = vmatprep.subr.bf16.mxu0 0
        %316 = vmatpush2.bf16.msra.mxu0 0
        %317 = vmatprep.subr.bf16.mxu0 0
        %318 = vmatpush2.bf16.msra.mxu0 0
        %319 = vmatprep.subr.bf16.mxu0 0
        %320 = vmatpush2.bf16.msra.mxu0 0
        %321 = vmatprep.subr.bf16.mxu0 0
        %322 = vmatpush2.bf16.msra.mxu0 0
        %323 = vmatprep.subr.bf16.mxu0 0
        %324 = vmatpush2.bf16.msra.mxu0 0
        %325 = vmatprep.mubr.bf16.mxu0 0
        %326 = vmatmul.mubr.bf16.gmra.mxu0 %v282
        %v327 = vpop.f32.mrf.mxu0
        %v328 = vadd.f32 %v266, %v327
        %v329 = vpop.f32.mrf.mxu0
        %v330 = vpop.f32.mrf.mxu0
        %v331 = vadd.f32 %v266, %v330
        %v332 = vpop.f32.mrf.mxu0
        %333 = vmatprep.mubr.bf16.mxu0 0
        %334 = vmatmul.mubr.bf16.gmra.mxu0 %v285
        %v335 = vpop.f32.mrf.mxu0
        %v336 = vadd.f32 %v266, %v335
        %v337 = vpop.f32.mrf.mxu0
        %v338 = vpop.f32.mrf.mxu0
        %v339 = vadd.f32 %v266, %v338
        %v340 = vpop.f32.mrf.mxu0
        %341 = vmatprep.mubr.bf16.mxu0 0
        %342 = vmatmul.mubr.bf16.gmra.mxu0 %v288
        %v343 = vpop.f32.mrf.mxu0
        %v344 = vadd.f32 %v266, %v343
        %v345 = vpop.f32.mrf.mxu0
        %v346 = vpop.f32.mrf.mxu0
        %v347 = vadd.f32 %v266, %v346
        %v348 = vpop.f32.mrf.mxu0
        %349 = vmatprep.mubr.bf16.mxu0 0
        %350 = vmatmul.mubr.bf16.gmra.mxu0 %v291
        %v351 = vpop.f32.mrf.mxu0
        %v352 = vadd.f32 %v266, %v351
        %v353 = vpop.f32.mrf.mxu0
        %v354 = vpop.f32.mrf.mxu0
        %v355 = vadd.f32 %v266, %v354
        %v356 = vpop.f32.mrf.mxu0
        %357 = vdwg.mxu0
        %358 = vst [vmem:[#allocation2] sm:$0xff] %v328
        %359 = vst [vmem:[#allocation2 + $0x8] sm:$0xff] %v331
        %360 = vst [vmem:[#allocation2 + $0x10] sm:$0xff] %v336
        %361 = vst [vmem:[#allocation2 + $0x18] sm:$0xff] %v339
        %362 = vst [vmem:[#allocation2 + $0x20] sm:$0xff] %v344
        %363 = vst [vmem:[#allocation2 + $0x28] sm:$0xff] %v347
        %364 = vst [vmem:[#allocation2 + $0x30] sm:$0xff] %v352
        %365 = vst [vmem:[#allocation2 + $0x38] sm:$0xff] %v355
        %v366 = vld [vmem:[#allocation11] sm:$0xf]
        %v367 = vld [vmem:[#allocation11 + $0x4] sm:$0xf]
        %v368 = vld [vmem:[#allocation11 + $0x8] sm:$0xf]
        %v369 = vld [vmem:[#allocation11 + $0xc] sm:$0xf]
        %370 = vst.msk [vmem:[#allocation4] sm:$0xff] %vm280, 0.0
        %371 = vst.msk [vmem:[#allocation5] sm:$0xff] %vm280, 0.0
        %v372 = vld [vmem:[#allocation2] sm:$0xff]
        %v373 = vld [vmem:[#allocation4] sm:$0xff]
        %v374 = vpack.c.bf16 %v373, %v373
        %v379 = vunpack.c.l.b16 %v366
        %v380 = vunpack.c.l.b16 %v367
        %v381 = vunpack.c.l.b16 %v368
        %v382 = vunpack.c.l.b16 %v369
        %v383 = vpack.c.b16 %v380, %v379
        %v384 = vpack.c.b16 %v382, %v381
        %v388 = vsel %vm280, %v374, 0
        %390 = vmatprep.subr.bf16.mxu0 0
        %391 = vmatpush1.bf16.msra.mxu0 0
        %392 = vmatprep.subr.bf16.mxu0 0
        %393 = vmatpush1.bf16.msra.mxu0 0
        %394 = vmatprep.subr.bf16.mxu0 0
        %395 = vmatpush1.bf16.msra.mxu0 0
        %396 = vmatprep.subr.bf16.mxu0 0
        %397 = vmatpush1.bf16.msra.mxu0 0
        %398 = vmatprep.subr.bf16.mxu0 0
        %399 = vmatpush1.bf16.msra.mxu0 0
        %400 = vmatprep.subr.bf16.mxu0 0
        %401 = vmatpush1.bf16.msra.mxu0 0
        %402 = vmatprep.subr.bf16.mxu0 0
        %403 = vmatpush1.bf16.msra.mxu0 %v384
        %404 = vmatprep.subr.bf16.mxu0 0
        %405 = vmatpush1.bf16.msra.mxu0 %v383
        %406 = vmatprep.subr.bf16.mxu0 0
        %407 = vmatpush2.bf16.msra.mxu0 0
        %408 = vmatprep.subr.bf16.mxu0 0
        %409 = vmatpush2.bf16.msra.mxu0 0
        %410 = vmatprep.subr.bf16.mxu0 0
        %411 = vmatpush2.bf16.msra.mxu0 0
        %412 = vmatprep.subr.bf16.mxu0 0
        %413 = vmatpush2.bf16.msra.mxu0 0
        %414 = vmatprep.subr.bf16.mxu0 0
        %415 = vmatpush2.bf16.msra.mxu0 0
        %416 = vmatprep.subr.bf16.mxu0 0
        %417 = vmatpush2.bf16.msra.mxu0 0
        %418 = vmatprep.subr.bf16.mxu0 0
        %419 = vmatpush2.bf16.msra.mxu0 0
        %420 = vmatprep.subr.bf16.mxu0 0
        %421 = vmatpush2.bf16.msra.mxu0 0
        %422 = vmatprep.mubr.bf16.mxu0 0
        %423 = vmatmul.mubr.bf16.gmra.mxu0 %v388
        %v424 = vpop.f32.mrf.mxu0
        %v425 = vadd.f32 0.0, %v424
        %v426 = vpop.f32.mrf.mxu0
        %v427 = vpop.f32.mrf.mxu0
        %v428 = vpop.f32.mrf.mxu0
        %429 = vdwg.mxu0
        %v430 = vadd.f32 %v372, %v425
        %v431 = vxor.u32 %v430, 2147483648
        %v432 = vmul.f32 %v431, 1.442695
        %v433 = vpow.pop %v432
        %v434 = vadd.f32 %v433, 1.0
        %v435 = vrcp.pop %v434
        %v436 = vmul.f32 1.0, %v435
        %v437 = vtanh.pop %v430
        %v438 = vld [vmem:[#allocation5] sm:$0xff]
        %440 = vrot.lane.b32.xlu0 %v438, 32
        %v441 = vpop.permute.xlu0 %440
        %v443 = vmul.f32 %v436, %v441
        %445 = vrot.lane.b32.xlu0 %v437, 64
        %v446 = vpop.permute.xlu0 %445
        %v448 = vmul.f32 %v436, %v446
        %450 = vrot.lane.b32.xlu0 %v448, 32
        %v451 = vpop.permute.xlu0 %450
        %v453 = vadd.f32 %v443, %v451
        %v454 = vtanh.pop %v453
        %456 = vrot.lane.b32.xlu0 %v454, 64
        %v457 = vpop.permute.xlu0 %456
        %v459 = vmul.f32 %v436, %v457
        %461 = vrot.lane.b32.xlu0 %v453, 96
        %v462 = vpop.permute.xlu0 %461
        %464 = vst.msk [vmem:[#allocation5] sm:$0xff] %vm280, %v462
        %466 = vrot.lane.b32.xlu0 %v459, 32
        %v467 = vpop.permute.xlu0 %466
        %469 = vst.msk [vmem:[#allocation4] sm:$0xff] %vm280, %v467
        %470 = vst.msk [vmem:[#allocation3] sm:$0xff] %vm280, %v467
        %s471 = scalar_lea.vmem [#allocation2], 8
        %v472 = vld [vmem:[%s471] sm:$0xff]
        %v473 = vld [vmem:[#allocation4] sm:$0xff]
        %v474 = vpack.c.bf16 %v473, %v473
        %v476 = vsel %vm280, %v474, 0
        %478 = vmatprep.subr.bf16.mxu0 0
        %479 = vmatpush1.bf16.msra.mxu0 0
        %480 = vmatprep.subr.bf16.mxu0 0
        %481 = vmatpush1.bf16.msra.mxu0 0
        %482 = vmatprep.subr.bf16.mxu0 0
        %483 = vmatpush1.bf16.msra.mxu0 0
        %484 = vmatprep.subr.bf16.mxu0 0
        %485 = vmatpush1.bf16.msra.mxu0 0
        %486 = vmatprep.subr.bf16.mxu0 0
        %487 = vmatpush1.bf16.msra.mxu0 0
        %488 = vmatprep.subr.bf16.mxu0 0
        %489 = vmatpush1.bf16.msra.mxu0 0
        %490 = vmatprep.subr.bf16.mxu0 0
        %491 = vmatpush1.bf16.msra.mxu0 %v384
        %492 = vmatprep.subr.bf16.mxu0 0
        %493 = vmatpush1.bf16.msra.mxu0 %v383
        %494 = vmatprep.subr.bf16.mxu0 0
        %495 = vmatpush2.bf16.msra.mxu0 0
        %496 = vmatprep.subr.bf16.mxu0 0
        %497 = vmatpush2.bf16.msra.mxu0 0
        %498 = vmatprep.subr.bf16.mxu0 0
        %499 = vmatpush2.bf16.msra.mxu0 0
        %500 = vmatprep.subr.bf16.mxu0 0
        %501 = vmatpush2.bf16.msra.mxu0 0
        %502 = vmatprep.subr.bf16.mxu0 0
        %503 = vmatpush2.bf16.msra.mxu0 0
        %504 = vmatprep.subr.bf16.mxu0 0
        %505 = vmatpush2.bf16.msra.mxu0 0
        %506 = vmatprep.subr.bf16.mxu0 0
        %507 = vmatpush2.bf16.msra.mxu0 0
        %508 = vmatprep.subr.bf16.mxu0 0
        %509 = vmatpush2.bf16.msra.mxu0 0
        %510 = vmatprep.mubr.bf16.mxu0 0
        %511 = vmatmul.mubr.bf16.gmra.mxu0 %v476
        %v512 = vpop.f32.mrf.mxu0
        %v513 = vadd.f32 0.0, %v512
        %v514 = vpop.f32.mrf.mxu0
        %v515 = vpop.f32.mrf.mxu0
        %v516 = vpop.f32.mrf.mxu0
        %517 = vdwg.mxu0
        %v518 = vadd.f32 %v472, %v513
        %v519 = vxor.u32 %v518, 2147483648
        %v520 = vmul.f32 %v519, 1.442695
        %v521 = vpow.pop %v520
        %v522 = vadd.f32 %v521, 1.0
        %v523 = vrcp.pop %v522
        %v524 = vmul.f32 1.0, %v523
        %v525 = vtanh.pop %v518
        %v526 = vld [vmem:[#allocation5] sm:$0xff]
        %528 = vrot.lane.b32.xlu0 %v526, 32
        %v529 = vpop.permute.xlu0 %528
        %v531 = vmul.f32 %v524, %v529
        %533 = vrot.lane.b32.xlu0 %v525, 64
        %v534 = vpop.permute.xlu0 %533
        %v536 = vmul.f32 %v524, %v534
        %538 = vrot.lane.b32.xlu0 %v536, 32
        %v539 = vpop.permute.xlu0 %538
        %v541 = vadd.f32 %v531, %v539
        %v542 = vtanh.pop %v541
        %544 = vrot.lane.b32.xlu0 %v542, 64
        %v545 = vpop.permute.xlu0 %544
        %v547 = vmul.f32 %v524, %v545
        %549 = vrot.lane.b32.xlu0 %v541, 96
        %v550 = vpop.permute.xlu0 %549
        %552 = vst.msk [vmem:[#allocation5] sm:$0xff] %vm280, %v550
        %554 = vrot.lane.b32.xlu0 %v547, 32
        %v555 = vpop.permute.xlu0 %554
        %557 = vst.msk [vmem:[#allocation4] sm:$0xff] %vm280, %v555
        %s558 = scalar_lea.vmem [#allocation3], 8
        %559 = vst.msk [vmem:[%s558] sm:$0xff] %vm280, %v555
        %s560 = scalar_lea.vmem [#allocation2], 16
        %v561 = vld [vmem:[%s560] sm:$0xff]
        %v562 = vld [vmem:[#allocation4] sm:$0xff]
        %v563 = vpack.c.bf16 %v562, %v562
        %v565 = vsel %vm280, %v563, 0
        %567 = vmatprep.subr.bf16.mxu0 0
        %568 = vmatpush1.bf16.msra.mxu0 0
        %569 = vmatprep.subr.bf16.mxu0 0
        %570 = vmatpush1.bf16.msra.mxu0 0
        %571 = vmatprep.subr.bf16.mxu0 0
        %572 = vmatpush1.bf16.msra.mxu0 0
        %573 = vmatprep.subr.bf16.mxu0 0
        %574 = vmatpush1.bf16.msra.mxu0 0
        %575 = vmatprep.subr.bf16.mxu0 0
        %576 = vmatpush1.bf16.msra.mxu0 0
        %577 = vmatprep.subr.bf16.mxu0 0
        %578 = vmatpush1.bf16.msra.mxu0 0
        %579 = vmatprep.subr.bf16.mxu0 0
        %580 = vmatpush1.bf16.msra.mxu0 %v384
        %581 = vmatprep.subr.bf16.mxu0 0
        %582 = vmatpush1.bf16.msra.mxu0 %v383
        %583 = vmatprep.subr.bf16.mxu0 0
        %584 = vmatpush2.bf16.msra.mxu0 0
        %585 = vmatprep.subr.bf16.mxu0 0
        %586 = vmatpush2.bf16.msra.mxu0 0
        %587 = vmatprep.subr.bf16.mxu0 0
        %588 = vmatpush2.bf16.msra.mxu0 0
        %589 = vmatprep.subr.bf16.mxu0 0
        %590 = vmatpush2.bf16.msra.mxu0 0
        %591 = vmatprep.subr.bf16.mxu0 0
        %592 = vmatpush2.bf16.msra.mxu0 0
        %593 = vmatprep.subr.bf16.mxu0 0
        %594 = vmatpush2.bf16.msra.mxu0 0
        %595 = vmatprep.subr.bf16.mxu0 0
        %596 = vmatpush2.bf16.msra.mxu0 0
        %597 = vmatprep.subr.bf16.mxu0 0
        %598 = vmatpush2.bf16.msra.mxu0 0
        %599 = vmatprep.mubr.bf16.mxu0 0
        %600 = vmatmul.mubr.bf16.gmra.mxu0 %v565
        %v601 = vpop.f32.mrf.mxu0
        %v602 = vadd.f32 0.0, %v601
        %v603 = vpop.f32.mrf.mxu0
        %v604 = vpop.f32.mrf.mxu0
        %v605 = vpop.f32.mrf.mxu0
        %606 = vdwg.mxu0
        %v607 = vadd.f32 %v561, %v602
        %v608 = vxor.u32 %v607, 2147483648
        %v609 = vmul.f32 %v608, 1.442695
        %v610 = vpow.pop %v609
        %v611 = vadd.f32 %v610, 1.0
        %v612 = vrcp.pop %v611
        %v613 = vmul.f32 1.0, %v612
        %v614 = vtanh.pop %v607
        %v615 = vld [vmem:[#allocation5] sm:$0xff]
        %617 = vrot.lane.b32.xlu0 %v615, 32
        %v618 = vpop.permute.xlu0 %617
        %v620 = vmul.f32 %v613, %v618
        %622 = vrot.lane.b32.xlu0 %v614, 64
        %v623 = vpop.permute.xlu0 %622
        %v625 = vmul.f32 %v613, %v623
        %627 = vrot.lane.b32.xlu0 %v625, 32
        %v628 = vpop.permute.xlu0 %627
        %v630 = vadd.f32 %v620, %v628
        %v631 = vtanh.pop %v630
        %633 = vrot.lane.b32.xlu0 %v631, 64
        %v634 = vpop.permute.xlu0 %633
        %v636 = vmul.f32 %v613, %v634
        %638 = vrot.lane.b32.xlu0 %v630, 96
        %v639 = vpop.permute.xlu0 %638
        %641 = vst.msk [vmem:[#allocation5] sm:$0xff] %vm280, %v639
        %643 = vrot.lane.b32.xlu0 %v636, 32
        %v644 = vpop.permute.xlu0 %643
        %646 = vst.msk [vmem:[#allocation4] sm:$0xff] %vm280, %v644
        %s647 = scalar_lea.vmem [#allocation3], 16
        %648 = vst.msk [vmem:[%s647] sm:$0xff] %vm280, %v644
        %s649 = scalar_lea.vmem [#allocation2], 24
        %v650 = vld [vmem:[%s649] sm:$0xff]
        %v651 = vld [vmem:[#allocation4] sm:$0xff]
        %v652 = vpack.c.bf16 %v651, %v651
        %v654 = vsel %vm280, %v652, 0
        %656 = vmatprep.subr.bf16.mxu0 0
        %657 = vmatpush1.bf16.msra.mxu0 0
        %658 = vmatprep.subr.bf16.mxu0 0
        %659 = vmatpush1.bf16.msra.mxu0 0
        %660 = vmatprep.subr.bf16.mxu0 0
        %661 = vmatpush1.bf16.msra.mxu0 0
        %662 = vmatprep.subr.bf16.mxu0 0
        %663 = vmatpush1.bf16.msra.mxu0 0
        %664 = vmatprep.subr.bf16.mxu0 0
        %665 = vmatpush1.bf16.msra.mxu0 0
        %666 = vmatprep.subr.bf16.mxu0 0
        %667 = vmatpush1.bf16.msra.mxu0 0
        %668 = vmatprep.subr.bf16.mxu0 0
        %669 = vmatpush1.bf16.msra.mxu0 %v384
        %670 = vmatprep.subr.bf16.mxu0 0
        %671 = vmatpush1.bf16.msra.mxu0 %v383
        %672 = vmatprep.subr.bf16.mxu0 0
        %673 = vmatpush2.bf16.msra.mxu0 0
        %674 = vmatprep.subr.bf16.mxu0 0
        %675 = vmatpush2.bf16.msra.mxu0 0
        %676 = vmatprep.subr.bf16.mxu0 0
        %677 = vmatpush2.bf16.msra.mxu0 0
        %678 = vmatprep.subr.bf16.mxu0 0
        %679 = vmatpush2.bf16.msra.mxu0 0
        %680 = vmatprep.subr.bf16.mxu0 0
        %681 = vmatpush2.bf16.msra.mxu0 0
        %682 = vmatprep.subr.bf16.mxu0 0
        %683 = vmatpush2.bf16.msra.mxu0 0
        %684 = vmatprep.subr.bf16.mxu0 0
        %685 = vmatpush2.bf16.msra.mxu0 0
        %686 = vmatprep.subr.bf16.mxu0 0
        %687 = vmatpush2.bf16.msra.mxu0 0
        %688 = vmatprep.mubr.bf16.mxu0 0
        %689 = vmatmul.mubr.bf16.gmra.mxu0 %v654
        %v690 = vpop.f32.mrf.mxu0
        %v691 = vadd.f32 0.0, %v690
        %v692 = vpop.f32.mrf.mxu0
        %v693 = vpop.f32.mrf.mxu0
        %v694 = vpop.f32.mrf.mxu0
        %695 = vdwg.mxu0
        %v696 = vadd.f32 %v650, %v691
        %v697 = vxor.u32 %v696, 2147483648
        %v698 = vmul.f32 %v697, 1.442695
        %v699 = vpow.pop %v698
        %v700 = vadd.f32 %v699, 1.0
        %v701 = vrcp.pop %v700
        %v702 = vmul.f32 1.0, %v701
        %v703 = vtanh.pop %v696
        %v704 = vld [vmem:[#allocation5] sm:$0xff]
        %706 = vrot.lane.b32.xlu0 %v704, 32
        %v707 = vpop.permute.xlu0 %706
        %v709 = vmul.f32 %v702, %v707
        %711 = vrot.lane.b32.xlu0 %v703, 64
        %v712 = vpop.permute.xlu0 %711
        %v714 = vmul.f32 %v702, %v712
        %716 = vrot.lane.b32.xlu0 %v714, 32
        %v717 = vpop.permute.xlu0 %716
        %v719 = vadd.f32 %v709, %v717
        %v720 = vtanh.pop %v719
        %722 = vrot.lane.b32.xlu0 %v720, 64
        %v723 = vpop.permute.xlu0 %722
        %v725 = vmul.f32 %v702, %v723
        %727 = vrot.lane.b32.xlu0 %v719, 96
        %v728 = vpop.permute.xlu0 %727
        %730 = vst.msk [vmem:[#allocation5] sm:$0xff] %vm280, %v728
        %732 = vrot.lane.b32.xlu0 %v725, 32
        %v733 = vpop.permute.xlu0 %732
        %735 = vst.msk [vmem:[#allocation4] sm:$0xff] %vm280, %v733
        %s736 = scalar_lea.vmem [#allocation3], 24
        %737 = vst.msk [vmem:[%s736] sm:$0xff] %vm280, %v733
        %s738 = scalar_lea.vmem [#allocation2], 32
        %v739 = vld [vmem:[%s738] sm:$0xff]
        %v740 = vld [vmem:[#allocation4] sm:$0xff]
        %v741 = vpack.c.bf16 %v740, %v740
        %v743 = vsel %vm280, %v741, 0
        %745 = vmatprep.subr.bf16.mxu0 0
        %746 = vmatpush1.bf16.msra.mxu0 0
        %747 = vmatprep.subr.bf16.mxu0 0
        %748 = vmatpush1.bf16.msra.mxu0 0
        %749 = vmatprep.subr.bf16.mxu0 0
        %750 = vmatpush1.bf16.msra.mxu0 0
        %751 = vmatprep.subr.bf16.mxu0 0
        %752 = vmatpush1.bf16.msra.mxu0 0
        %753 = vmatprep.subr.bf16.mxu0 0
        %754 = vmatpush1.bf16.msra.mxu0 0
        %755 = vmatprep.subr.bf16.mxu0 0
        %756 = vmatpush1.bf16.msra.mxu0 0
        %757 = vmatprep.subr.bf16.mxu0 0
        %758 = vmatpush1.bf16.msra.mxu0 %v384
        %759 = vmatprep.subr.bf16.mxu0 0
        %760 = vmatpush1.bf16.msra.mxu0 %v383
        %761 = vmatprep.subr.bf16.mxu0 0
        %762 = vmatpush2.bf16.msra.mxu0 0
        %763 = vmatprep.subr.bf16.mxu0 0
        %764 = vmatpush2.bf16.msra.mxu0 0
        %765 = vmatprep.subr.bf16.mxu0 0
        %766 = vmatpush2.bf16.msra.mxu0 0
        %767 = vmatprep.subr.bf16.mxu0 0
        %768 = vmatpush2.bf16.msra.mxu0 0
        %769 = vmatprep.subr.bf16.mxu0 0
        %770 = vmatpush2.bf16.msra.mxu0 0
        %771 = vmatprep.subr.bf16.mxu0 0
        %772 = vmatpush2.bf16.msra.mxu0 0
        %773 = vmatprep.subr.bf16.mxu0 0
        %774 = vmatpush2.bf16.msra.mxu0 0
        %775 = vmatprep.subr.bf16.mxu0 0
        %776 = vmatpush2.bf16.msra.mxu0 0
        %777 = vmatprep.mubr.bf16.mxu0 0
        %778 = vmatmul.mubr.bf16.gmra.mxu0 %v743
        %v779 = vpop.f32.mrf.mxu0
        %v780 = vadd.f32 0.0, %v779
        %v781 = vpop.f32.mrf.mxu0
        %v782 = vpop.f32.mrf.mxu0
        %v783 = vpop.f32.mrf.mxu0
        %784 = vdwg.mxu0
        %v785 = vadd.f32 %v739, %v780
        %v786 = vxor.u32 %v785, 2147483648
        %v787 = vmul.f32 %v786, 1.442695
        %v788 = vpow.pop %v787
        %v789 = vadd.f32 %v788, 1.0
        %v790 = vrcp.pop %v789
        %v791 = vmul.f32 1.0, %v790
        %v792 = vtanh.pop %v785
        %v793 = vld [vmem:[#allocation5] sm:$0xff]
        %795 = vrot.lane.b32.xlu0 %v793, 32
        %v796 = vpop.permute.xlu0 %795
        %v798 = vmul.f32 %v791, %v796
        %800 = vrot.lane.b32.xlu0 %v792, 64
        %v801 = vpop.permute.xlu0 %800
        %v803 = vmul.f32 %v791, %v801
        %805 = vrot.lane.b32.xlu0 %v803, 32
        %v806 = vpop.permute.xlu0 %805
        %v808 = vadd.f32 %v798, %v806
        %v809 = vtanh.pop %v808
        %811 = vrot.lane.b32.xlu0 %v809, 64
        %v812 = vpop.permute.xlu0 %811
        %v814 = vmul.f32 %v791, %v812
        %816 = vrot.lane.b32.xlu0 %v808, 96
        %v817 = vpop.permute.xlu0 %816
        %819 = vst.msk [vmem:[#allocation5] sm:$0xff] %vm280, %v817
        %821 = vrot.lane.b32.xlu0 %v814, 32
        %v822 = vpop.permute.xlu0 %821
        %824 = vst.msk [vmem:[#allocation4] sm:$0xff] %vm280, %v822
        %s825 = scalar_lea.vmem [#allocation3], 32
        %826 = vst.msk [vmem:[%s825] sm:$0xff] %vm280, %v822
        %s827 = scalar_lea.vmem [#allocation2], 40
        %v828 = vld [vmem:[%s827] sm:$0xff]
        %v829 = vld [vmem:[#allocation4] sm:$0xff]
        %v830 = vpack.c.bf16 %v829, %v829
        %v832 = vsel %vm280, %v830, 0
        %834 = vmatprep.subr.bf16.mxu0 0
        %835 = vmatpush1.bf16.msra.mxu0 0
        %836 = vmatprep.subr.bf16.mxu0 0
        %837 = vmatpush1.bf16.msra.mxu0 0
        %838 = vmatprep.subr.bf16.mxu0 0
        %839 = vmatpush1.bf16.msra.mxu0 0
        %840 = vmatprep.subr.bf16.mxu0 0
        %841 = vmatpush1.bf16.msra.mxu0 0
        %842 = vmatprep.subr.bf16.mxu0 0
        %843 = vmatpush1.bf16.msra.mxu0 0
        %844 = vmatprep.subr.bf16.mxu0 0
        %845 = vmatpush1.bf16.msra.mxu0 0
        %846 = vmatprep.subr.bf16.mxu0 0
        %847 = vmatpush1.bf16.msra.mxu0 %v384
        %848 = vmatprep.subr.bf16.mxu0 0
        %849 = vmatpush1.bf16.msra.mxu0 %v383
        %850 = vmatprep.subr.bf16.mxu0 0
        %851 = vmatpush2.bf16.msra.mxu0 0
        %852 = vmatprep.subr.bf16.mxu0 0
        %853 = vmatpush2.bf16.msra.mxu0 0
        %854 = vmatprep.subr.bf16.mxu0 0
        %855 = vmatpush2.bf16.msra.mxu0 0
        %856 = vmatprep.subr.bf16.mxu0 0
        %857 = vmatpush2.bf16.msra.mxu0 0
        %858 = vmatprep.subr.bf16.mxu0 0
        %859 = vmatpush2.bf16.msra.mxu0 0
        %860 = vmatprep.subr.bf16.mxu0 0
        %861 = vmatpush2.bf16.msra.mxu0 0
        %862 = vmatprep.subr.bf16.mxu0 0
        %863 = vmatpush2.bf16.msra.mxu0 0
        %864 = vmatprep.subr.bf16.mxu0 0
        %865 = vmatpush2.bf16.msra.mxu0 0
        %866 = vmatprep.mubr.bf16.mxu0 0
        %867 = vmatmul.mubr.bf16.gmra.mxu0 %v832
        %v868 = vpop.f32.mrf.mxu0
        %v869 = vadd.f32 0.0, %v868
        %v870 = vpop.f32.mrf.mxu0
        %v871 = vpop.f32.mrf.mxu0
        %v872 = vpop.f32.mrf.mxu0
        %873 = vdwg.mxu0
        %v874 = vadd.f32 %v828, %v869
        %v875 = vxor.u32 %v874, 2147483648
        %v876 = vmul.f32 %v875, 1.442695
        %v877 = vpow.pop %v876
        %v878 = vadd.f32 %v877, 1.0
        %v879 = vrcp.pop %v878
        %v880 = vmul.f32 1.0, %v879
        %v881 = vtanh.pop %v874
        %v882 = vld [vmem:[#allocation5] sm:$0xff]
        %884 = vrot.lane.b32.xlu0 %v882, 32
        %v885 = vpop.permute.xlu0 %884
        %v887 = vmul.f32 %v880, %v885
        %889 = vrot.lane.b32.xlu0 %v881, 64
        %v890 = vpop.permute.xlu0 %889
        %v892 = vmul.f32 %v880, %v890
        %894 = vrot.lane.b32.xlu0 %v892, 32
        %v895 = vpop.permute.xlu0 %894
        %v897 = vadd.f32 %v887, %v895
        %v898 = vtanh.pop %v897
        %900 = vrot.lane.b32.xlu0 %v898, 64
        %v901 = vpop.permute.xlu0 %900
        %v903 = vmul.f32 %v880, %v901
        %905 = vrot.lane.b32.xlu0 %v897, 96
        %v906 = vpop.permute.xlu0 %905
        %908 = vst.msk [vmem:[#allocation5] sm:$0xff] %vm280, %v906
        %910 = vrot.lane.b32.xlu0 %v903, 32
        %v911 = vpop.permute.xlu0 %910
        %913 = vst.msk [vmem:[#allocation4] sm:$0xff] %vm280, %v911
        %s914 = scalar_lea.vmem [#allocation3], 40
        %915 = vst.msk [vmem:[%s914] sm:$0xff] %vm280, %v911
        %s916 = scalar_lea.vmem [#allocation2], 48
        %v917 = vld [vmem:[%s916] sm:$0xff]
        %v918 = vld [vmem:[#allocation4] sm:$0xff]
        %v919 = vpack.c.bf16 %v918, %v918
        %v921 = vsel %vm280, %v919, 0
        %923 = vmatprep.subr.bf16.mxu0 0
        %924 = vmatpush1.bf16.msra.mxu0 0
        %925 = vmatprep.subr.bf16.mxu0 0
        %926 = vmatpush1.bf16.msra.mxu0 0
        %927 = vmatprep.subr.bf16.mxu0 0
        %928 = vmatpush1.bf16.msra.mxu0 0
        %929 = vmatprep.subr.bf16.mxu0 0
        %930 = vmatpush1.bf16.msra.mxu0 0
        %931 = vmatprep.subr.bf16.mxu0 0
        %932 = vmatpush1.bf16.msra.mxu0 0
        %933 = vmatprep.subr.bf16.mxu0 0
        %934 = vmatpush1.bf16.msra.mxu0 0
        %935 = vmatprep.subr.bf16.mxu0 0
        %936 = vmatpush1.bf16.msra.mxu0 %v384
        %937 = vmatprep.subr.bf16.mxu0 0
        %938 = vmatpush1.bf16.msra.mxu0 %v383
        %939 = vmatprep.subr.bf16.mxu0 0
        %940 = vmatpush2.bf16.msra.mxu0 0
        %941 = vmatprep.subr.bf16.mxu0 0
        %942 = vmatpush2.bf16.msra.mxu0 0
        %943 = vmatprep.subr.bf16.mxu0 0
        %944 = vmatpush2.bf16.msra.mxu0 0
        %945 = vmatprep.subr.bf16.mxu0 0
        %946 = vmatpush2.bf16.msra.mxu0 0
        %947 = vmatprep.subr.bf16.mxu0 0
        %948 = vmatpush2.bf16.msra.mxu0 0
        %949 = vmatprep.subr.bf16.mxu0 0
        %950 = vmatpush2.bf16.msra.mxu0 0
        %951 = vmatprep.subr.bf16.mxu0 0
        %952 = vmatpush2.bf16.msra.mxu0 0
        %953 = vmatprep.subr.bf16.mxu0 0
        %954 = vmatpush2.bf16.msra.mxu0 0
        %955 = vmatprep.mubr.bf16.mxu0 0
        %956 = vmatmul.mubr.bf16.gmra.mxu0 %v921
        %v957 = vpop.f32.mrf.mxu0
        %v958 = vadd.f32 0.0, %v957
        %v959 = vpop.f32.mrf.mxu0
        %v960 = vpop.f32.mrf.mxu0
        %v961 = vpop.f32.mrf.mxu0
        %962 = vdwg.mxu0
        %v963 = vadd.f32 %v917, %v958
        %v964 = vxor.u32 %v963, 2147483648
        %v965 = vmul.f32 %v964, 1.442695
        %v966 = vpow.pop %v965
        %v967 = vadd.f32 %v966, 1.0
        %v968 = vrcp.pop %v967
        %v969 = vmul.f32 1.0, %v968
        %v970 = vtanh.pop %v963
        %v971 = vld [vmem:[#allocation5] sm:$0xff]
        %973 = vrot.lane.b32.xlu0 %v971, 32
        %v974 = vpop.permute.xlu0 %973
        %v976 = vmul.f32 %v969, %v974
        %978 = vrot.lane.b32.xlu0 %v970, 64
        %v979 = vpop.permute.xlu0 %978
        %v981 = vmul.f32 %v969, %v979
        %983 = vrot.lane.b32.xlu0 %v981, 32
        %v984 = vpop.permute.xlu0 %983
        %v986 = vadd.f32 %v976, %v984
        %v987 = vtanh.pop %v986
        %989 = vrot.lane.b32.xlu0 %v987, 64
        %v990 = vpop.permute.xlu0 %989
        %v992 = vmul.f32 %v969, %v990
        %994 = vrot.lane.b32.xlu0 %v986, 96
        %v995 = vpop.permute.xlu0 %994
        %997 = vst.msk [vmem:[#allocation5] sm:$0xff] %vm280, %v995
        %999 = vrot.lane.b32.xlu0 %v992, 32
        %v1000 = vpop.permute.xlu0 %999
        %1002 = vst.msk [vmem:[#allocation4] sm:$0xff] %vm280, %v1000
        %s1003 = scalar_lea.vmem [#allocation3], 48
        %1004 = vst.msk [vmem:[%s1003] sm:$0xff] %vm280, %v1000
        %s1005 = scalar_lea.vmem [#allocation2], 56
        %v1006 = vld [vmem:[%s1005] sm:$0xff]
        %v1007 = vld [vmem:[#allocation4] sm:$0xff]
        %v1008 = vpack.c.bf16 %v1007, %v1007
        %v1010 = vsel %vm280, %v1008, 0
        %1012 = vmatprep.subr.bf16.mxu0 0
        %1013 = vmatpush1.bf16.msra.mxu0 0
        %1014 = vmatprep.subr.bf16.mxu0 0
        %1015 = vmatpush1.bf16.msra.mxu0 0
        %1016 = vmatprep.subr.bf16.mxu0 0
        %1017 = vmatpush1.bf16.msra.mxu0 0
        %1018 = vmatprep.subr.bf16.mxu0 0
        %1019 = vmatpush1.bf16.msra.mxu0 0
        %1020 = vmatprep.subr.bf16.mxu0 0
        %1021 = vmatpush1.bf16.msra.mxu0 0
        %1022 = vmatprep.subr.bf16.mxu0 0
        %1023 = vmatpush1.bf16.msra.mxu0 0
        %1024 = vmatprep.subr.bf16.mxu0 0
        %1025 = vmatpush1.bf16.msra.mxu0 %v384
        %1026 = vmatprep.subr.bf16.mxu0 0
        %1027 = vmatpush1.bf16.msra.mxu0 %v383
        %1028 = vmatprep.subr.bf16.mxu0 0
        %1029 = vmatpush2.bf16.msra.mxu0 0
        %1030 = vmatprep.subr.bf16.mxu0 0
        %1031 = vmatpush2.bf16.msra.mxu0 0
        %1032 = vmatprep.subr.bf16.mxu0 0
        %1033 = vmatpush2.bf16.msra.mxu0 0
        %1034 = vmatprep.subr.bf16.mxu0 0
        %1035 = vmatpush2.bf16.msra.mxu0 0
        %1036 = vmatprep.subr.bf16.mxu0 0
        %1037 = vmatpush2.bf16.msra.mxu0 0
        %1038 = vmatprep.subr.bf16.mxu0 0
        %1039 = vmatpush2.bf16.msra.mxu0 0
        %1040 = vmatprep.subr.bf16.mxu0 0
        %1041 = vmatpush2.bf16.msra.mxu0 0
        %1042 = vmatprep.subr.bf16.mxu0 0
        %1043 = vmatpush2.bf16.msra.mxu0 0
        %1044 = vmatprep.mubr.bf16.mxu0 0
        %1045 = vmatmul.mubr.bf16.gmra.mxu0 %v1010
        %v1046 = vpop.f32.mrf.mxu0
        %v1047 = vadd.f32 0.0, %v1046
        %v1048 = vpop.f32.mrf.mxu0
        %v1049 = vpop.f32.mrf.mxu0
        %v1050 = vpop.f32.mrf.mxu0
        %1051 = vdwg.mxu0
        %v1052 = vadd.f32 %v1006, %v1047
        %v1053 = vxor.u32 %v1052, 2147483648
        %v1054 = vmul.f32 %v1053, 1.442695
        %v1055 = vpow.pop %v1054
        %v1056 = vadd.f32 %v1055, 1.0
        %v1057 = vrcp.pop %v1056
        %v1058 = vmul.f32 1.0, %v1057
        %v1059 = vtanh.pop %v1052
        %v1060 = vld [vmem:[#allocation5] sm:$0xff]
        %1062 = vrot.lane.b32.xlu0 %v1060, 32
        %v1063 = vpop.permute.xlu0 %1062
        %v1065 = vmul.f32 %v1058, %v1063
        %1067 = vrot.lane.b32.xlu0 %v1059, 64
        %v1068 = vpop.permute.xlu0 %1067
        %v1070 = vmul.f32 %v1058, %v1068
        %1072 = vrot.lane.b32.xlu0 %v1070, 32
        %v1073 = vpop.permute.xlu0 %1072
        %v1075 = vadd.f32 %v1065, %v1073
        %v1076 = vtanh.pop %v1075
        %1078 = vrot.lane.b32.xlu0 %v1076, 64
        %v1079 = vpop.permute.xlu0 %1078
        %v1081 = vmul.f32 %v1058, %v1079
        %1083 = vrot.lane.b32.xlu0 %v1075, 96
        %v1084 = vpop.permute.xlu0 %1083
        %1086 = vst.msk [vmem:[#allocation5] sm:$0xff] %vm280, %v1084
        %1088 = vrot.lane.b32.xlu0 %v1081, 32
        %v1089 = vpop.permute.xlu0 %1088
        %1091 = vst.msk [vmem:[#allocation4] sm:$0xff] %vm280, %v1089
        %s1092 = scalar_lea.vmem [#allocation3], 56
        %1093 = vst.msk [vmem:[%s1092] sm:$0xff] %vm280, %v1089
        %v1094 = vld [vmem:[#allocation3] sm:$0xff]
        %v1095 = vld [vmem:[#allocation3 + $0x8] sm:$0xff]
        %v1096 = vld [vmem:[#allocation3 + $0x10] sm:$0xff]
        %v1097 = vld [vmem:[#allocation3 + $0x18] sm:$0xff]
        %v1098 = vld [vmem:[#allocation3 + $0x20] sm:$0xff]
        %v1099 = vld [vmem:[#allocation3 + $0x28] sm:$0xff]
        %v1100 = vld [vmem:[#allocation3 + $0x30] sm:$0xff]
        %v1101 = vld [vmem:[#allocation3 + $0x38] sm:$0xff]
        %v1102 = vpack.c.bf16 %v1095, %v1094
        %v1103 = vpack.c.bf16 %v1097, %v1096
        %v1104 = vpack.c.bf16 %v1099, %v1098
        %v1105 = vpack.c.bf16 %v1101, %v1100
        %s1106 = scalar_lea.vmem [#allocation9], 16
        %v1107 = vld [vmem:[%s1106] sm:$0xf]
        %v1108 = vld [vmem:[%s1106 + $0x4] sm:$0xf]
        %v1109 = vld [vmem:[%s1106 + $0x8] sm:$0xf]
        %v1110 = vld [vmem:[%s1106 + $0xc] sm:$0xf]
        %s1111 = scalar_lea.vmem %s3, 1
        %v1112 = vld [vmem:[%s1111] sm:$0x1]
        %v1114 = vlaneseq
        %v1115 = vshrl.u32 %v1114, 7
        %v1116 = vsub.s32 0, %v1115
        %v1117 = vrot.slane %v1112, %v1116
        %v1123 = vunpack.c.l.b16 %v1107
        %v1124 = vunpack.c.l.b16 %v1108
        %v1125 = vunpack.c.l.b16 %v1109
        %v1126 = vunpack.c.l.b16 %v1110
        %v1127 = vpack.c.b16 %v1124, %v1123
        %v1128 = vpack.c.b16 %v1126, %v1125
        %v1132 = vsel %vm280, %v1102, 0
        %v1135 = vsel %vm280, %v1103, 0
        %v1138 = vsel %vm280, %v1104, 0
        %v1141 = vsel %vm280, %v1105, 0
        %1143 = vmatprep.subr.bf16.mxu0 0
        %1144 = vmatpush1.bf16.msra.mxu0 0
        %1145 = vmatprep.subr.bf16.mxu0 0
        %1146 = vmatpush1.bf16.msra.mxu0 0
        %1147 = vmatprep.subr.bf16.mxu0 0
        %1148 = vmatpush1.bf16.msra.mxu0 0
        %1149 = vmatprep.subr.bf16.mxu0 0
        %1150 = vmatpush1.bf16.msra.mxu0 0
        %1151 = vmatprep.subr.bf16.mxu0 0
        %1152 = vmatpush1.bf16.msra.mxu0 0
        %1153 = vmatprep.subr.bf16.mxu0 0
        %1154 = vmatpush1.bf16.msra.mxu0 0
        %1155 = vmatprep.subr.bf16.mxu0 0
        %1156 = vmatpush1.bf16.msra.mxu0 %v1128
        %1157 = vmatprep.subr.bf16.mxu0 0
        %1158 = vmatpush1.bf16.msra.mxu0 %v1127
        %1159 = vmatprep.subr.bf16.mxu0 0
        %1160 = vmatpush2.bf16.msra.mxu0 0
        %1161 = vmatprep.subr.bf16.mxu0 0
        %1162 = vmatpush2.bf16.msra.mxu0 0
        %1163 = vmatprep.subr.bf16.mxu0 0
        %1164 = vmatpush2.bf16.msra.mxu0 0
        %1165 = vmatprep.subr.bf16.mxu0 0
        %1166 = vmatpush2.bf16.msra.mxu0 0
        %1167 = vmatprep.subr.bf16.mxu0 0
        %1168 = vmatpush2.bf16.msra.mxu0 0
        %1169 = vmatprep.subr.bf16.mxu0 0
        %1170 = vmatpush2.bf16.msra.mxu0 0
        %1171 = vmatprep.subr.bf16.mxu0 0
        %1172 = vmatpush2.bf16.msra.mxu0 0
        %1173 = vmatprep.subr.bf16.mxu0 0
        %1174 = vmatpush2.bf16.msra.mxu0 0
        %1175 = vmatprep.mubr.bf16.mxu0 0
        %1176 = vmatmul.mubr.bf16.gmra.mxu0 %v1132
        %v1177 = vpop.f32.mrf.mxu0
        %v1178 = vadd.f32 %v1117, %v1177
        %v1179 = vpop.f32.mrf.mxu0
        %v1180 = vpop.f32.mrf.mxu0
        %v1181 = vadd.f32 %v1117, %v1180
        %v1182 = vpop.f32.mrf.mxu0
        %1183 = vmatprep.mubr.bf16.mxu0 0
        %1184 = vmatmul.mubr.bf16.gmra.mxu0 %v1135
        %v1185 = vpop.f32.mrf.mxu0
        %v1186 = vadd.f32 %v1117, %v1185
        %v1187 = vpop.f32.mrf.mxu0
        %v1188 = vpop.f32.mrf.mxu0
        %v1189 = vadd.f32 %v1117, %v1188
        %v1190 = vpop.f32.mrf.mxu0
        %1191 = vmatprep.mubr.bf16.mxu0 0
        %1192 = vmatmul.mubr.bf16.gmra.mxu0 %v1138
        %v1193 = vpop.f32.mrf.mxu0
        %v1194 = vadd.f32 %v1117, %v1193
        %v1195 = vpop.f32.mrf.mxu0
        %v1196 = vpop.f32.mrf.mxu0
        %v1197 = vadd.f32 %v1117, %v1196
        %v1198 = vpop.f32.mrf.mxu0
        %1199 = vmatprep.mubr.bf16.mxu0 0
        %1200 = vmatmul.mubr.bf16.gmra.mxu0 %v1141
        %v1201 = vpop.f32.mrf.mxu0
        %v1202 = vadd.f32 %v1117, %v1201
        %v1203 = vpop.f32.mrf.mxu0
        %v1204 = vpop.f32.mrf.mxu0
        %v1205 = vadd.f32 %v1117, %v1204
        %v1206 = vpop.f32.mrf.mxu0
        %1207 = vdwg.mxu0
        %1208 = vst [vmem:[#allocation2] sm:$0xff] %v1178
        %1209 = vst [vmem:[#allocation2 + $0x8] sm:$0xff] %v1181
        %1210 = vst [vmem:[#allocation2 + $0x10] sm:$0xff] %v1186
        %1211 = vst [vmem:[#allocation2 + $0x18] sm:$0xff] %v1189
        %1212 = vst [vmem:[#allocation2 + $0x20] sm:$0xff] %v1194
        %1213 = vst [vmem:[#allocation2 + $0x28] sm:$0xff] %v1197
        %1214 = vst [vmem:[#allocation2 + $0x30] sm:$0xff] %v1202
        %1215 = vst [vmem:[#allocation2 + $0x38] sm:$0xff] %v1205
        %s1216 = scalar_lea.vmem [#allocation11], 16
        %v1217 = vld [vmem:[%s1216] sm:$0xf]
        %v1218 = vld [vmem:[%s1216 + $0x4] sm:$0xf]
        %v1219 = vld [vmem:[%s1216 + $0x8] sm:$0xf]
        %v1220 = vld [vmem:[%s1216 + $0xc] sm:$0xf]
        %1221 = vst.msk [vmem:[#allocation4] sm:$0xff] %vm280, 0.0
        %1222 = vst.msk [vmem:[#allocation5] sm:$0xff] %vm280, 0.0
        %v1223 = vld [vmem:[#allocation2] sm:$0xff]
        %v1224 = vld [vmem:[#allocation4] sm:$0xff]
        %v1225 = vpack.c.bf16 %v1224, %v1224
        %v1230 = vunpack.c.l.b16 %v1217
        %v1231 = vunpack.c.l.b16 %v1218
        %v1232 = vunpack.c.l.b16 %v1219
        %v1233 = vunpack.c.l.b16 %v1220
        %v1234 = vpack.c.b16 %v1231, %v1230
        %v1235 = vpack.c.b16 %v1233, %v1232
        %v1239 = vsel %vm280, %v1225, 0
        %1241 = vmatprep.subr.bf16.mxu0 0
        %1242 = vmatpush1.bf16.msra.mxu0 0
        %1243 = vmatprep.subr.bf16.mxu0 0
        %1244 = vmatpush1.bf16.msra.mxu0 0
        %1245 = vmatprep.subr.bf16.mxu0 0
        %1246 = vmatpush1.bf16.msra.mxu0 0
        %1247 = vmatprep.subr.bf16.mxu0 0
        %1248 = vmatpush1.bf16.msra.mxu0 0
        %1249 = vmatprep.subr.bf16.mxu0 0
        %1250 = vmatpush1.bf16.msra.mxu0 0
        %1251 = vmatprep.subr.bf16.mxu0 0
        %1252 = vmatpush1.bf16.msra.mxu0 0
        %1253 = vmatprep.subr.bf16.mxu0 0
        %1254 = vmatpush1.bf16.msra.mxu0 %v1235
        %1255 = vmatprep.subr.bf16.mxu0 0
        %1256 = vmatpush1.bf16.msra.mxu0 %v1234
        %1257 = vmatprep.subr.bf16.mxu0 0
        %1258 = vmatpush2.bf16.msra.mxu0 0
        %1259 = vmatprep.subr.bf16.mxu0 0
        %1260 = vmatpush2.bf16.msra.mxu0 0
        %1261 = vmatprep.subr.bf16.mxu0 0
        %1262 = vmatpush2.bf16.msra.mxu0 0
        %1263 = vmatprep.subr.bf16.mxu0 0
        %1264 = vmatpush2.bf16.msra.mxu0 0
        %1265 = vmatprep.subr.bf16.mxu0 0
        %1266 = vmatpush2.bf16.msra.mxu0 0
        %1267 = vmatprep.subr.bf16.mxu0 0
        %1268 = vmatpush2.bf16.msra.mxu0 0
        %1269 = vmatprep.subr.bf16.mxu0 0
        %1270 = vmatpush2.bf16.msra.mxu0 0
        %1271 = vmatprep.subr.bf16.mxu0 0
        %1272 = vmatpush2.bf16.msra.mxu0 0
        %1273 = vmatprep.mubr.bf16.mxu0 0
        %1274 = vmatmul.mubr.bf16.gmra.mxu0 %v1239
        %v1275 = vpop.f32.mrf.mxu0
        %v1276 = vadd.f32 0.0, %v1275
        %v1277 = vpop.f32.mrf.mxu0
        %v1278 = vpop.f32.mrf.mxu0
        %v1279 = vpop.f32.mrf.mxu0
        %1280 = vdwg.mxu0
        %v1281 = vadd.f32 %v1223, %v1276
        %v1282 = vxor.u32 %v1281, 2147483648
        %v1283 = vmul.f32 %v1282, 1.442695
        %v1284 = vpow.pop %v1283
        %v1285 = vadd.f32 %v1284, 1.0
        %v1286 = vrcp.pop %v1285
        %v1287 = vmul.f32 1.0, %v1286
        %v1288 = vtanh.pop %v1281
        %v1289 = vld [vmem:[#allocation5] sm:$0xff]
        %1291 = vrot.lane.b32.xlu0 %v1289, 32
        %v1292 = vpop.permute.xlu0 %1291
        %v1294 = vmul.f32 %v1287, %v1292
        %1296 = vrot.lane.b32.xlu0 %v1288, 64
        %v1297 = vpop.permute.xlu0 %1296
        %v1299 = vmul.f32 %v1287, %v1297
        %1301 = vrot.lane.b32.xlu0 %v1299, 32
        %v1302 = vpop.permute.xlu0 %1301
        %v1304 = vadd.f32 %v1294, %v1302
        %v1305 = vtanh.pop %v1304
        %1307 = vrot.lane.b32.xlu0 %v1305, 64
        %v1308 = vpop.permute.xlu0 %1307
        %v1310 = vmul.f32 %v1287, %v1308
        %1312 = vrot.lane.b32.xlu0 %v1304, 96
        %v1313 = vpop.permute.xlu0 %1312
        %1315 = vst.msk [vmem:[#allocation5] sm:$0xff] %vm280, %v1313
        %1317 = vrot.lane.b32.xlu0 %v1310, 32
        %v1318 = vpop.permute.xlu0 %1317
        %1320 = vst.msk [vmem:[#allocation4] sm:$0xff] %vm280, %v1318
        %1321 = vst.msk [vmem:[%s243] sm:$0xff] %vm280, %v1318
        %v1322 = vld [vmem:[%s471] sm:$0xff]
        %v1323 = vld [vmem:[#allocation4] sm:$0xff]
        %v1324 = vpack.c.bf16 %v1323, %v1323
        %v1326 = vsel %vm280, %v1324, 0
        %1328 = vmatprep.subr.bf16.mxu0 0
        %1329 = vmatpush1.bf16.msra.mxu0 0
        %1330 = vmatprep.subr.bf16.mxu0 0
        %1331 = vmatpush1.bf16.msra.mxu0 0
        %1332 = vmatprep.subr.bf16.mxu0 0
        %1333 = vmatpush1.bf16.msra.mxu0 0
        %1334 = vmatprep.subr.bf16.mxu0 0
        %1335 = vmatpush1.bf16.msra.mxu0 0
        %1336 = vmatprep.subr.bf16.mxu0 0
        %1337 = vmatpush1.bf16.msra.mxu0 0
        %1338 = vmatprep.subr.bf16.mxu0 0
        %1339 = vmatpush1.bf16.msra.mxu0 0
        %1340 = vmatprep.subr.bf16.mxu0 0
        %1341 = vmatpush1.bf16.msra.mxu0 %v1235
        %1342 = vmatprep.subr.bf16.mxu0 0
        %1343 = vmatpush1.bf16.msra.mxu0 %v1234
        %1344 = vmatprep.subr.bf16.mxu0 0
        %1345 = vmatpush2.bf16.msra.mxu0 0
        %1346 = vmatprep.subr.bf16.mxu0 0
        %1347 = vmatpush2.bf16.msra.mxu0 0
        %1348 = vmatprep.subr.bf16.mxu0 0
        %1349 = vmatpush2.bf16.msra.mxu0 0
        %1350 = vmatprep.subr.bf16.mxu0 0
        %1351 = vmatpush2.bf16.msra.mxu0 0
        %1352 = vmatprep.subr.bf16.mxu0 0
        %1353 = vmatpush2.bf16.msra.mxu0 0
        %1354 = vmatprep.subr.bf16.mxu0 0
        %1355 = vmatpush2.bf16.msra.mxu0 0
        %1356 = vmatprep.subr.bf16.mxu0 0
        %1357 = vmatpush2.bf16.msra.mxu0 0
        %1358 = vmatprep.subr.bf16.mxu0 0
        %1359 = vmatpush2.bf16.msra.mxu0 0
        %1360 = vmatprep.mubr.bf16.mxu0 0
        %1361 = vmatmul.mubr.bf16.gmra.mxu0 %v1326
        %v1362 = vpop.f32.mrf.mxu0
        %v1363 = vadd.f32 0.0, %v1362
        %v1364 = vpop.f32.mrf.mxu0
        %v1365 = vpop.f32.mrf.mxu0
        %v1366 = vpop.f32.mrf.mxu0
        %1367 = vdwg.mxu0
        %v1368 = vadd.f32 %v1322, %v1363
        %v1369 = vxor.u32 %v1368, 2147483648
        %v1370 = vmul.f32 %v1369, 1.442695
        %v1371 = vpow.pop %v1370
        %v1372 = vadd.f32 %v1371, 1.0
        %v1373 = vrcp.pop %v1372
        %v1374 = vmul.f32 1.0, %v1373
        %v1375 = vtanh.pop %v1368
        %v1376 = vld [vmem:[#allocation5] sm:$0xff]
        %1378 = vrot.lane.b32.xlu0 %v1376, 32
        %v1379 = vpop.permute.xlu0 %1378
        %v1381 = vmul.f32 %v1374, %v1379
        %1383 = vrot.lane.b32.xlu0 %v1375, 64
        %v1384 = vpop.permute.xlu0 %1383
        %v1386 = vmul.f32 %v1374, %v1384
        %1388 = vrot.lane.b32.xlu0 %v1386, 32
        %v1389 = vpop.permute.xlu0 %1388
        %v1391 = vadd.f32 %v1381, %v1389
        %v1392 = vtanh.pop %v1391
        %1394 = vrot.lane.b32.xlu0 %v1392, 64
        %v1395 = vpop.permute.xlu0 %1394
        %v1397 = vmul.f32 %v1374, %v1395
        %1399 = vrot.lane.b32.xlu0 %v1391, 96
        %v1400 = vpop.permute.xlu0 %1399
        %1402 = vst.msk [vmem:[#allocation5] sm:$0xff] %vm280, %v1400
        %1404 = vrot.lane.b32.xlu0 %v1397, 32
        %v1405 = vpop.permute.xlu0 %1404
        %1407 = vst.msk [vmem:[#allocation4] sm:$0xff] %vm280, %v1405
        %s1408 = scalar_lea.vmem %s243, 8 [#allocation12]
        %1409 = vst.msk [vmem:[%s1408] sm:$0xff] %vm280, %v1405
        %v1410 = vld [vmem:[%s560] sm:$0xff]
        %v1411 = vld [vmem:[#allocation4] sm:$0xff]
        %v1412 = vpack.c.bf16 %v1411, %v1411
        %v1414 = vsel %vm280, %v1412, 0
        %1416 = vmatprep.subr.bf16.mxu0 0
        %1417 = vmatpush1.bf16.msra.mxu0 0
        %1418 = vmatprep.subr.bf16.mxu0 0
        %1419 = vmatpush1.bf16.msra.mxu0 0
        %1420 = vmatprep.subr.bf16.mxu0 0
        %1421 = vmatpush1.bf16.msra.mxu0 0
        %1422 = vmatprep.subr.bf16.mxu0 0
        %1423 = vmatpush1.bf16.msra.mxu0 0
        %1424 = vmatprep.subr.bf16.mxu0 0
        %1425 = vmatpush1.bf16.msra.mxu0 0
        %1426 = vmatprep.subr.bf16.mxu0 0
        %1427 = vmatpush1.bf16.msra.mxu0 0
        %1428 = vmatprep.subr.bf16.mxu0 0
        %1429 = vmatpush1.bf16.msra.mxu0 %v1235
        %1430 = vmatprep.subr.bf16.mxu0 0
        %1431 = vmatpush1.bf16.msra.mxu0 %v1234
        %1432 = vmatprep.subr.bf16.mxu0 0
        %1433 = vmatpush2.bf16.msra.mxu0 0
        %1434 = vmatprep.subr.bf16.mxu0 0
        %1435 = vmatpush2.bf16.msra.mxu0 0
        %1436 = vmatprep.subr.bf16.mxu0 0
        %1437 = vmatpush2.bf16.msra.mxu0 0
        %1438 = vmatprep.subr.bf16.mxu0 0
        %1439 = vmatpush2.bf16.msra.mxu0 0
        %1440 = vmatprep.subr.bf16.mxu0 0
        %1441 = vmatpush2.bf16.msra.mxu0 0
        %1442 = vmatprep.subr.bf16.mxu0 0
        %1443 = vmatpush2.bf16.msra.mxu0 0
        %1444 = vmatprep.subr.bf16.mxu0 0
        %1445 = vmatpush2.bf16.msra.mxu0 0
        %1446 = vmatprep.subr.bf16.mxu0 0
        %1447 = vmatpush2.bf16.msra.mxu0 0
        %1448 = vmatprep.mubr.bf16.mxu0 0
        %1449 = vmatmul.mubr.bf16.gmra.mxu0 %v1414
        %v1450 = vpop.f32.mrf.mxu0
        %v1451 = vadd.f32 0.0, %v1450
        %v1452 = vpop.f32.mrf.mxu0
        %v1453 = vpop.f32.mrf.mxu0
        %v1454 = vpop.f32.mrf.mxu0
        %1455 = vdwg.mxu0
        %v1456 = vadd.f32 %v1410, %v1451
        %v1457 = vxor.u32 %v1456, 2147483648
        %v1458 = vmul.f32 %v1457, 1.442695
        %v1459 = vpow.pop %v1458
        %v1460 = vadd.f32 %v1459, 1.0
        %v1461 = vrcp.pop %v1460
        %v1462 = vmul.f32 1.0, %v1461
        %v1463 = vtanh.pop %v1456
        %v1464 = vld [vmem:[#allocation5] sm:$0xff]
        %1466 = vrot.lane.b32.xlu0 %v1464, 32
        %v1467 = vpop.permute.xlu0 %1466
        %v1469 = vmul.f32 %v1462, %v1467
        %1471 = vrot.lane.b32.xlu0 %v1463, 64
        %v1472 = vpop.permute.xlu0 %1471
        %v1474 = vmul.f32 %v1462, %v1472
        %1476 = vrot.lane.b32.xlu0 %v1474, 32
        %v1477 = vpop.permute.xlu0 %1476
        %v1479 = vadd.f32 %v1469, %v1477
        %v1480 = vtanh.pop %v1479
        %1482 = vrot.lane.b32.xlu0 %v1480, 64
        %v1483 = vpop.permute.xlu0 %1482
        %v1485 = vmul.f32 %v1462, %v1483
        %1487 = vrot.lane.b32.xlu0 %v1479, 96
        %v1488 = vpop.permute.xlu0 %1487
        %1490 = vst.msk [vmem:[#allocation5] sm:$0xff] %vm280, %v1488
        %1492 = vrot.lane.b32.xlu0 %v1485, 32
        %v1493 = vpop.permute.xlu0 %1492
        %1495 = vst.msk [vmem:[#allocation4] sm:$0xff] %vm280, %v1493
        %s1496 = scalar_lea.vmem %s243, 16 [#allocation12]
        %1497 = vst.msk [vmem:[%s1496] sm:$0xff] %vm280, %v1493
        %v1498 = vld [vmem:[%s649] sm:$0xff]
        %v1499 = vld [vmem:[#allocation4] sm:$0xff]
        %v1500 = vpack.c.bf16 %v1499, %v1499
        %v1502 = vsel %vm280, %v1500, 0
        %1504 = vmatprep.subr.bf16.mxu0 0
        %1505 = vmatpush1.bf16.msra.mxu0 0
        %1506 = vmatprep.subr.bf16.mxu0 0
        %1507 = vmatpush1.bf16.msra.mxu0 0
        %1508 = vmatprep.subr.bf16.mxu0 0
        %1509 = vmatpush1.bf16.msra.mxu0 0
        %1510 = vmatprep.subr.bf16.mxu0 0
        %1511 = vmatpush1.bf16.msra.mxu0 0
        %1512 = vmatprep.subr.bf16.mxu0 0
        %1513 = vmatpush1.bf16.msra.mxu0 0
        %1514 = vmatprep.subr.bf16.mxu0 0
        %1515 = vmatpush1.bf16.msra.mxu0 0
        %1516 = vmatprep.subr.bf16.mxu0 0
        %1517 = vmatpush1.bf16.msra.mxu0 %v1235
        %1518 = vmatprep.subr.bf16.mxu0 0
        %1519 = vmatpush1.bf16.msra.mxu0 %v1234
        %1520 = vmatprep.subr.bf16.mxu0 0
        %1521 = vmatpush2.bf16.msra.mxu0 0
        %1522 = vmatprep.subr.bf16.mxu0 0
        %1523 = vmatpush2.bf16.msra.mxu0 0
        %1524 = vmatprep.subr.bf16.mxu0 0
        %1525 = vmatpush2.bf16.msra.mxu0 0
        %1526 = vmatprep.subr.bf16.mxu0 0
        %1527 = vmatpush2.bf16.msra.mxu0 0
        %1528 = vmatprep.subr.bf16.mxu0 0
        %1529 = vmatpush2.bf16.msra.mxu0 0
        %1530 = vmatprep.subr.bf16.mxu0 0
        %1531 = vmatpush2.bf16.msra.mxu0 0
        %1532 = vmatprep.subr.bf16.mxu0 0
        %1533 = vmatpush2.bf16.msra.mxu0 0
        %1534 = vmatprep.subr.bf16.mxu0 0
        %1535 = vmatpush2.bf16.msra.mxu0 0
        %1536 = vmatprep.mubr.bf16.mxu0 0
        %1537 = vmatmul.mubr.bf16.gmra.mxu0 %v1502
        %v1538 = vpop.f32.mrf.mxu0
        %v1539 = vadd.f32 0.0, %v1538
        %v1540 = vpop.f32.mrf.mxu0
        %v1541 = vpop.f32.mrf.mxu0
        %v1542 = vpop.f32.mrf.mxu0
        %1543 = vdwg.mxu0
        %v1544 = vadd.f32 %v1498, %v1539
        %v1545 = vxor.u32 %v1544, 2147483648
        %v1546 = vmul.f32 %v1545, 1.442695
        %v1547 = vpow.pop %v1546
        %v1548 = vadd.f32 %v1547, 1.0
        %v1549 = vrcp.pop %v1548
        %v1550 = vmul.f32 1.0, %v1549
        %v1551 = vtanh.pop %v1544
        %v1552 = vld [vmem:[#allocation5] sm:$0xff]
        %1554 = vrot.lane.b32.xlu0 %v1552, 32
        %v1555 = vpop.permute.xlu0 %1554
        %v1557 = vmul.f32 %v1550, %v1555
        %1559 = vrot.lane.b32.xlu0 %v1551, 64
        %v1560 = vpop.permute.xlu0 %1559
        %v1562 = vmul.f32 %v1550, %v1560
        %1564 = vrot.lane.b32.xlu0 %v1562, 32
        %v1565 = vpop.permute.xlu0 %1564
        %v1567 = vadd.f32 %v1557, %v1565
        %v1568 = vtanh.pop %v1567
        %1570 = vrot.lane.b32.xlu0 %v1568, 64
        %v1571 = vpop.permute.xlu0 %1570
        %v1573 = vmul.f32 %v1550, %v1571
        %1575 = vrot.lane.b32.xlu0 %v1567, 96
        %v1576 = vpop.permute.xlu0 %1575
        %1578 = vst.msk [vmem:[#allocation5] sm:$0xff] %vm280, %v1576
        %1580 = vrot.lane.b32.xlu0 %v1573, 32
        %v1581 = vpop.permute.xlu0 %1580
        %1583 = vst.msk [vmem:[#allocation4] sm:$0xff] %vm280, %v1581
        %s1584 = scalar_lea.vmem %s243, 24 [#allocation12]
        %1585 = vst.msk [vmem:[%s1584] sm:$0xff] %vm280, %v1581
        %v1586 = vld [vmem:[%s738] sm:$0xff]
        %v1587 = vld [vmem:[#allocation4] sm:$0xff]
        %v1588 = vpack.c.bf16 %v1587, %v1587
        %v1590 = vsel %vm280, %v1588, 0
        %1592 = vmatprep.subr.bf16.mxu0 0
        %1593 = vmatpush1.bf16.msra.mxu0 0
        %1594 = vmatprep.subr.bf16.mxu0 0
        %1595 = vmatpush1.bf16.msra.mxu0 0
        %1596 = vmatprep.subr.bf16.mxu0 0
        %1597 = vmatpush1.bf16.msra.mxu0 0
        %1598 = vmatprep.subr.bf16.mxu0 0
        %1599 = vmatpush1.bf16.msra.mxu0 0
        %1600 = vmatprep.subr.bf16.mxu0 0
        %1601 = vmatpush1.bf16.msra.mxu0 0
        %1602 = vmatprep.subr.bf16.mxu0 0
        %1603 = vmatpush1.bf16.msra.mxu0 0
        %1604 = vmatprep.subr.bf16.mxu0 0
        %1605 = vmatpush1.bf16.msra.mxu0 %v1235
        %1606 = vmatprep.subr.bf16.mxu0 0
        %1607 = vmatpush1.bf16.msra.mxu0 %v1234
        %1608 = vmatprep.subr.bf16.mxu0 0
        %1609 = vmatpush2.bf16.msra.mxu0 0
        %1610 = vmatprep.subr.bf16.mxu0 0
        %1611 = vmatpush2.bf16.msra.mxu0 0
        %1612 = vmatprep.subr.bf16.mxu0 0
        %1613 = vmatpush2.bf16.msra.mxu0 0
        %1614 = vmatprep.subr.bf16.mxu0 0
        %1615 = vmatpush2.bf16.msra.mxu0 0
        %1616 = vmatprep.subr.bf16.mxu0 0
        %1617 = vmatpush2.bf16.msra.mxu0 0
        %1618 = vmatprep.subr.bf16.mxu0 0
        %1619 = vmatpush2.bf16.msra.mxu0 0
        %1620 = vmatprep.subr.bf16.mxu0 0
        %1621 = vmatpush2.bf16.msra.mxu0 0
        %1622 = vmatprep.subr.bf16.mxu0 0
        %1623 = vmatpush2.bf16.msra.mxu0 0
        %1624 = vmatprep.mubr.bf16.mxu0 0
        %1625 = vmatmul.mubr.bf16.gmra.mxu0 %v1590
        %v1626 = vpop.f32.mrf.mxu0
        %v1627 = vadd.f32 0.0, %v1626
        %v1628 = vpop.f32.mrf.mxu0
        %v1629 = vpop.f32.mrf.mxu0
        %v1630 = vpop.f32.mrf.mxu0
        %1631 = vdwg.mxu0
        %v1632 = vadd.f32 %v1586, %v1627
        %v1633 = vxor.u32 %v1632, 2147483648
        %v1634 = vmul.f32 %v1633, 1.442695
        %v1635 = vpow.pop %v1634
        %v1636 = vadd.f32 %v1635, 1.0
        %v1637 = vrcp.pop %v1636
        %v1638 = vmul.f32 1.0, %v1637
        %v1639 = vtanh.pop %v1632
        %v1640 = vld [vmem:[#allocation5] sm:$0xff]
        %1642 = vrot.lane.b32.xlu0 %v1640, 32
        %v1643 = vpop.permute.xlu0 %1642
        %v1645 = vmul.f32 %v1638, %v1643
        %1647 = vrot.lane.b32.xlu0 %v1639, 64
        %v1648 = vpop.permute.xlu0 %1647
        %v1650 = vmul.f32 %v1638, %v1648
        %1652 = vrot.lane.b32.xlu0 %v1650, 32
        %v1653 = vpop.permute.xlu0 %1652
        %v1655 = vadd.f32 %v1645, %v1653
        %v1656 = vtanh.pop %v1655
        %1658 = vrot.lane.b32.xlu0 %v1656, 64
        %v1659 = vpop.permute.xlu0 %1658
        %v1661 = vmul.f32 %v1638, %v1659
        %1663 = vrot.lane.b32.xlu0 %v1655, 96
        %v1664 = vpop.permute.xlu0 %1663
        %1666 = vst.msk [vmem:[#allocation5] sm:$0xff] %vm280, %v1664
        %1668 = vrot.lane.b32.xlu0 %v1661, 32
        %v1669 = vpop.permute.xlu0 %1668
        %1671 = vst.msk [vmem:[#allocation4] sm:$0xff] %vm280, %v1669
        %s1672 = scalar_lea.vmem %s243, 32 [#allocation12]
        %1673 = vst.msk [vmem:[%s1672] sm:$0xff] %vm280, %v1669
        %v1674 = vld [vmem:[%s827] sm:$0xff]
        %v1675 = vld [vmem:[#allocation4] sm:$0xff]
        %v1676 = vpack.c.bf16 %v1675, %v1675
        %v1678 = vsel %vm280, %v1676, 0
        %1680 = vmatprep.subr.bf16.mxu0 0
        %1681 = vmatpush1.bf16.msra.mxu0 0
        %1682 = vmatprep.subr.bf16.mxu0 0
        %1683 = vmatpush1.bf16.msra.mxu0 0
        %1684 = vmatprep.subr.bf16.mxu0 0
        %1685 = vmatpush1.bf16.msra.mxu0 0
        %1686 = vmatprep.subr.bf16.mxu0 0
        %1687 = vmatpush1.bf16.msra.mxu0 0
        %1688 = vmatprep.subr.bf16.mxu0 0
        %1689 = vmatpush1.bf16.msra.mxu0 0
        %1690 = vmatprep.subr.bf16.mxu0 0
        %1691 = vmatpush1.bf16.msra.mxu0 0
        %1692 = vmatprep.subr.bf16.mxu0 0
        %1693 = vmatpush1.bf16.msra.mxu0 %v1235
        %1694 = vmatprep.subr.bf16.mxu0 0
        %1695 = vmatpush1.bf16.msra.mxu0 %v1234
        %1696 = vmatprep.subr.bf16.mxu0 0
        %1697 = vmatpush2.bf16.msra.mxu0 0
        %1698 = vmatprep.subr.bf16.mxu0 0
        %1699 = vmatpush2.bf16.msra.mxu0 0
        %1700 = vmatprep.subr.bf16.mxu0 0
        %1701 = vmatpush2.bf16.msra.mxu0 0
        %1702 = vmatprep.subr.bf16.mxu0 0
        %1703 = vmatpush2.bf16.msra.mxu0 0
        %1704 = vmatprep.subr.bf16.mxu0 0
        %1705 = vmatpush2.bf16.msra.mxu0 0
        %1706 = vmatprep.subr.bf16.mxu0 0
        %1707 = vmatpush2.bf16.msra.mxu0 0
        %1708 = vmatprep.subr.bf16.mxu0 0
        %1709 = vmatpush2.bf16.msra.mxu0 0
        %1710 = vmatprep.subr.bf16.mxu0 0
        %1711 = vmatpush2.bf16.msra.mxu0 0
        %1712 = vmatprep.mubr.bf16.mxu0 0
        %1713 = vmatmul.mubr.bf16.gmra.mxu0 %v1678
        %v1714 = vpop.f32.mrf.mxu0
        %v1715 = vadd.f32 0.0, %v1714
        %v1716 = vpop.f32.mrf.mxu0
        %v1717 = vpop.f32.mrf.mxu0
        %v1718 = vpop.f32.mrf.mxu0
        %1719 = vdwg.mxu0
        %v1720 = vadd.f32 %v1674, %v1715
        %v1721 = vxor.u32 %v1720, 2147483648
        %v1722 = vmul.f32 %v1721, 1.442695
        %v1723 = vpow.pop %v1722
        %v1724 = vadd.f32 %v1723, 1.0
        %v1725 = vrcp.pop %v1724
        %v1726 = vmul.f32 1.0, %v1725
        %v1727 = vtanh.pop %v1720
        %v1728 = vld [vmem:[#allocation5] sm:$0xff]
        %1730 = vrot.lane.b32.xlu0 %v1728, 32
        %v1731 = vpop.permute.xlu0 %1730
        %v1733 = vmul.f32 %v1726, %v1731
        %1735 = vrot.lane.b32.xlu0 %v1727, 64
        %v1736 = vpop.permute.xlu0 %1735
        %v1738 = vmul.f32 %v1726, %v1736
        %1740 = vrot.lane.b32.xlu0 %v1738, 32
        %v1741 = vpop.permute.xlu0 %1740
        %v1743 = vadd.f32 %v1733, %v1741
        %v1744 = vtanh.pop %v1743
        %1746 = vrot.lane.b32.xlu0 %v1744, 64
        %v1747 = vpop.permute.xlu0 %1746
        %v1749 = vmul.f32 %v1726, %v1747
        %1751 = vrot.lane.b32.xlu0 %v1743, 96
        %v1752 = vpop.permute.xlu0 %1751
        %1754 = vst.msk [vmem:[#allocation5] sm:$0xff] %vm280, %v1752
        %1756 = vrot.lane.b32.xlu0 %v1749, 32
        %v1757 = vpop.permute.xlu0 %1756
        %1759 = vst.msk [vmem:[#allocation4] sm:$0xff] %vm280, %v1757
        %s1760 = scalar_lea.vmem %s243, 40 [#allocation12]
        %1761 = vst.msk [vmem:[%s1760] sm:$0xff] %vm280, %v1757
        %v1762 = vld [vmem:[%s916] sm:$0xff]
        %v1763 = vld [vmem:[#allocation4] sm:$0xff]
        %v1764 = vpack.c.bf16 %v1763, %v1763
        %v1766 = vsel %vm280, %v1764, 0
        %1768 = vmatprep.subr.bf16.mxu0 0
        %1769 = vmatpush1.bf16.msra.mxu0 0
        %1770 = vmatprep.subr.bf16.mxu0 0
        %1771 = vmatpush1.bf16.msra.mxu0 0
        %1772 = vmatprep.subr.bf16.mxu0 0
        %1773 = vmatpush1.bf16.msra.mxu0 0
        %1774 = vmatprep.subr.bf16.mxu0 0
        %1775 = vmatpush1.bf16.msra.mxu0 0
        %1776 = vmatprep.subr.bf16.mxu0 0
        %1777 = vmatpush1.bf16.msra.mxu0 0
        %1778 = vmatprep.subr.bf16.mxu0 0
        %1779 = vmatpush1.bf16.msra.mxu0 0
        %1780 = vmatprep.subr.bf16.mxu0 0
        %1781 = vmatpush1.bf16.msra.mxu0 %v1235
        %1782 = vmatprep.subr.bf16.mxu0 0
        %1783 = vmatpush1.bf16.msra.mxu0 %v1234
        %1784 = vmatprep.subr.bf16.mxu0 0
        %1785 = vmatpush2.bf16.msra.mxu0 0
        %1786 = vmatprep.subr.bf16.mxu0 0
        %1787 = vmatpush2.bf16.msra.mxu0 0
        %1788 = vmatprep.subr.bf16.mxu0 0
        %1789 = vmatpush2.bf16.msra.mxu0 0
        %1790 = vmatprep.subr.bf16.mxu0 0
        %1791 = vmatpush2.bf16.msra.mxu0 0
        %1792 = vmatprep.subr.bf16.mxu0 0
        %1793 = vmatpush2.bf16.msra.mxu0 0
        %1794 = vmatprep.subr.bf16.mxu0 0
        %1795 = vmatpush2.bf16.msra.mxu0 0
        %1796 = vmatprep.subr.bf16.mxu0 0
        %1797 = vmatpush2.bf16.msra.mxu0 0
        %1798 = vmatprep.subr.bf16.mxu0 0
        %1799 = vmatpush2.bf16.msra.mxu0 0
        %1800 = vmatprep.mubr.bf16.mxu0 0
        %1801 = vmatmul.mubr.bf16.gmra.mxu0 %v1766
        %v1802 = vpop.f32.mrf.mxu0
        %v1803 = vadd.f32 0.0, %v1802
        %v1804 = vpop.f32.mrf.mxu0
        %v1805 = vpop.f32.mrf.mxu0
        %v1806 = vpop.f32.mrf.mxu0
        %1807 = vdwg.mxu0
        %v1808 = vadd.f32 %v1762, %v1803
        %v1809 = vxor.u32 %v1808, 2147483648
        %v1810 = vmul.f32 %v1809, 1.442695
        %v1811 = vpow.pop %v1810
        %v1812 = vadd.f32 %v1811, 1.0
        %v1813 = vrcp.pop %v1812
        %v1814 = vmul.f32 1.0, %v1813
        %v1815 = vtanh.pop %v1808
        %v1816 = vld [vmem:[#allocation5] sm:$0xff]
        %1818 = vrot.lane.b32.xlu0 %v1816, 32
        %v1819 = vpop.permute.xlu0 %1818
        %v1821 = vmul.f32 %v1814, %v1819
        %1823 = vrot.lane.b32.xlu0 %v1815, 64
        %v1824 = vpop.permute.xlu0 %1823
        %v1826 = vmul.f32 %v1814, %v1824
        %1828 = vrot.lane.b32.xlu0 %v1826, 32
        %v1829 = vpop.permute.xlu0 %1828
        %v1831 = vadd.f32 %v1821, %v1829
        %v1832 = vtanh.pop %v1831
        %1834 = vrot.lane.b32.xlu0 %v1832, 64
        %v1835 = vpop.permute.xlu0 %1834
        %v1837 = vmul.f32 %v1814, %v1835
        %1839 = vrot.lane.b32.xlu0 %v1831, 96
        %v1840 = vpop.permute.xlu0 %1839
        %1842 = vst.msk [vmem:[#allocation5] sm:$0xff] %vm280, %v1840
        %1844 = vrot.lane.b32.xlu0 %v1837, 32
        %v1845 = vpop.permute.xlu0 %1844
        %1847 = vst.msk [vmem:[#allocation4] sm:$0xff] %vm280, %v1845
        %s1848 = scalar_lea.vmem %s243, 48 [#allocation12]
        %1849 = vst.msk [vmem:[%s1848] sm:$0xff] %vm280, %v1845
        %v1850 = vld [vmem:[%s1005] sm:$0xff]
        %v1851 = vld [vmem:[#allocation4] sm:$0xff]
        %v1852 = vpack.c.bf16 %v1851, %v1851
        %v1854 = vsel %vm280, %v1852, 0
        %1856 = vmatprep.subr.bf16.mxu0 0
        %1857 = vmatpush1.bf16.msra.mxu0 0
        %1858 = vmatprep.subr.bf16.mxu0 0
        %1859 = vmatpush1.bf16.msra.mxu0 0
        %1860 = vmatprep.subr.bf16.mxu0 0
        %1861 = vmatpush1.bf16.msra.mxu0 0
        %1862 = vmatprep.subr.bf16.mxu0 0
        %1863 = vmatpush1.bf16.msra.mxu0 0
        %1864 = vmatprep.subr.bf16.mxu0 0
        %1865 = vmatpush1.bf16.msra.mxu0 0
        %1866 = vmatprep.subr.bf16.mxu0 0
        %1867 = vmatpush1.bf16.msra.mxu0 0
        %1868 = vmatprep.subr.bf16.mxu0 0
        %1869 = vmatpush1.bf16.msra.mxu0 %v1235
        %1870 = vmatprep.subr.bf16.mxu0 0
        %1871 = vmatpush1.bf16.msra.mxu0 %v1234
        %1872 = vmatprep.subr.bf16.mxu0 0
        %1873 = vmatpush2.bf16.msra.mxu0 0
        %1874 = vmatprep.subr.bf16.mxu0 0
        %1875 = vmatpush2.bf16.msra.mxu0 0
        %1876 = vmatprep.subr.bf16.mxu0 0
        %1877 = vmatpush2.bf16.msra.mxu0 0
        %1878 = vmatprep.subr.bf16.mxu0 0
        %1879 = vmatpush2.bf16.msra.mxu0 0
        %1880 = vmatprep.subr.bf16.mxu0 0
        %1881 = vmatpush2.bf16.msra.mxu0 0
        %1882 = vmatprep.subr.bf16.mxu0 0
        %1883 = vmatpush2.bf16.msra.mxu0 0
        %1884 = vmatprep.subr.bf16.mxu0 0
        %1885 = vmatpush2.bf16.msra.mxu0 0
        %1886 = vmatprep.subr.bf16.mxu0 0
        %1887 = vmatpush2.bf16.msra.mxu0 0
        %1888 = vmatprep.mubr.bf16.mxu0 0
        %1889 = vmatmul.mubr.bf16.gmra.mxu0 %v1854
        %v1890 = vpop.f32.mrf.mxu0
        %v1891 = vadd.f32 0.0, %v1890
        %v1892 = vpop.f32.mrf.mxu0
        %v1893 = vpop.f32.mrf.mxu0
        %v1894 = vpop.f32.mrf.mxu0
        %1895 = vdwg.mxu0
        %v1896 = vadd.f32 %v1850, %v1891
        %v1897 = vxor.u32 %v1896, 2147483648
        %v1898 = vmul.f32 %v1897, 1.442695
        %v1899 = vpow.pop %v1898
        %v1900 = vadd.f32 %v1899, 1.0
        %v1901 = vrcp.pop %v1900
        %v1902 = vmul.f32 1.0, %v1901
        %v1903 = vtanh.pop %v1896
        %v1904 = vld [vmem:[#allocation5] sm:$0xff]
        %1906 = vrot.lane.b32.xlu0 %v1904, 32
        %v1907 = vpop.permute.xlu0 %1906
        %v1909 = vmul.f32 %v1902, %v1907
        %1911 = vrot.lane.b32.xlu0 %v1903, 64
        %v1912 = vpop.permute.xlu0 %1911
        %v1914 = vmul.f32 %v1902, %v1912
        %1916 = vrot.lane.b32.xlu0 %v1914, 32
        %v1917 = vpop.permute.xlu0 %1916
        %v1919 = vadd.f32 %v1909, %v1917
        %v1920 = vtanh.pop %v1919
        %1922 = vrot.lane.b32.xlu0 %v1920, 64
        %v1923 = vpop.permute.xlu0 %1922
        %v1925 = vmul.f32 %v1902, %v1923
        %1927 = vrot.lane.b32.xlu0 %v1919, 96
        %v1928 = vpop.permute.xlu0 %1927
        %1930 = vst.msk [vmem:[#allocation5] sm:$0xff] %vm280, %v1928
        %1932 = vrot.lane.b32.xlu0 %v1925, 32
        %v1933 = vpop.permute.xlu0 %1932
        %1935 = vst.msk [vmem:[#allocation4] sm:$0xff] %vm280, %v1933
        %s1936 = scalar_lea.vmem %s243, 56 [#allocation12]
        %1937 = vst.msk [vmem:[%s1936] sm:$0xff] %vm280, %v1933
        %s1938 = sand.u32 %s119, 1
        %s1939 = scalar_lea.sflag [#allocation8], %s1938
        %s1940 = sand.u32 %s119, 1
        %s1941 = smul.addr %s1940, 64
        %s1942 = scalar_lea.vmem [#allocation12], %s1941
        // Predicated region
        $region49: #{tpu_custom_call.1} parent=35 // pred_check
          %p1943 = pneg %p129
        $region50: #{tpu_custom_call.1} parent=35 // pred_check_branch
          %1945 = sbr.rel (%p1943) target = $region52
        $region51: #{tpu_custom_call.1} parent=35 // pred_region
          %s1947 = ssub.s32 1024, 1024
          %1948 = vsyncadd %s1939, %s1947
          %s1949 = smul.addr %s22, 128
          %s1950 = scalar_lea.hbm %s4, %s1949
          %s1951 = sshll.u32 %s1942, 4
          %s1952 = int_to_ptr.vmem [resolvable:$true] %s1951
          %1957 = dma.vmem_to_hbm [thread:$0]  %s1952, 1024, %s1950, %s1939, 128, 256, 8
        $region52: #{tpu_custom_call.1} parent=35 // pred_fallthru
          _
      $region36: #{tpu_custom_call.1} parent=5 // pred_fallthru
        _
      %p1958 = scmp.le.s32.totalorder 2, %s17
      // Predicated region
      $region53: #{tpu_custom_call.1} parent=5 // pred_check
        %p1959 = pneg %p1958
      $region54: #{tpu_custom_call.1} parent=5 // pred_check_branch
        %1961 = sbr.rel (%p1959) target = $region56
      $region55: #{tpu_custom_call.1} parent=5 // pred_region
        %s1962 = ssub.s32 %s17, 2
        // Predicated region
        $region57: #{tpu_custom_call.1} parent=55 // pred_check
          %p1963 = pneg %p135
        $region58: #{tpu_custom_call.1} parent=55 // pred_check_branch
          %1965 = sbr.rel (%p1963) target = $region60
        $region59: #{tpu_custom_call.1} parent=55 // pred_region
          %s1966 = sand.u32 %s120, 1
          %s1967 = scalar_lea.sflag [#allocation8], %s1966
          %s1968 = sand.u32 %s120, 1
          %s1969 = smul.addr %s1968, 64
          %s1970 = scalar_lea.vmem [#allocation12], %s1969
          %1971 = dma.done %s1967, 1024
        $region60: #{tpu_custom_call.1} parent=55 // pred_fallthru
          _
      $region56: #{tpu_custom_call.1} parent=5 // pred_fallthru
        _
    $region6: #{tpu_custom_call.1} parent=1 // loop_footer
      %s21 = sadd.s32 1, %s17
    $region7: #{tpu_custom_call.1} parent=1 // loop_footer_branch
      %16 = sbr.rel target = $region3
    $region8: #{tpu_custom_call.1} parent=1 // loop_exit
      _
    %1972 = vsyncpa [#allocation7], 1
    %s1973 = scalar_lea.sflag [#allocation7], 1
    %1974 = vsyncpa %s1973, 1
    %1975 = vsyncpa [#allocation10], 1
    %1976 = vsyncpa [#allocation8], 1
    %s1977 = scalar_lea.sflag [#allocation8], 1
    %1978 = vsyncpa %s1977, 1

</llo_original>
